<compile_context>
chip_gen: v7x
topology: tpu7x:2x2x1
jax: 0.10.0
libtpu: 0.0.40
codegen_flags: <defaults>
</compile_context>

<pallas_src>
import functools
from types import SimpleNamespace

import numpy as np
import jax
import jax.numpy as jnp
from jax.experimental import pallas as pl
from jax.experimental.pallas import tpu as pltpu


def _round_up(x, m):
    return ((x + m - 1) // m) * m


def _phase_plan(H, W, K, stride, padding, output_padding):
    """Static sub-pixel (phase) decomposition of a ConvTranspose2d with a lane-aligned
    (multiple-of-128) flat row pitch so all in-kernel tap slices are (8,128)-aligned."""
    s = stride
    Ho = (H - 1) * s - 2 * padding + K + output_padding
    Wo = (W - 1) * s - 2 * padding + K + output_padding

    def axis(Lin, Lout):
        r_of = [(k - padding) % s for k in range(K)]                 # phase of tap k
        d_of = [(r_of[k] + padding - k) // s for k in range(K)]      # input offset of tap k
        M = [max(0, (Lout - r + s - 1) // s) for r in range(s)]      # outputs per phase
        Mmax = max(M)
        lo = max(0, -min(d_of))
        hi = max([0] + [Mmax - 1 + d - (Lin - 1) for d in d_of])
        return r_of, d_of, M, Mmax, lo, hi

    rh_of, dh_of, Mh, Mh_max, PLh, PHh = axis(H, Ho)
    rw_of, dw_of, Mw, Mw_max, PLw, PHw = axis(W, Wo)
    Hp, Wp = H + PLh + PHh, W + PLw + PHw

    Wp128 = _round_up(Wp, 128)                  # lane-aligned flat row pitch
    Lacc = Mh_max * Wp128                       # flat accumulator length per phase
    dh_max = max(dh_of)
    Lgemm = (PLh + dh_max + Mh_max) * Wp128     # columns consumed per dw-group window
    cshift_max = PLw + max(dw_of)
    Lx = _round_up(max(Hp * Wp128, cshift_max + Lgemm), 128)

    # Schedule: group taps by their column offset dw (one input re-alignment per group),
    # then chunk the GEMM per (group, kh); all later slices are (8,128)-aligned.
    dw_vals = sorted(set(dw_of))
    tap_order = []                              # weight row-block order: (kh, kw)
    sched = []                                  # per group: (cshift, ((base_col, phases), ...))
    for dwv in dw_vals:
        kws = [kw for kw in range(K) if dw_of[kw] == dwv]
        kh_entries = []
        for kh in range(K):
            base = (PLh + dh_of[kh]) * Wp128                         # multiple of 128
            phases = tuple(rh_of[kh] * s + rw_of[kw] for kw in kws)
            kh_entries.append((base, phases))
            for kw in kws:
                tap_order.append((kh, kw))
        sched.append((PLw + dwv, tuple(kh_entries)))

    return SimpleNamespace(Ho=Ho, Wo=Wo, Hp=Hp, Wp=Wp, Wp128=Wp128,
                           PLh=PLh, PHh=PHh, PLw=PLw, PHw=PHw,
                           Mh=Mh, Mw=Mw, Mh_max=Mh_max, Mw_max=Mw_max,
                           Lacc=Lacc, Lgemm=Lgemm, Lx=Lx,
                           sched=tuple(sched), tap_order=tuple(tap_order))


def _deconv_phase_kernel(x_ref, w_ref, m_ref, b_ref, g_ref, be_ref, o_ref, acc_ref, *,
                         cout_p, n_ph, lacc, lgemm, sched, count, apply_norm, eps):
    # x_ref  : (1, Cin, Lx)            padded, flat (pitch Wp128) input (compute dtype)
    # w_ref  : (K*K*Cout_p, Cin)       per-tap channel-mix weights, rows in `sched` order
    # m_ref  : (n_ph, Lacc)            1/0 validity mask (used for statistics only)
    # b/g/be : (Cout_p, 1)             conv bias, IN gamma, IN beta (f32)
    # o_ref  : (1, n_ph, Cout_p, Lacc) phase-blocked, lane-dense output (out dtype)
    # acc_ref: (n_ph, Cout_p, Lacc)    single f32 accumulator scratch (in-place)
    w_all = w_ref[...]
    written = set()
    row0 = 0
    for (cshift, kh_entries) in sched:
        # One (possibly lane-misaligned) input window per dw-group; everything sliced
        # from it below is lane/sublane aligned.
        xs = x_ref[0, :, cshift:cshift + lgemm]                       # (Cin, Lgemm)
        for (base, phases) in kh_entries:
            nkw = len(phases)
            w_blk = w_all[row0:row0 + nkw * cout_p, :]                # sublane-aligned rows
            xs_k = xs[:, base:base + lacc]                            # lane-aligned columns
            # Chunked MXU GEMM: only (nkw*Cout_p, Lacc) of the tap intermediate is live.
            y = jnp.dot(w_blk, xs_k, preferred_element_type=jnp.float32)
            for j, pi in enumerate(phases):
                slab = y[j * cout_p:(j + 1) * cout_p, :]              # aligned row block
                if pi in written:
                    acc_ref[pi] += slab
                else:
                    acc_ref[pi] = slab
                    written.add(pi)
            row0 += nkw * cout_p
    for pi in range(n_ph):
        if pi not in written:                                         # only possible if K < s
            acc_ref[pi] = jnp.zeros((cout_p, lacc), jnp.float32)

    if apply_norm:
        # Fused one-shot instance norm: single masked pass for sum / sum-of-squares,
        # then one scale/shift FMA while casting to the output dtype.  The
        # ConvTranspose bias cancels exactly under instance-norm centering.
        masks = m_ref[...]
        ssum = jnp.zeros((cout_p, 1), jnp.float32)
        ssq = jnp.zeros((cout_p, 1), jnp.float32)
        for pi in range(n_ph):
            a = acc_ref[pi]
            am = a * masks[pi:pi + 1]
            ssum = ssum + jnp.sum(am, axis=1, keepdims=True)
            ssq = ssq + jnp.sum(am * a, axis=1, keepdims=True)
        inv_cnt = 1.0 / float(count)
        mean = ssum * inv_cnt
        var = jnp.maximum(ssq * inv_cnt - mean * mean, 0.0)
        inv_std = jax.lax.rsqrt(var + eps)
        scale = g_ref[...] * inv_std
        shift = be_ref[...] - mean * scale
        for pi in range(n_ph):
            o_ref[0, pi] = (acc_ref[pi] * scale + shift).astype(o_ref.dtype)
    else:
        bias_col = b_ref[...]
        for pi in range(n_ph):
            o_ref[0, pi] = (acc_ref[pi] + bias_col).astype(o_ref.dtype)


def _vmem_limit_bytes(est_bytes):
    """Derive the scoped VMEM limit from actual block sizes, capped per generation."""
    cap = 64 * 1024 * 1024
    try:
        cap = int(getattr(pltpu.get_tpu_info(), "vmem_capacity_bytes", cap))
    except Exception:
        pass
    limit = max(est_bytes * 5 // 4 + (2 << 20), 16 * 1024 * 1024)
    return int(min(limit, cap * 3 // 4))


def deconv_layer(x_nchw, weight, bias, gamma, beta, *, stride, output_padding,
                 norm='instance', eps=1e-5, compute_dtype=jnp.float32, out_dtype=None):
    """DeconvLayer forward. x_nchw: (N, Cin, H, W); weight: (Cin, Cout, K, K)."""
    N, Cin, H, W = x_nchw.shape
    Cin_w, Cout, K, K2 = weight.shape
    assert Cin_w == Cin and K == K2
    padding = K // 2
    if norm == 'batch':
        # TODO(synk): BatchNorm2d (cross-batch / running statistics) not implemented.
        raise NotImplementedError("norm='batch' is not supported by this kernel")
    apply_norm = norm not in ('None', None)
    if out_dtype is None:
        out_dtype = compute_dtype

    s = stride
    n_ph = s * s
    plan = _phase_plan(H, W, K, s, padding, output_padding)
    Cout_p = _round_up(Cout, 8)                 # sublane-aligned per-tap row blocks

    # Un-dilated input, padded for the sub-pixel taps, lane-aligned flat pitch Wp128.
    xp = jnp.pad(x_nchw.astype(compute_dtype),
                 ((0, 0), (0, 0), (plan.PLh, plan.PHh),
                  (plan.PLw, plan.PHw + plan.Wp128 - plan.Wp)))
    xf = xp.reshape(N, Cin, plan.Hp * plan.Wp128)
    xf = jnp.pad(xf, ((0, 0), (0, 0), (0, plan.Lx - plan.Hp * plan.Wp128)))

    # Weight rows in schedule order: (dw-group, kh, kw, out-channel), Cout padded to 8.
    wpad = jnp.pad(weight, ((0, 0), (0, Cout_p - Cout), (0, 0), (0, 0)))
    w_blocks = [wpad[:, :, kh, kw].T for (kh, kw) in plan.tap_order]      # (Cout_p, Cin) each
    w_all = jnp.concatenate(w_blocks, axis=0).astype(compute_dtype)       # (K*K*Cout_p, Cin)

    pad_c = (0, Cout_p - Cout)
    b2 = jnp.pad(bias, pad_c).reshape(Cout_p, 1).astype(jnp.float32)
    g2 = jnp.pad(gamma, pad_c).reshape(Cout_p, 1).astype(jnp.float32)
    be2 = jnp.pad(beta, pad_c).reshape(Cout_p, 1).astype(jnp.float32)

    # Validity mask: which flat accumulator positions are real output pixels (stats only).
    mask_np = np.zeros((n_ph, plan.Mh_max, plan.Wp128), np.float32)
    for rh in range(s):
        for rw in range(s):
            mask_np[rh * s + rw, :plan.Mh[rh], :plan.Mw[rw]] = 1.0
    mask = jnp.asarray(mask_np.reshape(n_ph, plan.Lacc))

    kernel = functools.partial(
        _deconv_phase_kernel, cout_p=Cout_p, n_ph=n_ph, lacc=plan.Lacc, lgemm=plan.Lgemm,
        sched=plan.sched, count=plan.Ho * plan.Wo, apply_norm=apply_norm, eps=eps)

    # VMEM estimate from actual block sizes (double-buffered ins/outs + scratch + one
    # live GEMM chunk + one re-aligned input window).
    csize = jnp.dtype(compute_dtype).itemsize
    osize = jnp.dtype(out_dtype).itemsize
    max_nkw = max(len(ph) for (_, ents) in plan.sched for (_, ph) in ents)
    est = (2 * Cin * plan.Lx * csize
           + 2 * K * K * Cout_p * Cin * csize
           + 2 * n_ph * plan.Lacc * 4
           + 2 * 3 * Cout_p * 4
           + 2 * n_ph * Cout_p * plan.Lacc * osize
           + n_ph * Cout_p * plan.Lacc * 4
           + max_nkw * Cout_p * plan.Lacc * 4
           + Cin * plan.Lgemm * csize)

    out_k = pl.pallas_call(
        kernel,
        out_shape=jax.ShapeDtypeStruct((N, n_ph, Cout_p, plan.Lacc), out_dtype),
        grid_spec=pltpu.PrefetchScalarGridSpec(
            num_scalar_prefetch=0,
            grid=(N,),
            in_specs=[
                pl.BlockSpec((1, Cin, plan.Lx), lambda n: (n, 0, 0)),
                pl.BlockSpec((K * K * Cout_p, Cin), lambda n: (0, 0)),
                pl.BlockSpec((n_ph, plan.Lacc), lambda n: (0, 0)),
                pl.BlockSpec((Cout_p, 1), lambda n: (0, 0)),
                pl.BlockSpec((Cout_p, 1), lambda n: (0, 0)),
                pl.BlockSpec((Cout_p, 1), lambda n: (0, 0)),
            ],
            out_specs=pl.BlockSpec((1, n_ph, Cout_p, plan.Lacc), lambda n: (n, 0, 0, 0)),
            scratch_shapes=[pltpu.VMEM((n_ph, Cout_p, plan.Lacc), jnp.float32)],
        ),
        compiler_params=pltpu.CompilerParams(
            dimension_semantics=("parallel",),
            vmem_limit_bytes=_vmem_limit_bytes(est)),
    )(xf, w_all, mask, b2, g2, be2)

    # Phase interleave (pixel shuffle) + crop back to NCHW — one fused XLA pass, at the
    # (possibly bf16) output dtype.
    out = out_k.reshape(N, s, s, Cout_p, plan.Mh_max, plan.Wp128)[..., :plan.Mw_max]
    out = jnp.transpose(out, (0, 3, 4, 1, 5, 2))
    out = out.reshape(N, Cout_p, plan.Mh_max * s, plan.Mw_max * s)
    return out[:, :Cout, :plan.Ho, :plan.Wo]


def _numpy_ref(x, w, b, gamma, beta, stride, padding, output_padding,
               apply_norm=True, eps=1e-5):
    """Independent scatter-formulation reference for ConvTranspose2d (+ InstanceNorm2d)."""
    N, Cin, H, W = x.shape
    _, Cout, K, _ = w.shape
    Ho = (H - 1) * stride - 2 * padding + K + output_padding
    Wo = (W - 1) * stride - 2 * padding + K + output_padding
    out = np.zeros((N, Cout, Ho, Wo), np.float64)
    for n in range(N):
        for c in range(Cin):
            for o in range(Cout):
                for i in range(H):
                    for j in range(W):
                        for kh in range(K):
                            for kw in range(K):
                                oi = i * stride + kh - padding
                                oj = j * stride + kw - padding
                                if 0 <= oi < Ho and 0 <= oj < Wo:
                                    out[n, o, oi, oj] += x[n, c, i, j] * w[c, o, kh, kw]
    out = out + b[None, :, None, None]
    if apply_norm:
        mean = out.mean(axis=(2, 3), keepdims=True)
        var = out.var(axis=(2, 3), keepdims=True)
        out = (out - mean) / np.sqrt(var + eps)
        out = out * gamma[None, :, None, None] + beta[None, :, None, None]
    return out.astype(np.float32)


if __name__ == "__main__":
    key = jax.random.PRNGKey(0)
    k1, k2, k3, k4, k5 = jax.random.split(key, 5)

    # Small shapes consistent with the module: a 2x-upsampling deconv layer.
    N, Cin, Cout, H, W = 2, 4, 4, 16, 16
    K, stride, output_padding = 3, 2, 1            # padding = K // 2 = 1

    x = jax.random.normal(k1, (N, Cin, H, W), jnp.float32)
    weight = 0.1 * jax.random.normal(k2, (Cin, Cout, K, K), jnp.float32)
    bias = 0.1 * jax.random.normal(k3, (Cout,), jnp.float32)
    gamma = 1.0 + 0.1 * jax.random.normal(k4, (Cout,), jnp.float32)
    beta = 0.1 * jax.random.normal(k5, (Cout,), jnp.float32)

    fwd_in = jax.jit(functools.partial(deconv_layer, stride=stride,
                                       output_padding=output_padding, norm='instance'))
    fwd_nn = jax.jit(functools.partial(deconv_layer, stride=stride,
                                       output_padding=output_padding, norm='None'))
    fwd_bf = jax.jit(functools.partial(deconv_layer, stride=stride,
                                       output_padding=output_padding, norm='instance',
                                       compute_dtype=jnp.bfloat16))

    # f32 path, instance norm (exactness check vs f64 scatter reference)
    out_f32 = jax.block_until_ready(fwd_in(x, weight, bias, gamma, beta))
    ref_in = _numpy_ref(np.array(x), np.array(weight), np.array(bias), np.array(gamma),
                        np.array(beta), stride, K // 2, output_padding, apply_norm=True)
    np.testing.assert_allclose(np.array(out_f32), ref_in, rtol=2e-4, atol=2e-4)

    # f32 path, norm='None' (bias-only epilogue branch)
    out_nn = jax.block_until_ready(fwd_nn(x, weight, bias, gamma, beta))
    ref_nn = _numpy_ref(np.array(x), np.array(weight), np.array(bias), np.array(gamma),
                        np.array(beta), stride, K // 2, output_padding, apply_norm=False)
    np.testing.assert_allclose(np.array(out_nn), ref_nn, rtol=2e-4, atol=2e-4)

    # bf16 MXU-operand + bf16-output path (v6e/v7x); statistics/affine stay f32.
    out_bf16 = jax.block_until_ready(fwd_bf(x, weight, bias, gamma, beta))
    np.testing.assert_allclose(np.array(out_bf16.astype(jnp.float32)), np.array(out_f32),
                               rtol=5e-2, atol=5e-2)

    print("KERNEL_OK")
</pallas_src>

<mosaic_0001>
module attributes {stable_mosaic.version = 11 : i64} {
  func.func @_deconv_phase_kernel(%arg0: i32, %arg1: memref<1x4x2304xf32, #tpu.memory_space<vmem>>, %arg2: memref<72x4xf32, #tpu.memory_space<vmem>>, %arg3: memref<4x2048xf32, #tpu.memory_space<vmem>>, %arg4: memref<8x1xf32, #tpu.memory_space<vmem>>, %arg5: memref<8x1xf32, #tpu.memory_space<vmem>>, %arg6: memref<8x1xf32, #tpu.memory_space<vmem>>, %arg7: memref<1x4x8x2048xf32, #tpu.memory_space<vmem>>, %arg8: memref<4x8x2048xf32, #tpu.memory_space<vmem>>) attributes {dimension_semantics = [#tpu.dimension_semantics<parallel>], iteration_bounds = array<i64: 2>, scalar_prefetch = 0 : i64, scratch_operands = 1 : i64, tpu.core_type = #tpu.core_type<tc>, window_params = [{transform_indices = @transform_0, window_bounds = array<i64: 1, 4, 2304>}, {pipeline_mode = #tpu.pipeline_mode<synchronous>, transform_indices = @transform_1, window_bounds = array<i64: 72, 4>}, {pipeline_mode = #tpu.pipeline_mode<synchronous>, transform_indices = @transform_2, window_bounds = array<i64: 4, 2048>}, {pipeline_mode = #tpu.pipeline_mode<synchronous>, transform_indices = @transform_3, window_bounds = array<i64: 8, 1>}, {pipeline_mode = #tpu.pipeline_mode<synchronous>, transform_indices = @transform_4, window_bounds = array<i64: 8, 1>}, {pipeline_mode = #tpu.pipeline_mode<synchronous>, transform_indices = @transform_5, window_bounds = array<i64: 8, 1>}, {transform_indices = @transform_6, window_bounds = array<i64: 1, 4, 8, 2048>}]} {
    %c0 = arith.constant 0 : index
    %c0_0 = arith.constant 0 : index
    %0 = vector.load %arg2[%c0, %c0_0] : memref<72x4xf32, #tpu.memory_space<vmem>>, vector<72x4xf32>
    %c0_1 = arith.constant 0 : index
    %c0_2 = arith.constant 0 : index
    %c0_3 = arith.constant 0 : index
    %1 = vector.load %arg1[%c0_1, %c0_2, %c0_3] : memref<1x4x2304xf32, #tpu.memory_space<vmem>>, vector<1x4x2176xf32>
    %2 = vector.shape_cast %1 : vector<1x4x2176xf32> to vector<4x2176xf32>
    %3 = vector.extract_strided_slice %0 {offsets = [0, 0], sizes = [16, 4], strides = [1, 1]} : vector<72x4xf32> to vector<16x4xf32>
    %4 = vector.extract_strided_slice %2 {offsets = [0, 128], sizes = [4, 2048], strides = [1, 1]} : vector<4x2176xf32> to vector<4x2048xf32>
    %cst = arith.constant dense<0.000000e+00> : vector<16x2048xf32>
    %5 = tpu.matmul %3, %4, %cst {dimension_numbers = #tpu.dot_dimension_numbers<[1], [0], [0], [1], [0, 0, 1, 1], [], []>} : vector<16x4xf32>, vector<4x2048xf32>, vector<16x2048xf32> -> vector<16x2048xf32>
    %6 = vector.extract_strided_slice %5 {offsets = [0, 0], sizes = [8, 2048], strides = [1, 1]} : vector<16x2048xf32> to vector<8x2048xf32>
    %c2 = arith.constant 2 : index
    %c0_4 = arith.constant 0 : index
    %c0_5 = arith.constant 0 : index
    %7 = vector.load %arg8[%c2, %c0_4, %c0_5] : memref<4x8x2048xf32, #tpu.memory_space<vmem>>, vector<1x8x2048xf32>
    %8 = vector.shape_cast %7 : vector<1x8x2048xf32> to vector<8x2048xf32>
    %9 = vector.shape_cast %6 : vector<8x2048xf32> to vector<1x8x2048xf32>
    tpu.vector_store %arg8[%c2, %c0_4, %c0_5], %9 {strides = array<i32>} : memref<4x8x2048xf32, #tpu.memory_space<vmem>>, vector<1x8x2048xf32>,
    %10 = vector.extract_strided_slice %5 {offsets = [8, 0], sizes = [8, 2048], strides = [1, 1]} : vector<16x2048xf32> to vector<8x2048xf32>
    %c3 = arith.constant 3 : index
    %c0_6 = arith.constant 0 : index
    %c0_7 = arith.constant 0 : index
    %11 = vector.load %arg8[%c3, %c0_6, %c0_7] : memref<4x8x2048xf32, #tpu.memory_space<vmem>>, vector<1x8x2048xf32>
    %12 = vector.shape_cast %11 : vector<1x8x2048xf32> to vector<8x2048xf32>
    %13 = vector.shape_cast %10 : vector<8x2048xf32> to vector<1x8x2048xf32>
    tpu.vector_store %arg8[%c3, %c0_6, %c0_7], %13 {strides = array<i32>} : memref<4x8x2048xf32, #tpu.memory_space<vmem>>, vector<1x8x2048xf32>,
    %14 = vector.extract_strided_slice %0 {offsets = [16, 0], sizes = [16, 4], strides = [1, 1]} : vector<72x4xf32> to vector<16x4xf32>
    %15 = vector.extract_strided_slice %2 {offsets = [0, 0], sizes = [4, 2048], strides = [1, 1]} : vector<4x2176xf32> to vector<4x2048xf32>
    %cst_8 = arith.constant dense<0.000000e+00> : vector<16x2048xf32>
    %16 = tpu.matmul %14, %15, %cst_8 {dimension_numbers = #tpu.dot_dimension_numbers<[1], [0], [0], [1], [0, 0, 1, 1], [], []>} : vector<16x4xf32>, vector<4x2048xf32>, vector<16x2048xf32> -> vector<16x2048xf32>
    %17 = vector.extract_strided_slice %16 {offsets = [0, 0], sizes = [8, 2048], strides = [1, 1]} : vector<16x2048xf32> to vector<8x2048xf32>
    %c0_9 = arith.constant 0 : index
    %c0_10 = arith.constant 0 : index
    %c0_11 = arith.constant 0 : index
    %18 = vector.load %arg8[%c0_9, %c0_10, %c0_11] : memref<4x8x2048xf32, #tpu.memory_space<vmem>>, vector<1x8x2048xf32>
    %19 = vector.shape_cast %18 : vector<1x8x2048xf32> to vector<8x2048xf32>
    %20 = vector.shape_cast %17 : vector<8x2048xf32> to vector<1x8x2048xf32>
    tpu.vector_store %arg8[%c0_9, %c0_10, %c0_11], %20 {strides = array<i32>} : memref<4x8x2048xf32, #tpu.memory_space<vmem>>, vector<1x8x2048xf32>,
    %21 = vector.extract_strided_slice %16 {offsets = [8, 0], sizes = [8, 2048], strides = [1, 1]} : vector<16x2048xf32> to vector<8x2048xf32>
    %c1 = arith.constant 1 : index
    %c0_12 = arith.constant 0 : index
    %c0_13 = arith.constant 0 : index
    %22 = vector.load %arg8[%c1, %c0_12, %c0_13] : memref<4x8x2048xf32, #tpu.memory_space<vmem>>, vector<1x8x2048xf32>
    %23 = vector.shape_cast %22 : vector<1x8x2048xf32> to vector<8x2048xf32>
    %24 = vector.shape_cast %21 : vector<8x2048xf32> to vector<1x8x2048xf32>
    tpu.vector_store %arg8[%c1, %c0_12, %c0_13], %24 {strides = array<i32>} : memref<4x8x2048xf32, #tpu.memory_space<vmem>>, vector<1x8x2048xf32>,
    %25 = vector.extract_strided_slice %0 {offsets = [32, 0], sizes = [16, 4], strides = [1, 1]} : vector<72x4xf32> to vector<16x4xf32>
    %26 = vector.extract_strided_slice %2 {offsets = [0, 0], sizes = [4, 2048], strides = [1, 1]} : vector<4x2176xf32> to vector<4x2048xf32>
    %cst_14 = arith.constant dense<0.000000e+00> : vector<16x2048xf32>
    %27 = tpu.matmul %25, %26, %cst_14 {dimension_numbers = #tpu.dot_dimension_numbers<[1], [0], [0], [1], [0, 0, 1, 1], [], []>} : vector<16x4xf32>, vector<4x2048xf32>, vector<16x2048xf32> -> vector<16x2048xf32>
    %28 = vector.extract_strided_slice %27 {offsets = [0, 0], sizes = [8, 2048], strides = [1, 1]} : vector<16x2048xf32> to vector<8x2048xf32>
    %c2_15 = arith.constant 2 : index
    %c0_16 = arith.constant 0 : index
    %c0_17 = arith.constant 0 : index
    %29 = vector.load %arg8[%c2_15, %c0_16, %c0_17] : memref<4x8x2048xf32, #tpu.memory_space<vmem>>, vector<1x8x2048xf32>
    %30 = vector.shape_cast %29 : vector<1x8x2048xf32> to vector<8x2048xf32>
    %31 = arith.addf %30, %28 : vector<8x2048xf32>
    %c2_18 = arith.constant 2 : index
    %c0_19 = arith.constant 0 : index
    %c0_20 = arith.constant 0 : index
    %32 = vector.load %arg8[%c2_18, %c0_19, %c0_20] : memref<4x8x2048xf32, #tpu.memory_space<vmem>>, vector<1x8x2048xf32>
    %33 = vector.shape_cast %32 : vector<1x8x2048xf32> to vector<8x2048xf32>
    %34 = vector.shape_cast %31 : vector<8x2048xf32> to vector<1x8x2048xf32>
    tpu.vector_store %arg8[%c2_18, %c0_19, %c0_20], %34 {strides = array<i32>} : memref<4x8x2048xf32, #tpu.memory_space<vmem>>, vector<1x8x2048xf32>,
    %35 = vector.extract_strided_slice %27 {offsets = [8, 0], sizes = [8, 2048], strides = [1, 1]} : vector<16x2048xf32> to vector<8x2048xf32>
    %c3_21 = arith.constant 3 : index
    %c0_22 = arith.constant 0 : index
    %c0_23 = arith.constant 0 : index
    %36 = vector.load %arg8[%c3_21, %c0_22, %c0_23] : memref<4x8x2048xf32, #tpu.memory_space<vmem>>, vector<1x8x2048xf32>
    %37 = vector.shape_cast %36 : vector<1x8x2048xf32> to vector<8x2048xf32>
    %38 = arith.addf %37, %35 : vector<8x2048xf32>
    %c3_24 = arith.constant 3 : index
    %c0_25 = arith.constant 0 : index
    %c0_26 = arith.constant 0 : index
    %39 = vector.load %arg8[%c3_24, %c0_25, %c0_26] : memref<4x8x2048xf32, #tpu.memory_space<vmem>>, vector<1x8x2048xf32>
    %40 = vector.shape_cast %39 : vector<1x8x2048xf32> to vector<8x2048xf32>
    %41 = vector.shape_cast %38 : vector<8x2048xf32> to vector<1x8x2048xf32>
    tpu.vector_store %arg8[%c3_24, %c0_25, %c0_26], %41 {strides = array<i32>} : memref<4x8x2048xf32, #tpu.memory_space<vmem>>, vector<1x8x2048xf32>,
    %c0_27 = arith.constant 0 : index
    %c0_28 = arith.constant 0 : index
    %c1_29 = arith.constant 1 : index
    %42 = vector.load %arg1[%c0_27, %c0_28, %c1_29] : memref<1x4x2304xf32, #tpu.memory_space<vmem>>, vector<1x4x2176xf32>
    %43 = vector.shape_cast %42 : vector<1x4x2176xf32> to vector<4x2176xf32>
    %44 = vector.extract_strided_slice %0 {offsets = [48, 0], sizes = [8, 4], strides = [1, 1]} : vector<72x4xf32> to vector<8x4xf32>
    %45 = vector.extract_strided_slice %43 {offsets = [0, 128], sizes = [4, 2048], strides = [1, 1]} : vector<4x2176xf32> to vector<4x2048xf32>
    %cst_30 = arith.constant dense<0.000000e+00> : vector<8x2048xf32>
    %46 = tpu.matmul %44, %45, %cst_30 {dimension_numbers = #tpu.dot_dimension_numbers<[1], [0], [0], [1], [0, 0, 1, 1], [], []>} : vector<8x4xf32>, vector<4x2048xf32>, vector<8x2048xf32> -> vector<8x2048xf32>
    %c3_31 = arith.constant 3 : index
    %c0_32 = arith.constant 0 : index
    %c0_33 = arith.constant 0 : index
    %47 = vector.load %arg8[%c3_31, %c0_32, %c0_33] : memref<4x8x2048xf32, #tpu.memory_space<vmem>>, vector<1x8x2048xf32>
    %48 = vector.shape_cast %47 : vector<1x8x2048xf32> to vector<8x2048xf32>
    %49 = arith.addf %48, %46 : vector<8x2048xf32>
    %c3_34 = arith.constant 3 : index
    %c0_35 = arith.constant 0 : index
    %c0_36 = arith.constant 0 : index
    %50 = vector.load %arg8[%c3_34, %c0_35, %c0_36] : memref<4x8x2048xf32, #tpu.memory_space<vmem>>, vector<1x8x2048xf32>
    %51 = vector.shape_cast %50 : vector<1x8x2048xf32> to vector<8x2048xf32>
    %52 = vector.shape_cast %49 : vector<8x2048xf32> to vector<1x8x2048xf32>
    tpu.vector_store %arg8[%c3_34, %c0_35, %c0_36], %52 {strides = array<i32>} : memref<4x8x2048xf32, #tpu.memory_space<vmem>>, vector<1x8x2048xf32>,
    %53 = vector.extract_strided_slice %0 {offsets = [56, 0], sizes = [8, 4], strides = [1, 1]} : vector<72x4xf32> to vector<8x4xf32>
    %54 = vector.extract_strided_slice %43 {offsets = [0, 0], sizes = [4, 2048], strides = [1, 1]} : vector<4x2176xf32> to vector<4x2048xf32>
    %cst_37 = arith.constant dense<0.000000e+00> : vector<8x2048xf32>
    %55 = tpu.matmul %53, %54, %cst_37 {dimension_numbers = #tpu.dot_dimension_numbers<[1], [0], [0], [1], [0, 0, 1, 1], [], []>} : vector<8x4xf32>, vector<4x2048xf32>, vector<8x2048xf32> -> vector<8x2048xf32>
    %c1_38 = arith.constant 1 : index
    %c0_39 = arith.constant 0 : index
    %c0_40 = arith.constant 0 : index
    %56 = vector.load %arg8[%c1_38, %c0_39, %c0_40] : memref<4x8x2048xf32, #tpu.memory_space<vmem>>, vector<1x8x2048xf32>
    %57 = vector.shape_cast %56 : vector<1x8x2048xf32> to vector<8x2048xf32>
    %58 = arith.addf %57, %55 : vector<8x2048xf32>
    %c1_41 = arith.constant 1 : index
    %c0_42 = arith.constant 0 : index
    %c0_43 = arith.constant 0 : index
    %59 = vector.load %arg8[%c1_41, %c0_42, %c0_43] : memref<4x8x2048xf32, #tpu.memory_space<vmem>>, vector<1x8x2048xf32>
    %60 = vector.shape_cast %59 : vector<1x8x2048xf32> to vector<8x2048xf32>
    %61 = vector.shape_cast %58 : vector<8x2048xf32> to vector<1x8x2048xf32>
    tpu.vector_store %arg8[%c1_41, %c0_42, %c0_43], %61 {strides = array<i32>} : memref<4x8x2048xf32, #tpu.memory_space<vmem>>, vector<1x8x2048xf32>,
    %62 = vector.extract_strided_slice %0 {offsets = [64, 0], sizes = [8, 4], strides = [1, 1]} : vector<72x4xf32> to vector<8x4xf32>
    %63 = vector.extract_strided_slice %43 {offsets = [0, 0], sizes = [4, 2048], strides = [1, 1]} : vector<4x2176xf32> to vector<4x2048xf32>
    %cst_44 = arith.constant dense<0.000000e+00> : vector<8x2048xf32>
    %64 = tpu.matmul %62, %63, %cst_44 {dimension_numbers = #tpu.dot_dimension_numbers<[1], [0], [0], [1], [0, 0, 1, 1], [], []>} : vector<8x4xf32>, vector<4x2048xf32>, vector<8x2048xf32> -> vector<8x2048xf32>
    %c3_45 = arith.constant 3 : index
    %c0_46 = arith.constant 0 : index
    %c0_47 = arith.constant 0 : index
    %65 = vector.load %arg8[%c3_45, %c0_46, %c0_47] : memref<4x8x2048xf32, #tpu.memory_space<vmem>>, vector<1x8x2048xf32>
    %66 = vector.shape_cast %65 : vector<1x8x2048xf32> to vector<8x2048xf32>
    %67 = arith.addf %66, %64 : vector<8x2048xf32>
    %c3_48 = arith.constant 3 : index
    %c0_49 = arith.constant 0 : index
    %c0_50 = arith.constant 0 : index
    %68 = vector.load %arg8[%c3_48, %c0_49, %c0_50] : memref<4x8x2048xf32, #tpu.memory_space<vmem>>, vector<1x8x2048xf32>
    %69 = vector.shape_cast %68 : vector<1x8x2048xf32> to vector<8x2048xf32>
    %70 = vector.shape_cast %67 : vector<8x2048xf32> to vector<1x8x2048xf32>
    tpu.vector_store %arg8[%c3_48, %c0_49, %c0_50], %70 {strides = array<i32>} : memref<4x8x2048xf32, #tpu.memory_space<vmem>>, vector<1x8x2048xf32>,
    %c0_51 = arith.constant 0 : index
    %c0_52 = arith.constant 0 : index
    %71 = vector.load %arg3[%c0_51, %c0_52] : memref<4x2048xf32, #tpu.memory_space<vmem>>, vector<4x2048xf32>
    %cst_53 = arith.constant 0.000000e+00 : f32
    %72 = vector.broadcast %cst_53 : f32 to vector<8x1xf32>
    %cst_54 = arith.constant 0.000000e+00 : f32
    %73 = vector.broadcast %cst_54 : f32 to vector<8x1xf32>
    %c0_55 = arith.constant 0 : index
    %c0_56 = arith.constant 0 : index
    %c0_57 = arith.constant 0 : index
    %74 = vector.load %arg8[%c0_55, %c0_56, %c0_57] : memref<4x8x2048xf32, #tpu.memory_space<vmem>>, vector<1x8x2048xf32>
    %75 = vector.shape_cast %74 : vector<1x8x2048xf32> to vector<8x2048xf32>
    %76 = vector.extract_strided_slice %71 {offsets = [0, 0], sizes = [1, 2048], strides = [1, 1]} : vector<4x2048xf32> to vector<1x2048xf32>
    %77 = vector.broadcast %76 : vector<1x2048xf32> to vector<8x2048xf32>
    %78 = arith.mulf %75, %77 : vector<8x2048xf32>
    %cst_58 = arith.constant dense<0.000000e+00> : vector<8xf32>
    %79 = vector.multi_reduction <add>, %78, %cst_58 [1] : vector<8x2048xf32> to vector<8xf32>
    %80 = vector.shape_cast %79 : vector<8xf32> to vector<8x1xf32>
    %81 = arith.addf %72, %80 : vector<8x1xf32>
    %82 = arith.mulf %78, %75 : vector<8x2048xf32>
    %cst_59 = arith.constant dense<0.000000e+00> : vector<8xf32>
    %83 = vector.multi_reduction <add>, %82, %cst_59 [1] : vector<8x2048xf32> to vector<8xf32>
    %84 = vector.shape_cast %83 : vector<8xf32> to vector<8x1xf32>
    %85 = arith.addf %73, %84 : vector<8x1xf32>
    %c1_60 = arith.constant 1 : index
    %c0_61 = arith.constant 0 : index
    %c0_62 = arith.constant 0 : index
    %86 = vector.load %arg8[%c1_60, %c0_61, %c0_62] : memref<4x8x2048xf32, #tpu.memory_space<vmem>>, vector<1x8x2048xf32>
    %87 = vector.shape_cast %86 : vector<1x8x2048xf32> to vector<8x2048xf32>
    %88 = vector.extract_strided_slice %71 {offsets = [1, 0], sizes = [1, 2048], strides = [1, 1]} : vector<4x2048xf32> to vector<1x2048xf32>
    %89 = vector.broadcast %88 : vector<1x2048xf32> to vector<8x2048xf32>
    %90 = arith.mulf %87, %89 : vector<8x2048xf32>
    %cst_63 = arith.constant dense<0.000000e+00> : vector<8xf32>
    %91 = vector.multi_reduction <add>, %90, %cst_63 [1] : vector<8x2048xf32> to vector<8xf32>
    %92 = vector.shape_cast %91 : vector<8xf32> to vector<8x1xf32>
    %93 = arith.addf %81, %92 : vector<8x1xf32>
    %94 = arith.mulf %90, %87 : vector<8x2048xf32>
    %cst_64 = arith.constant dense<0.000000e+00> : vector<8xf32>
    %95 = vector.multi_reduction <add>, %94, %cst_64 [1] : vector<8x2048xf32> to vector<8xf32>
    %96 = vector.shape_cast %95 : vector<8xf32> to vector<8x1xf32>
    %97 = arith.addf %85, %96 : vector<8x1xf32>
    %c2_65 = arith.constant 2 : index
    %c0_66 = arith.constant 0 : index
    %c0_67 = arith.constant 0 : index
    %98 = vector.load %arg8[%c2_65, %c0_66, %c0_67] : memref<4x8x2048xf32, #tpu.memory_space<vmem>>, vector<1x8x2048xf32>
    %99 = vector.shape_cast %98 : vector<1x8x2048xf32> to vector<8x2048xf32>
    %100 = vector.extract_strided_slice %71 {offsets = [2, 0], sizes = [1, 2048], strides = [1, 1]} : vector<4x2048xf32> to vector<1x2048xf32>
    %101 = vector.broadcast %100 : vector<1x2048xf32> to vector<8x2048xf32>
    %102 = arith.mulf %99, %101 : vector<8x2048xf32>
    %cst_68 = arith.constant dense<0.000000e+00> : vector<8xf32>
    %103 = vector.multi_reduction <add>, %102, %cst_68 [1] : vector<8x2048xf32> to vector<8xf32>
    %104 = vector.shape_cast %103 : vector<8xf32> to vector<8x1xf32>
    %105 = arith.addf %93, %104 : vector<8x1xf32>
    %106 = arith.mulf %102, %99 : vector<8x2048xf32>
    %cst_69 = arith.constant dense<0.000000e+00> : vector<8xf32>
    %107 = vector.multi_reduction <add>, %106, %cst_69 [1] : vector<8x2048xf32> to vector<8xf32>
    %108 = vector.shape_cast %107 : vector<8xf32> to vector<8x1xf32>
    %109 = arith.addf %97, %108 : vector<8x1xf32>
    %c3_70 = arith.constant 3 : index
    %c0_71 = arith.constant 0 : index
    %c0_72 = arith.constant 0 : index
    %110 = vector.load %arg8[%c3_70, %c0_71, %c0_72] : memref<4x8x2048xf32, #tpu.memory_space<vmem>>, vector<1x8x2048xf32>
    %111 = vector.shape_cast %110 : vector<1x8x2048xf32> to vector<8x2048xf32>
    %112 = vector.extract_strided_slice %71 {offsets = [3, 0], sizes = [1, 2048], strides = [1, 1]} : vector<4x2048xf32> to vector<1x2048xf32>
    %113 = vector.broadcast %112 : vector<1x2048xf32> to vector<8x2048xf32>
    %114 = arith.mulf %111, %113 : vector<8x2048xf32>
    %cst_73 = arith.constant dense<0.000000e+00> : vector<8xf32>
    %115 = vector.multi_reduction <add>, %114, %cst_73 [1] : vector<8x2048xf32> to vector<8xf32>
    %116 = vector.shape_cast %115 : vector<8xf32> to vector<8x1xf32>
    %117 = arith.addf %105, %116 : vector<8x1xf32>
    %118 = arith.mulf %114, %111 : vector<8x2048xf32>
    %cst_74 = arith.constant dense<0.000000e+00> : vector<8xf32>
    %119 = vector.multi_reduction <add>, %118, %cst_74 [1] : vector<8x2048xf32> to vector<8xf32>
    %120 = vector.shape_cast %119 : vector<8xf32> to vector<8x1xf32>
    %121 = arith.addf %109, %120 : vector<8x1xf32>
    %cst_75 = arith.constant 9.765625E-4 : f32
    %122 = vector.broadcast %cst_75 : f32 to vector<8x1xf32>
    %123 = arith.mulf %117, %122 : vector<8x1xf32>
    %cst_76 = arith.constant 9.765625E-4 : f32
    %124 = vector.broadcast %cst_76 : f32 to vector<8x1xf32>
    %125 = arith.mulf %121, %124 : vector<8x1xf32>
    %126 = arith.mulf %123, %123 : vector<8x1xf32>
    %127 = arith.subf %125, %126 : vector<8x1xf32>
    %cst_77 = arith.constant 0.000000e+00 : f32
    %128 = vector.broadcast %cst_77 : f32 to vector<8x1xf32>
    %129 = arith.maximumf %127, %128 : vector<8x1xf32>
    %cst_78 = arith.constant 9.99999974E-6 : f32
    %130 = vector.broadcast %cst_78 : f32 to vector<8x1xf32>
    %131 = arith.addf %129, %130 : vector<8x1xf32>
    %132 = math.rsqrt %131 : vector<8x1xf32>
    %c0_79 = arith.constant 0 : index
    %c0_80 = arith.constant 0 : index
    %133 = vector.load %arg5[%c0_79, %c0_80] : memref<8x1xf32, #tpu.memory_space<vmem>>, vector<8x1xf32>
    %134 = arith.mulf %133, %132 : vector<8x1xf32>
    %c0_81 = arith.constant 0 : index
    %c0_82 = arith.constant 0 : index
    %135 = vector.load %arg6[%c0_81, %c0_82] : memref<8x1xf32, #tpu.memory_space<vmem>>, vector<8x1xf32>
    %136 = arith.mulf %123, %134 : vector<8x1xf32>
    %137 = arith.subf %135, %136 : vector<8x1xf32>
    %c0_83 = arith.constant 0 : index
    %c0_84 = arith.constant 0 : index
    %c0_85 = arith.constant 0 : index
    %138 = vector.load %arg8[%c0_83, %c0_84, %c0_85] : memref<4x8x2048xf32, #tpu.memory_space<vmem>>, vector<1x8x2048xf32>
    %139 = vector.shape_cast %138 : vector<1x8x2048xf32> to vector<8x2048xf32>
    %140 = vector.broadcast %134 : vector<8x1xf32> to vector<8x2048xf32>
    %141 = arith.mulf %139, %140 : vector<8x2048xf32>
    %142 = vector.broadcast %137 : vector<8x1xf32> to vector<8x2048xf32>
    %143 = arith.addf %141, %142 : vector<8x2048xf32>
    %c0_86 = arith.constant 0 : index
    %c0_87 = arith.constant 0 : index
    %c0_88 = arith.constant 0 : index
    %c0_89 = arith.constant 0 : index
    %144 = vector.load %arg7[%c0_86, %c0_87, %c0_88, %c0_89] : memref<1x4x8x2048xf32, #tpu.memory_space<vmem>>, vector<1x1x8x2048xf32>
    %145 = vector.shape_cast %144 : vector<1x1x8x2048xf32> to vector<8x2048xf32>
    %146 = vector.shape_cast %143 : vector<8x2048xf32> to vector<1x1x8x2048xf32>
    tpu.vector_store %arg7[%c0_86, %c0_87, %c0_88, %c0_89], %146 {strides = array<i32>} : memref<1x4x8x2048xf32, #tpu.memory_space<vmem>>, vector<1x1x8x2048xf32>,
    %c1_90 = arith.constant 1 : index
    %c0_91 = arith.constant 0 : index
    %c0_92 = arith.constant 0 : index
    %147 = vector.load %arg8[%c1_90, %c0_91, %c0_92] : memref<4x8x2048xf32, #tpu.memory_space<vmem>>, vector<1x8x2048xf32>
    %148 = vector.shape_cast %147 : vector<1x8x2048xf32> to vector<8x2048xf32>
    %149 = vector.broadcast %134 : vector<8x1xf32> to vector<8x2048xf32>
    %150 = arith.mulf %148, %149 : vector<8x2048xf32>
    %151 = vector.broadcast %137 : vector<8x1xf32> to vector<8x2048xf32>
    %152 = arith.addf %150, %151 : vector<8x2048xf32>
    %c0_93 = arith.constant 0 : index
    %c1_94 = arith.constant 1 : index
    %c0_95 = arith.constant 0 : index
    %c0_96 = arith.constant 0 : index
    %153 = vector.load %arg7[%c0_93, %c1_94, %c0_95, %c0_96] : memref<1x4x8x2048xf32, #tpu.memory_space<vmem>>, vector<1x1x8x2048xf32>
    %154 = vector.shape_cast %153 : vector<1x1x8x2048xf32> to vector<8x2048xf32>
    %155 = vector.shape_cast %152 : vector<8x2048xf32> to vector<1x1x8x2048xf32>
    tpu.vector_store %arg7[%c0_93, %c1_94, %c0_95, %c0_96], %155 {strides = array<i32>} : memref<1x4x8x2048xf32, #tpu.memory_space<vmem>>, vector<1x1x8x2048xf32>,
    %c2_97 = arith.constant 2 : index
    %c0_98 = arith.constant 0 : index
    %c0_99 = arith.constant 0 : index
    %156 = vector.load %arg8[%c2_97, %c0_98, %c0_99] : memref<4x8x2048xf32, #tpu.memory_space<vmem>>, vector<1x8x2048xf32>
    %157 = vector.shape_cast %156 : vector<1x8x2048xf32> to vector<8x2048xf32>
    %158 = vector.broadcast %134 : vector<8x1xf32> to vector<8x2048xf32>
    %159 = arith.mulf %157, %158 : vector<8x2048xf32>
    %160 = vector.broadcast %137 : vector<8x1xf32> to vector<8x2048xf32>
    %161 = arith.addf %159, %160 : vector<8x2048xf32>
    %c0_100 = arith.constant 0 : index
    %c2_101 = arith.constant 2 : index
    %c0_102 = arith.constant 0 : index
    %c0_103 = arith.constant 0 : index
    %162 = vector.load %arg7[%c0_100, %c2_101, %c0_102, %c0_103] : memref<1x4x8x2048xf32, #tpu.memory_space<vmem>>, vector<1x1x8x2048xf32>
    %163 = vector.shape_cast %162 : vector<1x1x8x2048xf32> to vector<8x2048xf32>
    %164 = vector.shape_cast %161 : vector<8x2048xf32> to vector<1x1x8x2048xf32>
    tpu.vector_store %arg7[%c0_100, %c2_101, %c0_102, %c0_103], %164 {strides = array<i32>} : memref<1x4x8x2048xf32, #tpu.memory_space<vmem>>, vector<1x1x8x2048xf32>,
    %c3_104 = arith.constant 3 : index
    %c0_105 = arith.constant 0 : index
    %c0_106 = arith.constant 0 : index
    %165 = vector.load %arg8[%c3_104, %c0_105, %c0_106] : memref<4x8x2048xf32, #tpu.memory_space<vmem>>, vector<1x8x2048xf32>
    %166 = vector.shape_cast %165 : vector<1x8x2048xf32> to vector<8x2048xf32>
    %167 = vector.broadcast %134 : vector<8x1xf32> to vector<8x2048xf32>
    %168 = arith.mulf %166, %167 : vector<8x2048xf32>
    %169 = vector.broadcast %137 : vector<8x1xf32> to vector<8x2048xf32>
    %170 = arith.addf %168, %169 : vector<8x2048xf32>
    %c0_107 = arith.constant 0 : index
    %c3_108 = arith.constant 3 : index
    %c0_109 = arith.constant 0 : index
    %c0_110 = arith.constant 0 : index
    %171 = vector.load %arg7[%c0_107, %c3_108, %c0_109, %c0_110] : memref<1x4x8x2048xf32, #tpu.memory_space<vmem>>, vector<1x1x8x2048xf32>
    %172 = vector.shape_cast %171 : vector<1x1x8x2048xf32> to vector<8x2048xf32>
    %173 = vector.shape_cast %170 : vector<8x2048xf32> to vector<1x1x8x2048xf32>
    tpu.vector_store %arg7[%c0_107, %c3_108, %c0_109, %c0_110], %173 {strides = array<i32>} : memref<1x4x8x2048xf32, #tpu.memory_space<vmem>>, vector<1x1x8x2048xf32>,
    return
  }
  func.func @transform_0(%arg0: i32) -> (i32, i32, i32) {
    %c0_i32 = arith.constant 0 : i32
    %c0_i32_0 = arith.constant 0 : i32
    %c0_i32_1 = arith.constant 0 : i32
    return %arg0, %c0_i32, %c0_i32_0 : i32, i32, i32
  }
  func.func @transform_1(%arg0: i32) -> (i32, i32) {
    %c0_i32 = arith.constant 0 : i32
    %c0_i32_0 = arith.constant 0 : i32
    %c0_i32_1 = arith.constant 0 : i32
    return %c0_i32, %c0_i32_0 : i32, i32
  }
  func.func @transform_2(%arg0: i32) -> (i32, i32) {
    %c0_i32 = arith.constant 0 : i32
    %c0_i32_0 = arith.constant 0 : i32
    %c0_i32_1 = arith.constant 0 : i32
    return %c0_i32, %c0_i32_0 : i32, i32
  }
  func.func @transform_3(%arg0: i32) -> (i32, i32) {
    %c0_i32 = arith.constant 0 : i32
    %c0_i32_0 = arith.constant 0 : i32
    %c0_i32_1 = arith.constant 0 : i32
    return %c0_i32, %c0_i32_0 : i32, i32
  }
  func.func @transform_4(%arg0: i32) -> (i32, i32) {
    %c0_i32 = arith.constant 0 : i32
    %c0_i32_0 = arith.constant 0 : i32
    %c0_i32_1 = arith.constant 0 : i32
    return %c0_i32, %c0_i32_0 : i32, i32
  }
  func.func @transform_5(%arg0: i32) -> (i32, i32) {
    %c0_i32 = arith.constant 0 : i32
    %c0_i32_0 = arith.constant 0 : i32
    %c0_i32_1 = arith.constant 0 : i32
    return %c0_i32, %c0_i32_0 : i32, i32
  }
  func.func @transform_6(%arg0: i32) -> (i32, i32, i32, i32) {
    %c0_i32 = arith.constant 0 : i32
    %c0_i32_0 = arith.constant 0 : i32
    %c0_i32_1 = arith.constant 0 : i32
    %c0_i32_2 = arith.constant 0 : i32
    return %arg0, %c0_i32, %c0_i32_0, %c0_i32_1 : i32, i32, i32, i32
  }
}

</mosaic_0001>

<llo_original>
// kernel: deconv_layer.1
$region0: #{deconv_layer.1}
  #allocation0 [shape = 'u32[]', space=smem, size = 0x4, offset = 0x4, fixed_abs, tag = 'smem constant byte address 0x4 - core index']
  #allocation1 [shape = 'u32[144,128]{1,0:T(1,128)}', space=vmem, size = 0x12000, scoped, tag = 'internal scratch']
  #allocation2 [shape = 'f32[4,8,2048]{2,1,0:T(8,128)}', space=vmem, size = 0x40000, scoped, tag = 'scratch operand']
  %s0 = inlined_call_operand.vmem [shape: f32[2,4,2304], index: 0, kind: input, shape index: {}]
  %s1 = inlined_call_operand.vmem [shape: f32[72,4], index: 1, kind: input, shape index: {}]
  %s2 = inlined_call_operand.vmem [shape: f32[4,2048], index: 2, kind: input, shape index: {}]
  %s3 = inlined_call_operand.vmem [shape: f32[8,1], index: 3, kind: input, shape index: {}]
  %s4 = inlined_call_operand.vmem [shape: f32[8,1], index: 4, kind: input, shape index: {}]
  %s5 = inlined_call_operand.vmem [shape: f32[8,1], index: 5, kind: input, shape index: {}]
  %s6 = inlined_call_operand.vmem [shape: f32[2,4,8,2048], index: 6, kind: output, shape index: {}]
  %s7 = sld [smem:[#allocation0]]
  $region57: #{deconv_layer.1} parent=0
    _
  %s9 = ssub.s32 1, %s7
  %s10 = scalar_select 0, %s9, %s7
  loop: start=0, step=1, limit=4
  $region2: #{deconv_layer.1} parent=0 // loop_pre_header
    _
  $region3: #{deconv_layer.1} parent=0 // loop_header
    %s12 = sphi 0, %s16
    %p13 = scmp.ge.s32.totalorder %s12, 4
    %s22 = sphi 0, %s24
    %s25 = sphi 0, %s22
    %s26 = sphi 0, %s25
    %s42 = sphi 0, %s26
    %s46 = sphi 0, %s46
    %s48 = sphi 0, %s46
    %s49 = sphi 0, %s48
    %s63 = sphi 0, %s49
    %s67 = sphi 0, %s67
    %s69 = sphi 0, %s67
    %s70 = sphi 0, %s69
    %s84 = sphi 0, %s70
    %s88 = sphi 0, %s88
    %s90 = sphi 0, %s88
    %s91 = sphi 0, %s90
    %s105 = sphi 0, %s91
    %s109 = sphi 0, %s109
    %s111 = sphi 0, %s109
    %s112 = sphi 0, %s111
    %s126 = sphi 0, %s112
    %s130 = sphi 0, %s130
    %s132 = sphi 0, %s130
    %s133 = sphi 0, %s132
    %s147 = sphi 0, %s133
    %s153 = sphi 0, %s155
    %s156 = sphi 0, %s153
    %s157 = sphi 0, %s156
    %s173 = sphi 0, %s157
  $region4: #{deconv_layer.1} parent=0 // loop_header_branch
    %15 = sbr.rel (%p13) target = $region8
  $region5: #{deconv_layer.1} parent=0 // loop_body
    %s17 = ssub.s32 %s12, 1
    %s18 = ssub.s32 %s12, 2
    %s19 = sadd.s32 %s12, 1
    %s20 = ssub.s32 %s12, %s19
    %p21 = scmp.eq.s32.totalorder %s20, 0
    %s23 = sadd.s32 %s22, 1
    %s24 = scalar_select %p21, %s22, %s23
    %p27 = pneg %p21
    %p28 = scmp.eq.s32.totalorder %s12, 1
    %p29 = por %p27, %p28
    %p30 = scmp.ne.s32.totalorder %s22, %s25
    %p31 = scmp.eq.s32.totalorder %s12, 0
    %p32 = por %p30, %p31
    %p33 = scmp.ne.s32.totalorder %s22, %s25
    %p34 = scmp.eq.s32.totalorder %s17, 1
    %p35 = por %p33, %p34
    %p36 = scmp.ne.s32.totalorder %s25, %s26
    %p37 = scmp.eq.s32.totalorder %s17, 0
    %p38 = por %p36, %p37
    %p39 = scmp.ne.s32.totalorder %s25, %s26
    %p40 = scmp.eq.s32.totalorder %s18, 1
    %p41 = por %p39, %p40
    %p43 = scmp.ne.s32.totalorder %s26, %s42
    %p44 = scmp.eq.s32.totalorder %s18, 0
    %p45 = por %p43, %p44
    %s47 = sadd.s32 %s46, 1
    %p50 = scmp.eq.s32.totalorder %s12, 1
    %p51 = scmp.ne.s32.totalorder %s46, %s48
    %p52 = scmp.eq.s32.totalorder %s12, 0
    %p53 = por %p51, %p52
    %p54 = scmp.ne.s32.totalorder %s46, %s48
    %p55 = scmp.eq.s32.totalorder %s17, 1
    %p56 = por %p54, %p55
    %p57 = scmp.ne.s32.totalorder %s48, %s49
    %p58 = scmp.eq.s32.totalorder %s17, 0
    %p59 = por %p57, %p58
    %p60 = scmp.ne.s32.totalorder %s48, %s49
    %p61 = scmp.eq.s32.totalorder %s18, 1
    %p62 = por %p60, %p61
    %p64 = scmp.ne.s32.totalorder %s49, %s63
    %p65 = scmp.eq.s32.totalorder %s18, 0
    %p66 = por %p64, %p65
    %s68 = sadd.s32 %s67, 1
    %p71 = scmp.eq.s32.totalorder %s12, 1
    %p72 = scmp.ne.s32.totalorder %s67, %s69
    %p73 = scmp.eq.s32.totalorder %s12, 0
    %p74 = por %p72, %p73
    %p75 = scmp.ne.s32.totalorder %s67, %s69
    %p76 = scmp.eq.s32.totalorder %s17, 1
    %p77 = por %p75, %p76
    %p78 = scmp.ne.s32.totalorder %s69, %s70
    %p79 = scmp.eq.s32.totalorder %s17, 0
    %p80 = por %p78, %p79
    %p81 = scmp.ne.s32.totalorder %s69, %s70
    %p82 = scmp.eq.s32.totalorder %s18, 1
    %p83 = por %p81, %p82
    %p85 = scmp.ne.s32.totalorder %s70, %s84
    %p86 = scmp.eq.s32.totalorder %s18, 0
    %p87 = por %p85, %p86
    %s89 = sadd.s32 %s88, 1
    %p92 = scmp.eq.s32.totalorder %s12, 1
    %p93 = scmp.ne.s32.totalorder %s88, %s90
    %p94 = scmp.eq.s32.totalorder %s12, 0
    %p95 = por %p93, %p94
    %p96 = scmp.ne.s32.totalorder %s88, %s90
    %p97 = scmp.eq.s32.totalorder %s17, 1
    %p98 = por %p96, %p97
    %p99 = scmp.ne.s32.totalorder %s90, %s91
    %p100 = scmp.eq.s32.totalorder %s17, 0
    %p101 = por %p99, %p100
    %p102 = scmp.ne.s32.totalorder %s90, %s91
    %p103 = scmp.eq.s32.totalorder %s18, 1
    %p104 = por %p102, %p103
    %p106 = scmp.ne.s32.totalorder %s91, %s105
    %p107 = scmp.eq.s32.totalorder %s18, 0
    %p108 = por %p106, %p107
    %s110 = sadd.s32 %s109, 1
    %p113 = scmp.eq.s32.totalorder %s12, 1
    %p114 = scmp.ne.s32.totalorder %s109, %s111
    %p115 = scmp.eq.s32.totalorder %s12, 0
    %p116 = por %p114, %p115
    %p117 = scmp.ne.s32.totalorder %s109, %s111
    %p118 = scmp.eq.s32.totalorder %s17, 1
    %p119 = por %p117, %p118
    %p120 = scmp.ne.s32.totalorder %s111, %s112
    %p121 = scmp.eq.s32.totalorder %s17, 0
    %p122 = por %p120, %p121
    %p123 = scmp.ne.s32.totalorder %s111, %s112
    %p124 = scmp.eq.s32.totalorder %s18, 1
    %p125 = por %p123, %p124
    %p127 = scmp.ne.s32.totalorder %s112, %s126
    %p128 = scmp.eq.s32.totalorder %s18, 0
    %p129 = por %p127, %p128
    %s131 = sadd.s32 %s130, 1
    %p134 = scmp.eq.s32.totalorder %s12, 1
    %p135 = scmp.ne.s32.totalorder %s130, %s132
    %p136 = scmp.eq.s32.totalorder %s12, 0
    %p137 = por %p135, %p136
    %p138 = scmp.ne.s32.totalorder %s130, %s132
    %p139 = scmp.eq.s32.totalorder %s17, 1
    %p140 = por %p138, %p139
    %p141 = scmp.ne.s32.totalorder %s132, %s133
    %p142 = scmp.eq.s32.totalorder %s17, 0
    %p143 = por %p141, %p142
    %p144 = scmp.ne.s32.totalorder %s132, %s133
    %p145 = scmp.eq.s32.totalorder %s18, 1
    %p146 = por %p144, %p145
    %p148 = scmp.ne.s32.totalorder %s133, %s147
    %p149 = scmp.eq.s32.totalorder %s18, 0
    %p150 = por %p148, %p149
    %s151 = ssub.s32 %s12, %s19
    %p152 = scmp.eq.s32.totalorder %s151, 0
    %s154 = sadd.s32 %s153, 1
    %s155 = scalar_select %p152, %s153, %s154
    %p158 = pneg %p152
    %p159 = scmp.eq.s32.totalorder %s12, 1
    %p160 = por %p158, %p159
    %p161 = scmp.ne.s32.totalorder %s153, %s156
    %p162 = scmp.eq.s32.totalorder %s12, 0
    %p163 = por %p161, %p162
    %p164 = scmp.ne.s32.totalorder %s153, %s156
    %p165 = scmp.eq.s32.totalorder %s17, 1
    %p166 = por %p164, %p165
    %p167 = scmp.ne.s32.totalorder %s156, %s157
    %p168 = scmp.eq.s32.totalorder %s17, 0
    %p169 = por %p167, %p168
    %p170 = scmp.ne.s32.totalorder %s156, %s157
    %p171 = scmp.eq.s32.totalorder %s18, 1
    %p172 = por %p170, %p171
    %p174 = scmp.ne.s32.totalorder %s157, %s173
    %p175 = scmp.eq.s32.totalorder %s18, 0
    %p176 = por %p174, %p175
    %p177 = scmp.le.s32.totalorder 1, %s12
    %p178 = scmp.lt.s32.totalorder %s12, 3
    %p179 = pnand %p177, %p178
    %p180 = pneg %p179
    // Predicated region
    $region9: #{deconv_layer.1} parent=5 // pred_check
      _
    $region10: #{deconv_layer.1} parent=5 // pred_check_branch
      %182 = sbr.rel (%p179) target = $region12
    $region11: #{deconv_layer.1} parent=5 // pred_region
      %s183 = ssub.s32 %s12, 1
      // Predicated region
      $region13: #{deconv_layer.1} parent=11 // pred_check
        %p184 = pneg %p59
      $region14: #{deconv_layer.1} parent=11 // pred_check_branch
        %186 = sbr.rel (%p184) target = $region16
      $region15: #{deconv_layer.1} parent=11 // pred_region
        _
      $region16: #{deconv_layer.1} parent=11 // pred_fallthru
        _
      // Predicated region
      $region17: #{deconv_layer.1} parent=11 // pred_check
        %p187 = pneg %p80
      $region18: #{deconv_layer.1} parent=11 // pred_check_branch
        %189 = sbr.rel (%p187) target = $region20
      $region19: #{deconv_layer.1} parent=11 // pred_region
        _
      $region20: #{deconv_layer.1} parent=11 // pred_fallthru
        _
      // Predicated region
      $region21: #{deconv_layer.1} parent=11 // pred_check
        %p190 = pneg %p101
      $region22: #{deconv_layer.1} parent=11 // pred_check_branch
        %192 = sbr.rel (%p190) target = $region24
      $region23: #{deconv_layer.1} parent=11 // pred_region
        _
      $region24: #{deconv_layer.1} parent=11 // pred_fallthru
        _
      // Predicated region
      $region25: #{deconv_layer.1} parent=11 // pred_check
        %p193 = pneg %p122
      $region26: #{deconv_layer.1} parent=11 // pred_check_branch
        %195 = sbr.rel (%p193) target = $region28
      $region27: #{deconv_layer.1} parent=11 // pred_region
        _
      $region28: #{deconv_layer.1} parent=11 // pred_fallthru
        _
      // Predicated region
      $region29: #{deconv_layer.1} parent=11 // pred_check
        %p196 = pneg %p143
      $region30: #{deconv_layer.1} parent=11 // pred_check_branch
        %198 = sbr.rel (%p196) target = $region32
      $region31: #{deconv_layer.1} parent=11 // pred_region
        _
      $region32: #{deconv_layer.1} parent=11 // pred_fallthru
        _
    $region12: #{deconv_layer.1} parent=5 // pred_fallthru
      _
    %p199 = scmp.lt.s32.totalorder %s12, 2
    // Predicated region
    $region33: #{deconv_layer.1} parent=5 // pred_check
      %p200 = pneg %p199
    $region34: #{deconv_layer.1} parent=5 // pred_check_branch
      %202 = sbr.rel (%p200) target = $region36
    $region35: #{deconv_layer.1} parent=5 // pred_region
      // Predicated region
      $region37: #{deconv_layer.1} parent=35 // pred_check
        %p203 = pneg %p32
      $region38: #{deconv_layer.1} parent=35 // pred_check_branch
        %205 = sbr.rel (%p203) target = $region40
      $region39: #{deconv_layer.1} parent=35 // pred_region
        %p206 = scmp.lt.s32.totalorder %s12, 1
        %s207 = scalar_select %p206, %s12, 1
        %s208 = smul.addr %s207, 18
        %s209 = smul.addr %s208, 4
        %s210 = scalar_lea.vmem %s0, %s209
      $region40: #{deconv_layer.1} parent=35 // pred_fallthru
        _
    $region36: #{deconv_layer.1} parent=5 // pred_fallthru
      _
    %p211 = scmp.le.s32.totalorder 1, %s12
    %p212 = scmp.lt.s32.totalorder %s12, 3
    %p213 = pnand %p211, %p212
    %p214 = pneg %p213
    // Predicated region
    $region41: #{deconv_layer.1} parent=5 // pred_check
      _
    $region42: #{deconv_layer.1} parent=5 // pred_check_branch
      %216 = sbr.rel (%p213) target = $region44
    $region43: #{deconv_layer.1} parent=5 // pred_region
      %s217 = ssub.s32 %s12, 1
      %p218 = scmp.lt.s32.totalorder %s17, 1
      %s219 = scalar_select %p218, %s17, 1
      %s220 = smul.addr %s219, 18
      %s221 = smul.addr %s220, 4
      %s222 = scalar_lea.vmem %s0, %s221
      %p223 = pneg %p38
      %p224 = pneg %p35
      %p225 = pneg %p59
      %p226 = pneg %p56
      %p227 = pneg %p80
      %p228 = pneg %p77
      %p229 = pneg %p101
      %p230 = pneg %p98
      %p231 = pneg %p122
      %p232 = pneg %p119
      %p233 = pneg %p143
      %p234 = pneg %p140
      %p235 = pneg %p169
      %p236 = pneg %p166
      %p237 = scmp.lt.s32.totalorder %s17, 1
      %s238 = scalar_select %p237, %s17, 1
      %s239 = smul.addr %s238, 64
      %s240 = smul.addr %s239, 8
      %s241 = scalar_lea.vmem %s6, %s240
      %p242 = scmp.lt.s32.totalorder %s17, 1
      %s243 = scalar_select %p242, %s17, 1
      %s244 = smul.addr %s243, 18
      %s245 = smul.addr %s244, 4
      %s246 = scalar_lea.vmem %s0, %s245
      %p247 = scmp.lt.s32.totalorder %s17, 1
      %s248 = scalar_select %p247, %s17, 1
      %s249 = smul.addr %s248, 64
      %s250 = smul.addr %s249, 8
      %s251 = scalar_lea.vmem %s6, %s250
      %v252 = vld [vmem:[%s1] sm:$0xff]
      %v253 = vld [vmem:[%s1 + $0x8] sm:$0xff]
      %v254 = vld [vmem:[%s1 + $0x10] sm:$0xff]
      %v255 = vld [vmem:[%s1 + $0x18] sm:$0xff]
      %v256 = vld [vmem:[%s1 + $0x20] sm:$0xff]
      %v257 = vld [vmem:[%s1 + $0x28] sm:$0xff]
      %v258 = vld [vmem:[%s1 + $0x30] sm:$0xff]
      %v259 = vld [vmem:[%s1 + $0x38] sm:$0xff]
      %v260 = vld [vmem:[%s1 + $0x40] sm:$0xff]
      %v261 = vld [vmem:[%s246] sm:$0xff]
      %v262 = vld [vmem:[%s246 + $0x8] sm:$0xff]
      %v263 = vld [vmem:[%s246 + $0x10] sm:$0xff]
      %v264 = vld [vmem:[%s246 + $0x18] sm:$0xff]
      %v265 = vld [vmem:[%s246 + $0x20] sm:$0xff]
      %v266 = vld [vmem:[%s246 + $0x28] sm:$0xff]
      %v267 = vld [vmem:[%s246 + $0x30] sm:$0xff]
      %v268 = vld [vmem:[%s246 + $0x38] sm:$0xff]
      %v269 = vld [vmem:[%s246 + $0x40] sm:$0xf]
      %v279 = vcombine.high %v261, %v261
      %v280 = vcombine.high %v262, %v262
      %v281 = vcombine.high %v263, %v263
      %v282 = vcombine.high %v264, %v264
      %v283 = vcombine.high %v265, %v265
      %v284 = vcombine.high %v266, %v266
      %v285 = vcombine.high %v267, %v267
      %v286 = vcombine.high %v268, %v268
      %vm287 = vcmask 31744
      %v289 = vsel %vm287, %v252, 0
      %v292 = vsel %vm287, %v253, 0
      %vm294 = vcmask 1043456
      %v295 = vsel %vm294, %v279, 0
      %v297 = vsel %vm294, %v262, 0
      %v299 = vsel %vm294, %v280, 0
      %v301 = vsel %vm294, %v263, 0
      %v303 = vsel %vm294, %v281, 0
      %v305 = vsel %vm294, %v264, 0
      %v307 = vsel %vm294, %v282, 0
      %v309 = vsel %vm294, %v265, 0
      %v311 = vsel %vm294, %v283, 0
      %v313 = vsel %vm294, %v266, 0
      %v315 = vsel %vm294, %v284, 0
      %v317 = vsel %vm294, %v267, 0
      %v319 = vsel %vm294, %v285, 0
      %v321 = vsel %vm294, %v268, 0
      %v323 = vsel %vm294, %v286, 0
      %v325 = vsel %vm294, %v269, 0
      %327 = vmatprep.subr.mxu0 %v297
      %328 = vmatpush1.msra.mxu0 %v295
      %329 = vmatprep.subr.mxu0 0.0
      %330 = vmatpush1.msra.mxu0 0.0
      %331 = vmatprep.subr.mxu0 0.0
      %332 = vmatpush1.msra.mxu0 0.0
      %333 = vmatprep.subr.mxu0 0.0
      %334 = vmatpush1.msra.mxu0 0.0
      %335 = vmatprep.subr.mxu0 0.0
      %336 = vmatpush1.msra.mxu0 0.0
      %337 = vmatprep.subr.mxu0 0.0
      %338 = vmatpush1.msra.mxu0 0.0
      %339 = vmatprep.subr.mxu0 0.0
      %340 = vmatpush1.msra.mxu0 0.0
      %341 = vmatprep.subr.mxu0 0.0
      %342 = vmatpush1.msra.mxu0 0.0
      %343 = vmatprep.subr.mxu0 0.0
      %344 = vmatpush1.msra.mxu0 0.0
      %345 = vmatprep.subr.mxu0 0.0
      %346 = vmatpush1.msra.mxu0 0.0
      %347 = vmatprep.subr.mxu0 0.0
      %348 = vmatpush1.msra.mxu0 0.0
      %349 = vmatprep.subr.mxu0 0.0
      %350 = vmatpush1.msra.mxu0 0.0
      %351 = vmatprep.subr.mxu0 0.0
      %352 = vmatpush1.msra.mxu0 0.0
      %353 = vmatprep.subr.mxu0 0.0
      %354 = vmatpush1.msra.mxu0 0.0
      %355 = vmatprep.subr.mxu0 0.0
      %356 = vmatpush1.msra.mxu0 0.0
      %357 = vmatprep.subr.mxu0 0.0
      %358 = vmatpush1.msra.mxu0 0.0
      %359 = vmatprep.subr.mxu0 0.0
      %360 = vmatpush1.msra.mxu0 0.0
      %361 = vmatprep.subr.mxu0 0.0
      %362 = vmatpush1.msra.mxu0 0.0
      %363 = vmatprep.subr.mxu0 0.0
      %364 = vmatpush1.msra.mxu0 0.0
      %365 = vmatprep.subr.mxu0 0.0
      %366 = vmatpush1.msra.mxu0 0.0
      %367 = vmatprep.subr.mxu0 0.0
      %368 = vmatpush1.msra.mxu0 0.0
      %369 = vmatprep.subr.mxu0 0.0
      %370 = vmatpush1.msra.mxu0 0.0
      %371 = vmatprep.subr.mxu0 0.0
      %372 = vmatpush1.msra.mxu0 0.0
      %373 = vmatprep.subr.mxu0 0.0
      %374 = vmatpush1.msra.mxu0 0.0
      %375 = vmatprep.subr.mxu0 0.0
      %376 = vmatpush1.msra.mxu0 0.0
      %377 = vmatprep.subr.mxu0 0.0
      %378 = vmatpush1.msra.mxu0 0.0
      %379 = vmatprep.subr.mxu0 0.0
      %380 = vmatpush1.msra.mxu0 0.0
      %381 = vmatprep.subr.mxu0 0.0
      %382 = vmatpush1.msra.mxu0 0.0
      %383 = vmatprep.subr.mxu0 0.0
      %384 = vmatpush1.msra.mxu0 0.0
      %385 = vmatprep.subr.mxu0 0.0
      %386 = vmatpush1.msra.mxu0 0.0
      %387 = vmatprep.subr.mxu0 0.0
      %388 = vmatpush1.msra.mxu0 0.0
      %389 = vmatprep.subr.mxu0 0.0
      %390 = vmatpush1.msra.mxu0 0.0
      %391 = vmatprep.mubr.f32.mxu0 0.0
      %392 = vmatmul.mubr.f32.gmra.mrb[0].mxu0 %v289
      %v393 = vpop.f32.mrb[0].mxu0
      %v394 = vadd.f32 0.0, %v393
      %v395 = vpop.f32.mrb[0].mxu0
      %v396 = vadd.f32 0.0, %v395
      %397 = vmatprep.mubr.f32.mxu0 0.0
      %398 = vmatmul.mubr.f32.gmra.mrb[0].mxu0 %v292
      %v399 = vpop.f32.mrb[0].mxu0
      %v400 = vadd.f32 0.0, %v399
      %v401 = vpop.f32.mrb[0].mxu0
      %v402 = vadd.f32 0.0, %v401
      %403 = vdwg.mxu0
      %404 = vmatprep.subr.mxu0 %v301
      %405 = vmatpush1.msra.mxu0 %v299
      %406 = vmatprep.subr.mxu0 0.0
      %407 = vmatpush1.msra.mxu0 0.0
      %408 = vmatprep.subr.mxu0 0.0
      %409 = vmatpush1.msra.mxu0 0.0
      %410 = vmatprep.subr.mxu0 0.0
      %411 = vmatpush1.msra.mxu0 0.0
      %412 = vmatprep.subr.mxu0 0.0
      %413 = vmatpush1.msra.mxu0 0.0
      %414 = vmatprep.subr.mxu0 0.0
      %415 = vmatpush1.msra.mxu0 0.0
      %416 = vmatprep.subr.mxu0 0.0
      %417 = vmatpush1.msra.mxu0 0.0
      %418 = vmatprep.subr.mxu0 0.0
      %419 = vmatpush1.msra.mxu0 0.0
      %420 = vmatprep.subr.mxu0 0.0
      %421 = vmatpush1.msra.mxu0 0.0
      %422 = vmatprep.subr.mxu0 0.0
      %423 = vmatpush1.msra.mxu0 0.0
      %424 = vmatprep.subr.mxu0 0.0
      %425 = vmatpush1.msra.mxu0 0.0
      %426 = vmatprep.subr.mxu0 0.0
      %427 = vmatpush1.msra.mxu0 0.0
      %428 = vmatprep.subr.mxu0 0.0
      %429 = vmatpush1.msra.mxu0 0.0
      %430 = vmatprep.subr.mxu0 0.0
      %431 = vmatpush1.msra.mxu0 0.0
      %432 = vmatprep.subr.mxu0 0.0
      %433 = vmatpush1.msra.mxu0 0.0
      %434 = vmatprep.subr.mxu0 0.0
      %435 = vmatpush1.msra.mxu0 0.0
      %436 = vmatprep.subr.mxu0 0.0
      %437 = vmatpush1.msra.mxu0 0.0
      %438 = vmatprep.subr.mxu0 0.0
      %439 = vmatpush1.msra.mxu0 0.0
      %440 = vmatprep.subr.mxu0 0.0
      %441 = vmatpush1.msra.mxu0 0.0
      %442 = vmatprep.subr.mxu0 0.0
      %443 = vmatpush1.msra.mxu0 0.0
      %444 = vmatprep.subr.mxu0 0.0
      %445 = vmatpush1.msra.mxu0 0.0
      %446 = vmatprep.subr.mxu0 0.0
      %447 = vmatpush1.msra.mxu0 0.0
      %448 = vmatprep.subr.mxu0 0.0
      %449 = vmatpush1.msra.mxu0 0.0
      %450 = vmatprep.subr.mxu0 0.0
      %451 = vmatpush1.msra.mxu0 0.0
      %452 = vmatprep.subr.mxu0 0.0
      %453 = vmatpush1.msra.mxu0 0.0
      %454 = vmatprep.subr.mxu0 0.0
      %455 = vmatpush1.msra.mxu0 0.0
      %456 = vmatprep.subr.mxu0 0.0
      %457 = vmatpush1.msra.mxu0 0.0
      %458 = vmatprep.subr.mxu0 0.0
      %459 = vmatpush1.msra.mxu0 0.0
      %460 = vmatprep.subr.mxu0 0.0
      %461 = vmatpush1.msra.mxu0 0.0
      %462 = vmatprep.subr.mxu0 0.0
      %463 = vmatpush1.msra.mxu0 0.0
      %464 = vmatprep.subr.mxu0 0.0
      %465 = vmatpush1.msra.mxu0 0.0
      %466 = vmatprep.subr.mxu0 0.0
      %467 = vmatpush1.msra.mxu0 0.0
      %468 = vmatprep.mubr.f32.mxu0 0.0
      %469 = vmatmul.mubr.f32.gmra.mrb[0].mxu0 %v289
      %v470 = vpop.f32.mrb[0].mxu0
      %v471 = vadd.f32 0.0, %v470
      %v472 = vpop.f32.mrb[0].mxu0
      %v473 = vadd.f32 0.0, %v472
      %474 = vmatprep.mubr.f32.mxu0 0.0
      %475 = vmatmul.mubr.f32.gmra.mrb[0].mxu0 %v292
      %v476 = vpop.f32.mrb[0].mxu0
      %v477 = vadd.f32 0.0, %v476
      %v478 = vpop.f32.mrb[0].mxu0
      %v479 = vadd.f32 0.0, %v478
      %480 = vdwg.mxu0
      %481 = vmatprep.subr.mxu0 %v305
      %482 = vmatpush1.msra.mxu0 %v303
      %483 = vmatprep.subr.mxu0 0.0
      %484 = vmatpush1.msra.mxu0 0.0
      %485 = vmatprep.subr.mxu0 0.0
      %486 = vmatpush1.msra.mxu0 0.0
      %487 = vmatprep.subr.mxu0 0.0
      %488 = vmatpush1.msra.mxu0 0.0
      %489 = vmatprep.subr.mxu0 0.0
      %490 = vmatpush1.msra.mxu0 0.0
      %491 = vmatprep.subr.mxu0 0.0
      %492 = vmatpush1.msra.mxu0 0.0
      %493 = vmatprep.subr.mxu0 0.0
      %494 = vmatpush1.msra.mxu0 0.0
      %495 = vmatprep.subr.mxu0 0.0
      %496 = vmatpush1.msra.mxu0 0.0
      %497 = vmatprep.subr.mxu0 0.0
      %498 = vmatpush1.msra.mxu0 0.0
      %499 = vmatprep.subr.mxu0 0.0
      %500 = vmatpush1.msra.mxu0 0.0
      %501 = vmatprep.subr.mxu0 0.0
      %502 = vmatpush1.msra.mxu0 0.0
      %503 = vmatprep.subr.mxu0 0.0
      %504 = vmatpush1.msra.mxu0 0.0
      %505 = vmatprep.subr.mxu0 0.0
      %506 = vmatpush1.msra.mxu0 0.0
      %507 = vmatprep.subr.mxu0 0.0
      %508 = vmatpush1.msra.mxu0 0.0
      %509 = vmatprep.subr.mxu0 0.0
      %510 = vmatpush1.msra.mxu0 0.0
      %511 = vmatprep.subr.mxu0 0.0
      %512 = vmatpush1.msra.mxu0 0.0
      %513 = vmatprep.subr.mxu0 0.0
      %514 = vmatpush1.msra.mxu0 0.0
      %515 = vmatprep.subr.mxu0 0.0
      %516 = vmatpush1.msra.mxu0 0.0
      %517 = vmatprep.subr.mxu0 0.0
      %518 = vmatpush1.msra.mxu0 0.0
      %519 = vmatprep.subr.mxu0 0.0
      %520 = vmatpush1.msra.mxu0 0.0
      %521 = vmatprep.subr.mxu0 0.0
      %522 = vmatpush1.msra.mxu0 0.0
      %523 = vmatprep.subr.mxu0 0.0
      %524 = vmatpush1.msra.mxu0 0.0
      %525 = vmatprep.subr.mxu0 0.0
      %526 = vmatpush1.msra.mxu0 0.0
      %527 = vmatprep.subr.mxu0 0.0
      %528 = vmatpush1.msra.mxu0 0.0
      %529 = vmatprep.subr.mxu0 0.0
      %530 = vmatpush1.msra.mxu0 0.0
      %531 = vmatprep.subr.mxu0 0.0
      %532 = vmatpush1.msra.mxu0 0.0
      %533 = vmatprep.subr.mxu0 0.0
      %534 = vmatpush1.msra.mxu0 0.0
      %535 = vmatprep.subr.mxu0 0.0
      %536 = vmatpush1.msra.mxu0 0.0
      %537 = vmatprep.subr.mxu0 0.0
      %538 = vmatpush1.msra.mxu0 0.0
      %539 = vmatprep.subr.mxu0 0.0
      %540 = vmatpush1.msra.mxu0 0.0
      %541 = vmatprep.subr.mxu0 0.0
      %542 = vmatpush1.msra.mxu0 0.0
      %543 = vmatprep.subr.mxu0 0.0
      %544 = vmatpush1.msra.mxu0 0.0
      %545 = vmatprep.mubr.f32.mxu0 0.0
      %546 = vmatmul.mubr.f32.gmra.mrb[0].mxu0 %v289
      %v547 = vpop.f32.mrb[0].mxu0
      %v548 = vadd.f32 0.0, %v547
      %v549 = vpop.f32.mrb[0].mxu0
      %v550 = vadd.f32 0.0, %v549
      %551 = vmatprep.mubr.f32.mxu0 0.0
      %552 = vmatmul.mubr.f32.gmra.mrb[0].mxu0 %v292
      %v553 = vpop.f32.mrb[0].mxu0
      %v554 = vadd.f32 0.0, %v553
      %v555 = vpop.f32.mrb[0].mxu0
      %v556 = vadd.f32 0.0, %v555
      %557 = vdwg.mxu0
      %558 = vmatprep.subr.mxu0 %v309
      %559 = vmatpush1.msra.mxu0 %v307
      %560 = vmatprep.subr.mxu0 0.0
      %561 = vmatpush1.msra.mxu0 0.0
      %562 = vmatprep.subr.mxu0 0.0
      %563 = vmatpush1.msra.mxu0 0.0
      %564 = vmatprep.subr.mxu0 0.0
      %565 = vmatpush1.msra.mxu0 0.0
      %566 = vmatprep.subr.mxu0 0.0
      %567 = vmatpush1.msra.mxu0 0.0
      %568 = vmatprep.subr.mxu0 0.0
      %569 = vmatpush1.msra.mxu0 0.0
      %570 = vmatprep.subr.mxu0 0.0
      %571 = vmatpush1.msra.mxu0 0.0
      %572 = vmatprep.subr.mxu0 0.0
      %573 = vmatpush1.msra.mxu0 0.0
      %574 = vmatprep.subr.mxu0 0.0
      %575 = vmatpush1.msra.mxu0 0.0
      %576 = vmatprep.subr.mxu0 0.0
      %577 = vmatpush1.msra.mxu0 0.0
      %578 = vmatprep.subr.mxu0 0.0
      %579 = vmatpush1.msra.mxu0 0.0
      %580 = vmatprep.subr.mxu0 0.0
      %581 = vmatpush1.msra.mxu0 0.0
      %582 = vmatprep.subr.mxu0 0.0
      %583 = vmatpush1.msra.mxu0 0.0
      %584 = vmatprep.subr.mxu0 0.0
      %585 = vmatpush1.msra.mxu0 0.0
      %586 = vmatprep.subr.mxu0 0.0
      %587 = vmatpush1.msra.mxu0 0.0
      %588 = vmatprep.subr.mxu0 0.0
      %589 = vmatpush1.msra.mxu0 0.0
      %590 = vmatprep.subr.mxu0 0.0
      %591 = vmatpush1.msra.mxu0 0.0
      %592 = vmatprep.subr.mxu0 0.0
      %593 = vmatpush1.msra.mxu0 0.0
      %594 = vmatprep.subr.mxu0 0.0
      %595 = vmatpush1.msra.mxu0 0.0
      %596 = vmatprep.subr.mxu0 0.0
      %597 = vmatpush1.msra.mxu0 0.0
      %598 = vmatprep.subr.mxu0 0.0
      %599 = vmatpush1.msra.mxu0 0.0
      %600 = vmatprep.subr.mxu0 0.0
      %601 = vmatpush1.msra.mxu0 0.0
      %602 = vmatprep.subr.mxu0 0.0
      %603 = vmatpush1.msra.mxu0 0.0
      %604 = vmatprep.subr.mxu0 0.0
      %605 = vmatpush1.msra.mxu0 0.0
      %606 = vmatprep.subr.mxu0 0.0
      %607 = vmatpush1.msra.mxu0 0.0
      %608 = vmatprep.subr.mxu0 0.0
      %609 = vmatpush1.msra.mxu0 0.0
      %610 = vmatprep.subr.mxu0 0.0
      %611 = vmatpush1.msra.mxu0 0.0
      %612 = vmatprep.subr.mxu0 0.0
      %613 = vmatpush1.msra.mxu0 0.0
      %614 = vmatprep.subr.mxu0 0.0
      %615 = vmatpush1.msra.mxu0 0.0
      %616 = vmatprep.subr.mxu0 0.0
      %617 = vmatpush1.msra.mxu0 0.0
      %618 = vmatprep.subr.mxu0 0.0
      %619 = vmatpush1.msra.mxu0 0.0
      %620 = vmatprep.subr.mxu0 0.0
      %621 = vmatpush1.msra.mxu0 0.0
      %622 = vmatprep.mubr.f32.mxu0 0.0
      %623 = vmatmul.mubr.f32.gmra.mrb[0].mxu0 %v289
      %v624 = vpop.f32.mrb[0].mxu0
      %v625 = vadd.f32 0.0, %v624
      %v626 = vpop.f32.mrb[0].mxu0
      %v627 = vadd.f32 0.0, %v626
      %628 = vmatprep.mubr.f32.mxu0 0.0
      %629 = vmatmul.mubr.f32.gmra.mrb[0].mxu0 %v292
      %v630 = vpop.f32.mrb[0].mxu0
      %v631 = vadd.f32 0.0, %v630
      %v632 = vpop.f32.mrb[0].mxu0
      %v633 = vadd.f32 0.0, %v632
      %634 = vdwg.mxu0
      %635 = vmatprep.subr.mxu0 %v313
      %636 = vmatpush1.msra.mxu0 %v311
      %637 = vmatprep.subr.mxu0 0.0
      %638 = vmatpush1.msra.mxu0 0.0
      %639 = vmatprep.subr.mxu0 0.0
      %640 = vmatpush1.msra.mxu0 0.0
      %641 = vmatprep.subr.mxu0 0.0
      %642 = vmatpush1.msra.mxu0 0.0
      %643 = vmatprep.subr.mxu0 0.0
      %644 = vmatpush1.msra.mxu0 0.0
      %645 = vmatprep.subr.mxu0 0.0
      %646 = vmatpush1.msra.mxu0 0.0
      %647 = vmatprep.subr.mxu0 0.0
      %648 = vmatpush1.msra.mxu0 0.0
      %649 = vmatprep.subr.mxu0 0.0
      %650 = vmatpush1.msra.mxu0 0.0
      %651 = vmatprep.subr.mxu0 0.0
      %652 = vmatpush1.msra.mxu0 0.0
      %653 = vmatprep.subr.mxu0 0.0
      %654 = vmatpush1.msra.mxu0 0.0
      %655 = vmatprep.subr.mxu0 0.0
      %656 = vmatpush1.msra.mxu0 0.0
      %657 = vmatprep.subr.mxu0 0.0
      %658 = vmatpush1.msra.mxu0 0.0
      %659 = vmatprep.subr.mxu0 0.0
      %660 = vmatpush1.msra.mxu0 0.0
      %661 = vmatprep.subr.mxu0 0.0
      %662 = vmatpush1.msra.mxu0 0.0
      %663 = vmatprep.subr.mxu0 0.0
      %664 = vmatpush1.msra.mxu0 0.0
      %665 = vmatprep.subr.mxu0 0.0
      %666 = vmatpush1.msra.mxu0 0.0
      %667 = vmatprep.subr.mxu0 0.0
      %668 = vmatpush1.msra.mxu0 0.0
      %669 = vmatprep.subr.mxu0 0.0
      %670 = vmatpush1.msra.mxu0 0.0
      %671 = vmatprep.subr.mxu0 0.0
      %672 = vmatpush1.msra.mxu0 0.0
      %673 = vmatprep.subr.mxu0 0.0
      %674 = vmatpush1.msra.mxu0 0.0
      %675 = vmatprep.subr.mxu0 0.0
      %676 = vmatpush1.msra.mxu0 0.0
      %677 = vmatprep.subr.mxu0 0.0
      %678 = vmatpush1.msra.mxu0 0.0
      %679 = vmatprep.subr.mxu0 0.0
      %680 = vmatpush1.msra.mxu0 0.0
      %681 = vmatprep.subr.mxu0 0.0
      %682 = vmatpush1.msra.mxu0 0.0
      %683 = vmatprep.subr.mxu0 0.0
      %684 = vmatpush1.msra.mxu0 0.0
      %685 = vmatprep.subr.mxu0 0.0
      %686 = vmatpush1.msra.mxu0 0.0
      %687 = vmatprep.subr.mxu0 0.0
      %688 = vmatpush1.msra.mxu0 0.0
      %689 = vmatprep.subr.mxu0 0.0
      %690 = vmatpush1.msra.mxu0 0.0
      %691 = vmatprep.subr.mxu0 0.0
      %692 = vmatpush1.msra.mxu0 0.0
      %693 = vmatprep.subr.mxu0 0.0
      %694 = vmatpush1.msra.mxu0 0.0
      %695 = vmatprep.subr.mxu0 0.0
      %696 = vmatpush1.msra.mxu0 0.0
      %697 = vmatprep.subr.mxu0 0.0
      %698 = vmatpush1.msra.mxu0 0.0
      %699 = vmatprep.mubr.f32.mxu0 0.0
      %700 = vmatmul.mubr.f32.gmra.mrb[0].mxu0 %v289
      %v701 = vpop.f32.mrb[0].mxu0
      %v702 = vadd.f32 0.0, %v701
      %v703 = vpop.f32.mrb[0].mxu0
      %v704 = vadd.f32 0.0, %v703
      %705 = vmatprep.mubr.f32.mxu0 0.0
      %706 = vmatmul.mubr.f32.gmra.mrb[0].mxu0 %v292
      %v707 = vpop.f32.mrb[0].mxu0
      %v708 = vadd.f32 0.0, %v707
      %v709 = vpop.f32.mrb[0].mxu0
      %v710 = vadd.f32 0.0, %v709
      %711 = vdwg.mxu0
      %712 = vmatprep.subr.mxu0 %v317
      %713 = vmatpush1.msra.mxu0 %v315
      %714 = vmatprep.subr.mxu0 0.0
      %715 = vmatpush1.msra.mxu0 0.0
      %716 = vmatprep.subr.mxu0 0.0
      %717 = vmatpush1.msra.mxu0 0.0
      %718 = vmatprep.subr.mxu0 0.0
      %719 = vmatpush1.msra.mxu0 0.0
      %720 = vmatprep.subr.mxu0 0.0
      %721 = vmatpush1.msra.mxu0 0.0
      %722 = vmatprep.subr.mxu0 0.0
      %723 = vmatpush1.msra.mxu0 0.0
      %724 = vmatprep.subr.mxu0 0.0
      %725 = vmatpush1.msra.mxu0 0.0
      %726 = vmatprep.subr.mxu0 0.0
      %727 = vmatpush1.msra.mxu0 0.0
      %728 = vmatprep.subr.mxu0 0.0
      %729 = vmatpush1.msra.mxu0 0.0
      %730 = vmatprep.subr.mxu0 0.0
      %731 = vmatpush1.msra.mxu0 0.0
      %732 = vmatprep.subr.mxu0 0.0
      %733 = vmatpush1.msra.mxu0 0.0
      %734 = vmatprep.subr.mxu0 0.0
      %735 = vmatpush1.msra.mxu0 0.0
      %736 = vmatprep.subr.mxu0 0.0
      %737 = vmatpush1.msra.mxu0 0.0
      %738 = vmatprep.subr.mxu0 0.0
      %739 = vmatpush1.msra.mxu0 0.0
      %740 = vmatprep.subr.mxu0 0.0
      %741 = vmatpush1.msra.mxu0 0.0
      %742 = vmatprep.subr.mxu0 0.0
      %743 = vmatpush1.msra.mxu0 0.0
      %744 = vmatprep.subr.mxu0 0.0
      %745 = vmatpush1.msra.mxu0 0.0
      %746 = vmatprep.subr.mxu0 0.0
      %747 = vmatpush1.msra.mxu0 0.0
      %748 = vmatprep.subr.mxu0 0.0
      %749 = vmatpush1.msra.mxu0 0.0
      %750 = vmatprep.subr.mxu0 0.0
      %751 = vmatpush1.msra.mxu0 0.0
      %752 = vmatprep.subr.mxu0 0.0
      %753 = vmatpush1.msra.mxu0 0.0
      %754 = vmatprep.subr.mxu0 0.0
      %755 = vmatpush1.msra.mxu0 0.0
      %756 = vmatprep.subr.mxu0 0.0
      %757 = vmatpush1.msra.mxu0 0.0
      %758 = vmatprep.subr.mxu0 0.0
      %759 = vmatpush1.msra.mxu0 0.0
      %760 = vmatprep.subr.mxu0 0.0
      %761 = vmatpush1.msra.mxu0 0.0
      %762 = vmatprep.subr.mxu0 0.0
      %763 = vmatpush1.msra.mxu0 0.0
      %764 = vmatprep.subr.mxu0 0.0
      %765 = vmatpush1.msra.mxu0 0.0
      %766 = vmatprep.subr.mxu0 0.0
      %767 = vmatpush1.msra.mxu0 0.0
      %768 = vmatprep.subr.mxu0 0.0
      %769 = vmatpush1.msra.mxu0 0.0
      %770 = vmatprep.subr.mxu0 0.0
      %771 = vmatpush1.msra.mxu0 0.0
      %772 = vmatprep.subr.mxu0 0.0
      %773 = vmatpush1.msra.mxu0 0.0
      %774 = vmatprep.subr.mxu0 0.0
      %775 = vmatpush1.msra.mxu0 0.0
      %776 = vmatprep.mubr.f32.mxu0 0.0
      %777 = vmatmul.mubr.f32.gmra.mrb[0].mxu0 %v289
      %v778 = vpop.f32.mrb[0].mxu0
      %v779 = vadd.f32 0.0, %v778
      %v780 = vpop.f32.mrb[0].mxu0
      %v781 = vadd.f32 0.0, %v780
      %782 = vmatprep.mubr.f32.mxu0 0.0
      %783 = vmatmul.mubr.f32.gmra.mrb[0].mxu0 %v292
      %v784 = vpop.f32.mrb[0].mxu0
      %v785 = vadd.f32 0.0, %v784
      %v786 = vpop.f32.mrb[0].mxu0
      %v787 = vadd.f32 0.0, %v786
      %788 = vdwg.mxu0
      %789 = vmatprep.subr.mxu0 %v321
      %790 = vmatpush1.msra.mxu0 %v319
      %791 = vmatprep.subr.mxu0 0.0
      %792 = vmatpush1.msra.mxu0 0.0
      %793 = vmatprep.subr.mxu0 0.0
      %794 = vmatpush1.msra.mxu0 0.0
      %795 = vmatprep.subr.mxu0 0.0
      %796 = vmatpush1.msra.mxu0 0.0
      %797 = vmatprep.subr.mxu0 0.0
      %798 = vmatpush1.msra.mxu0 0.0
      %799 = vmatprep.subr.mxu0 0.0
      %800 = vmatpush1.msra.mxu0 0.0
      %801 = vmatprep.subr.mxu0 0.0
      %802 = vmatpush1.msra.mxu0 0.0
      %803 = vmatprep.subr.mxu0 0.0
      %804 = vmatpush1.msra.mxu0 0.0
      %805 = vmatprep.subr.mxu0 0.0
      %806 = vmatpush1.msra.mxu0 0.0
      %807 = vmatprep.subr.mxu0 0.0
      %808 = vmatpush1.msra.mxu0 0.0
      %809 = vmatprep.subr.mxu0 0.0
      %810 = vmatpush1.msra.mxu0 0.0
      %811 = vmatprep.subr.mxu0 0.0
      %812 = vmatpush1.msra.mxu0 0.0
      %813 = vmatprep.subr.mxu0 0.0
      %814 = vmatpush1.msra.mxu0 0.0
      %815 = vmatprep.subr.mxu0 0.0
      %816 = vmatpush1.msra.mxu0 0.0
      %817 = vmatprep.subr.mxu0 0.0
      %818 = vmatpush1.msra.mxu0 0.0
      %819 = vmatprep.subr.mxu0 0.0
      %820 = vmatpush1.msra.mxu0 0.0
      %821 = vmatprep.subr.mxu0 0.0
      %822 = vmatpush1.msra.mxu0 0.0
      %823 = vmatprep.subr.mxu0 0.0
      %824 = vmatpush1.msra.mxu0 0.0
      %825 = vmatprep.subr.mxu0 0.0
      %826 = vmatpush1.msra.mxu0 0.0
      %827 = vmatprep.subr.mxu0 0.0
      %828 = vmatpush1.msra.mxu0 0.0
      %829 = vmatprep.subr.mxu0 0.0
      %830 = vmatpush1.msra.mxu0 0.0
      %831 = vmatprep.subr.mxu0 0.0
      %832 = vmatpush1.msra.mxu0 0.0
      %833 = vmatprep.subr.mxu0 0.0
      %834 = vmatpush1.msra.mxu0 0.0
      %835 = vmatprep.subr.mxu0 0.0
      %836 = vmatpush1.msra.mxu0 0.0
      %837 = vmatprep.subr.mxu0 0.0
      %838 = vmatpush1.msra.mxu0 0.0
      %839 = vmatprep.subr.mxu0 0.0
      %840 = vmatpush1.msra.mxu0 0.0
      %841 = vmatprep.subr.mxu0 0.0
      %842 = vmatpush1.msra.mxu0 0.0
      %843 = vmatprep.subr.mxu0 0.0
      %844 = vmatpush1.msra.mxu0 0.0
      %845 = vmatprep.subr.mxu0 0.0
      %846 = vmatpush1.msra.mxu0 0.0
      %847 = vmatprep.subr.mxu0 0.0
      %848 = vmatpush1.msra.mxu0 0.0
      %849 = vmatprep.subr.mxu0 0.0
      %850 = vmatpush1.msra.mxu0 0.0
      %851 = vmatprep.subr.mxu0 0.0
      %852 = vmatpush1.msra.mxu0 0.0
      %853 = vmatprep.mubr.f32.mxu0 0.0
      %854 = vmatmul.mubr.f32.gmra.mrb[0].mxu0 %v289
      %v855 = vpop.f32.mrb[0].mxu0
      %v856 = vadd.f32 0.0, %v855
      %v857 = vpop.f32.mrb[0].mxu0
      %v858 = vadd.f32 0.0, %v857
      %859 = vmatprep.mubr.f32.mxu0 0.0
      %860 = vmatmul.mubr.f32.gmra.mrb[0].mxu0 %v292
      %v861 = vpop.f32.mrb[0].mxu0
      %v862 = vadd.f32 0.0, %v861
      %v863 = vpop.f32.mrb[0].mxu0
      %v864 = vadd.f32 0.0, %v863
      %865 = vdwg.mxu0
      %866 = vmatprep.subr.mxu0 %v325
      %867 = vmatpush1.msra.mxu0 %v323
      %868 = vmatprep.subr.mxu0 0.0
      %869 = vmatpush1.msra.mxu0 0.0
      %870 = vmatprep.subr.mxu0 0.0
      %871 = vmatpush1.msra.mxu0 0.0
      %872 = vmatprep.subr.mxu0 0.0
      %873 = vmatpush1.msra.mxu0 0.0
      %874 = vmatprep.subr.mxu0 0.0
      %875 = vmatpush1.msra.mxu0 0.0
      %876 = vmatprep.subr.mxu0 0.0
      %877 = vmatpush1.msra.mxu0 0.0
      %878 = vmatprep.subr.mxu0 0.0
      %879 = vmatpush1.msra.mxu0 0.0
      %880 = vmatprep.subr.mxu0 0.0
      %881 = vmatpush1.msra.mxu0 0.0
      %882 = vmatprep.subr.mxu0 0.0
      %883 = vmatpush1.msra.mxu0 0.0
      %884 = vmatprep.subr.mxu0 0.0
      %885 = vmatpush1.msra.mxu0 0.0
      %886 = vmatprep.subr.mxu0 0.0
      %887 = vmatpush1.msra.mxu0 0.0
      %888 = vmatprep.subr.mxu0 0.0
      %889 = vmatpush1.msra.mxu0 0.0
      %890 = vmatprep.subr.mxu0 0.0
      %891 = vmatpush1.msra.mxu0 0.0
      %892 = vmatprep.subr.mxu0 0.0
      %893 = vmatpush1.msra.mxu0 0.0
      %894 = vmatprep.subr.mxu0 0.0
      %895 = vmatpush1.msra.mxu0 0.0
      %896 = vmatprep.subr.mxu0 0.0
      %897 = vmatpush1.msra.mxu0 0.0
      %898 = vmatprep.subr.mxu0 0.0
      %899 = vmatpush1.msra.mxu0 0.0
      %900 = vmatprep.subr.mxu0 0.0
      %901 = vmatpush1.msra.mxu0 0.0
      %902 = vmatprep.subr.mxu0 0.0
      %903 = vmatpush1.msra.mxu0 0.0
      %904 = vmatprep.subr.mxu0 0.0
      %905 = vmatpush1.msra.mxu0 0.0
      %906 = vmatprep.subr.mxu0 0.0
      %907 = vmatpush1.msra.mxu0 0.0
      %908 = vmatprep.subr.mxu0 0.0
      %909 = vmatpush1.msra.mxu0 0.0
      %910 = vmatprep.subr.mxu0 0.0
      %911 = vmatpush1.msra.mxu0 0.0
      %912 = vmatprep.subr.mxu0 0.0
      %913 = vmatpush1.msra.mxu0 0.0
      %914 = vmatprep.subr.mxu0 0.0
      %915 = vmatpush1.msra.mxu0 0.0
      %916 = vmatprep.subr.mxu0 0.0
      %917 = vmatpush1.msra.mxu0 0.0
      %918 = vmatprep.subr.mxu0 0.0
      %919 = vmatpush1.msra.mxu0 0.0
      %920 = vmatprep.subr.mxu0 0.0
      %921 = vmatpush1.msra.mxu0 0.0
      %922 = vmatprep.subr.mxu0 0.0
      %923 = vmatpush1.msra.mxu0 0.0
      %924 = vmatprep.subr.mxu0 0.0
      %925 = vmatpush1.msra.mxu0 0.0
      %926 = vmatprep.subr.mxu0 0.0
      %927 = vmatpush1.msra.mxu0 0.0
      %928 = vmatprep.subr.mxu0 0.0
      %929 = vmatpush1.msra.mxu0 0.0
      %930 = vmatprep.mubr.f32.mxu0 0.0
      %931 = vmatmul.mubr.f32.gmra.mrb[0].mxu0 %v289
      %v932 = vpop.f32.mrb[0].mxu0
      %v933 = vadd.f32 0.0, %v932
      %v934 = vpop.f32.mrb[0].mxu0
      %v935 = vadd.f32 0.0, %v934
      %936 = vmatprep.mubr.f32.mxu0 0.0
      %937 = vmatmul.mubr.f32.gmra.mrb[0].mxu0 %v292
      %v938 = vpop.f32.mrb[0].mxu0
      %v939 = vadd.f32 0.0, %v938
      %v940 = vpop.f32.mrb[0].mxu0
      %v941 = vadd.f32 0.0, %v940
      %942 = vdwg.mxu0
      %s943 = scalar_lea.vmem [#allocation2], 256
      %944 = vst [vmem:[%s943] sm:$0xff] %v394
      %945 = vst [vmem:[%s943 + $0x8] sm:$0xff] %v396
      %946 = vst [vmem:[%s943 + $0x10] sm:$0xff] %v471
      %947 = vst [vmem:[%s943 + $0x18] sm:$0xff] %v473
      %948 = vst [vmem:[%s943 + $0x20] sm:$0xff] %v548
      %949 = vst [vmem:[%s943 + $0x28] sm:$0xff] %v550
      %950 = vst [vmem:[%s943 + $0x30] sm:$0xff] %v625
      %951 = vst [vmem:[%s943 + $0x38] sm:$0xff] %v627
      %952 = vst [vmem:[%s943 + $0x40] sm:$0xff] %v702
      %953 = vst [vmem:[%s943 + $0x48] sm:$0xff] %v704
      %954 = vst [vmem:[%s943 + $0x50] sm:$0xff] %v779
      %955 = vst [vmem:[%s943 + $0x58] sm:$0xff] %v781
      %956 = vst [vmem:[%s943 + $0x60] sm:$0xff] %v856
      %957 = vst [vmem:[%s943 + $0x68] sm:$0xff] %v858
      %958 = vst [vmem:[%s943 + $0x70] sm:$0xff] %v933
      %959 = vst [vmem:[%s943 + $0x78] sm:$0xff] %v935
      %s960 = scalar_lea.vmem [#allocation2], 384
      %961 = vst [vmem:[%s960] sm:$0xff] %v400
      %962 = vst [vmem:[%s960 + $0x8] sm:$0xff] %v402
      %963 = vst [vmem:[%s960 + $0x10] sm:$0xff] %v477
      %964 = vst [vmem:[%s960 + $0x18] sm:$0xff] %v479
      %965 = vst [vmem:[%s960 + $0x20] sm:$0xff] %v554
      %966 = vst [vmem:[%s960 + $0x28] sm:$0xff] %v556
      %967 = vst [vmem:[%s960 + $0x30] sm:$0xff] %v631
      %968 = vst [vmem:[%s960 + $0x38] sm:$0xff] %v633
      %969 = vst [vmem:[%s960 + $0x40] sm:$0xff] %v708
      %970 = vst [vmem:[%s960 + $0x48] sm:$0xff] %v710
      %971 = vst [vmem:[%s960 + $0x50] sm:$0xff] %v785
      %972 = vst [vmem:[%s960 + $0x58] sm:$0xff] %v787
      %973 = vst [vmem:[%s960 + $0x60] sm:$0xff] %v862
      %974 = vst [vmem:[%s960 + $0x68] sm:$0xff] %v864
      %975 = vst [vmem:[%s960 + $0x70] sm:$0xff] %v939
      %976 = vst [vmem:[%s960 + $0x78] sm:$0xff] %v941
      %v978 = vsel %vm287, %v254, 0
      %v981 = vsel %vm287, %v255, 0
      %v983 = vsel %vm294, %v261, 0
      %985 = vmatprep.subr.mxu0 %v295
      %986 = vmatpush1.msra.mxu0 %v983
      %987 = vmatprep.subr.mxu0 0.0
      %988 = vmatpush1.msra.mxu0 0.0
      %989 = vmatprep.subr.mxu0 0.0
      %990 = vmatpush1.msra.mxu0 0.0
      %991 = vmatprep.subr.mxu0 0.0
      %992 = vmatpush1.msra.mxu0 0.0
      %993 = vmatprep.subr.mxu0 0.0
      %994 = vmatpush1.msra.mxu0 0.0
      %995 = vmatprep.subr.mxu0 0.0
      %996 = vmatpush1.msra.mxu0 0.0
      %997 = vmatprep.subr.mxu0 0.0
      %998 = vmatpush1.msra.mxu0 0.0
      %999 = vmatprep.subr.mxu0 0.0
      %1000 = vmatpush1.msra.mxu0 0.0
      %1001 = vmatprep.subr.mxu0 0.0
      %1002 = vmatpush1.msra.mxu0 0.0
      %1003 = vmatprep.subr.mxu0 0.0
      %1004 = vmatpush1.msra.mxu0 0.0
      %1005 = vmatprep.subr.mxu0 0.0
      %1006 = vmatpush1.msra.mxu0 0.0
      %1007 = vmatprep.subr.mxu0 0.0
      %1008 = vmatpush1.msra.mxu0 0.0
      %1009 = vmatprep.subr.mxu0 0.0
      %1010 = vmatpush1.msra.mxu0 0.0
      %1011 = vmatprep.subr.mxu0 0.0
      %1012 = vmatpush1.msra.mxu0 0.0
      %1013 = vmatprep.subr.mxu0 0.0
      %1014 = vmatpush1.msra.mxu0 0.0
      %1015 = vmatprep.subr.mxu0 0.0
      %1016 = vmatpush1.msra.mxu0 0.0
      %1017 = vmatprep.subr.mxu0 0.0
      %1018 = vmatpush1.msra.mxu0 0.0
      %1019 = vmatprep.subr.mxu0 0.0
      %1020 = vmatpush1.msra.mxu0 0.0
      %1021 = vmatprep.subr.mxu0 0.0
      %1022 = vmatpush1.msra.mxu0 0.0
      %1023 = vmatprep.subr.mxu0 0.0
      %1024 = vmatpush1.msra.mxu0 0.0
      %1025 = vmatprep.subr.mxu0 0.0
      %1026 = vmatpush1.msra.mxu0 0.0
      %1027 = vmatprep.subr.mxu0 0.0
      %1028 = vmatpush1.msra.mxu0 0.0
      %1029 = vmatprep.subr.mxu0 0.0
      %1030 = vmatpush1.msra.mxu0 0.0
      %1031 = vmatprep.subr.mxu0 0.0
      %1032 = vmatpush1.msra.mxu0 0.0
      %1033 = vmatprep.subr.mxu0 0.0
      %1034 = vmatpush1.msra.mxu0 0.0
      %1035 = vmatprep.subr.mxu0 0.0
      %1036 = vmatpush1.msra.mxu0 0.0
      %1037 = vmatprep.subr.mxu0 0.0
      %1038 = vmatpush1.msra.mxu0 0.0
      %1039 = vmatprep.subr.mxu0 0.0
      %1040 = vmatpush1.msra.mxu0 0.0
      %1041 = vmatprep.subr.mxu0 0.0
      %1042 = vmatpush1.msra.mxu0 0.0
      %1043 = vmatprep.subr.mxu0 0.0
      %1044 = vmatpush1.msra.mxu0 0.0
      %1045 = vmatprep.subr.mxu0 0.0
      %1046 = vmatpush1.msra.mxu0 0.0
      %1047 = vmatprep.subr.mxu0 0.0
      %1048 = vmatpush1.msra.mxu0 0.0
      %1049 = vmatprep.mubr.f32.mxu0 0.0
      %1050 = vmatmul.mubr.f32.gmra.mrb[0].mxu0 %v978
      %v1051 = vpop.f32.mrb[0].mxu0
      %v1052 = vadd.f32 0.0, %v1051
      %v1053 = vpop.f32.mrb[0].mxu0
      %v1054 = vadd.f32 0.0, %v1053
      %1055 = vmatprep.mubr.f32.mxu0 0.0
      %1056 = vmatmul.mubr.f32.gmra.mrb[0].mxu0 %v981
      %v1057 = vpop.f32.mrb[0].mxu0
      %v1058 = vadd.f32 0.0, %v1057
      %v1059 = vpop.f32.mrb[0].mxu0
      %v1060 = vadd.f32 0.0, %v1059
      %1061 = vdwg.mxu0
      %1062 = vmatprep.subr.mxu0 %v299
      %1063 = vmatpush1.msra.mxu0 %v297
      %1064 = vmatprep.subr.mxu0 0.0
      %1065 = vmatpush1.msra.mxu0 0.0
      %1066 = vmatprep.subr.mxu0 0.0
      %1067 = vmatpush1.msra.mxu0 0.0
      %1068 = vmatprep.subr.mxu0 0.0
      %1069 = vmatpush1.msra.mxu0 0.0
      %1070 = vmatprep.subr.mxu0 0.0
      %1071 = vmatpush1.msra.mxu0 0.0
      %1072 = vmatprep.subr.mxu0 0.0
      %1073 = vmatpush1.msra.mxu0 0.0
      %1074 = vmatprep.subr.mxu0 0.0
      %1075 = vmatpush1.msra.mxu0 0.0
      %1076 = vmatprep.subr.mxu0 0.0
      %1077 = vmatpush1.msra.mxu0 0.0
      %1078 = vmatprep.subr.mxu0 0.0
      %1079 = vmatpush1.msra.mxu0 0.0
      %1080 = vmatprep.subr.mxu0 0.0
      %1081 = vmatpush1.msra.mxu0 0.0
      %1082 = vmatprep.subr.mxu0 0.0
      %1083 = vmatpush1.msra.mxu0 0.0
      %1084 = vmatprep.subr.mxu0 0.0
      %1085 = vmatpush1.msra.mxu0 0.0
      %1086 = vmatprep.subr.mxu0 0.0
      %1087 = vmatpush1.msra.mxu0 0.0
      %1088 = vmatprep.subr.mxu0 0.0
      %1089 = vmatpush1.msra.mxu0 0.0
      %1090 = vmatprep.subr.mxu0 0.0
      %1091 = vmatpush1.msra.mxu0 0.0
      %1092 = vmatprep.subr.mxu0 0.0
      %1093 = vmatpush1.msra.mxu0 0.0
      %1094 = vmatprep.subr.mxu0 0.0
      %1095 = vmatpush1.msra.mxu0 0.0
      %1096 = vmatprep.subr.mxu0 0.0
      %1097 = vmatpush1.msra.mxu0 0.0
      %1098 = vmatprep.subr.mxu0 0.0
      %1099 = vmatpush1.msra.mxu0 0.0
      %1100 = vmatprep.subr.mxu0 0.0
      %1101 = vmatpush1.msra.mxu0 0.0
      %1102 = vmatprep.subr.mxu0 0.0
      %1103 = vmatpush1.msra.mxu0 0.0
      %1104 = vmatprep.subr.mxu0 0.0
      %1105 = vmatpush1.msra.mxu0 0.0
      %1106 = vmatprep.subr.mxu0 0.0
      %1107 = vmatpush1.msra.mxu0 0.0
      %1108 = vmatprep.subr.mxu0 0.0
      %1109 = vmatpush1.msra.mxu0 0.0
      %1110 = vmatprep.subr.mxu0 0.0
      %1111 = vmatpush1.msra.mxu0 0.0
      %1112 = vmatprep.subr.mxu0 0.0
      %1113 = vmatpush1.msra.mxu0 0.0
      %1114 = vmatprep.subr.mxu0 0.0
      %1115 = vmatpush1.msra.mxu0 0.0
      %1116 = vmatprep.subr.mxu0 0.0
      %1117 = vmatpush1.msra.mxu0 0.0
      %1118 = vmatprep.subr.mxu0 0.0
      %1119 = vmatpush1.msra.mxu0 0.0
      %1120 = vmatprep.subr.mxu0 0.0
      %1121 = vmatpush1.msra.mxu0 0.0
      %1122 = vmatprep.subr.mxu0 0.0
      %1123 = vmatpush1.msra.mxu0 0.0
      %1124 = vmatprep.subr.mxu0 0.0
      %1125 = vmatpush1.msra.mxu0 0.0
      %1126 = vmatprep.mubr.f32.mxu0 0.0
      %1127 = vmatmul.mubr.f32.gmra.mrb[0].mxu0 %v978
      %v1128 = vpop.f32.mrb[0].mxu0
      %v1129 = vadd.f32 0.0, %v1128
      %v1130 = vpop.f32.mrb[0].mxu0
      %v1131 = vadd.f32 0.0, %v1130
      %1132 = vmatprep.mubr.f32.mxu0 0.0
      %1133 = vmatmul.mubr.f32.gmra.mrb[0].mxu0 %v981
      %v1134 = vpop.f32.mrb[0].mxu0
      %v1135 = vadd.f32 0.0, %v1134
      %v1136 = vpop.f32.mrb[0].mxu0
      %v1137 = vadd.f32 0.0, %v1136
      %1138 = vdwg.mxu0
      %1139 = vmatprep.subr.mxu0 %v303
      %1140 = vmatpush1.msra.mxu0 %v301
      %1141 = vmatprep.subr.mxu0 0.0
      %1142 = vmatpush1.msra.mxu0 0.0
      %1143 = vmatprep.subr.mxu0 0.0
      %1144 = vmatpush1.msra.mxu0 0.0
      %1145 = vmatprep.subr.mxu0 0.0
      %1146 = vmatpush1.msra.mxu0 0.0
      %1147 = vmatprep.subr.mxu0 0.0
      %1148 = vmatpush1.msra.mxu0 0.0
      %1149 = vmatprep.subr.mxu0 0.0
      %1150 = vmatpush1.msra.mxu0 0.0
      %1151 = vmatprep.subr.mxu0 0.0
      %1152 = vmatpush1.msra.mxu0 0.0
      %1153 = vmatprep.subr.mxu0 0.0
      %1154 = vmatpush1.msra.mxu0 0.0
      %1155 = vmatprep.subr.mxu0 0.0
      %1156 = vmatpush1.msra.mxu0 0.0
      %1157 = vmatprep.subr.mxu0 0.0
      %1158 = vmatpush1.msra.mxu0 0.0
      %1159 = vmatprep.subr.mxu0 0.0
      %1160 = vmatpush1.msra.mxu0 0.0
      %1161 = vmatprep.subr.mxu0 0.0
      %1162 = vmatpush1.msra.mxu0 0.0
      %1163 = vmatprep.subr.mxu0 0.0
      %1164 = vmatpush1.msra.mxu0 0.0
      %1165 = vmatprep.subr.mxu0 0.0
      %1166 = vmatpush1.msra.mxu0 0.0
      %1167 = vmatprep.subr.mxu0 0.0
      %1168 = vmatpush1.msra.mxu0 0.0
      %1169 = vmatprep.subr.mxu0 0.0
      %1170 = vmatpush1.msra.mxu0 0.0
      %1171 = vmatprep.subr.mxu0 0.0
      %1172 = vmatpush1.msra.mxu0 0.0
      %1173 = vmatprep.subr.mxu0 0.0
      %1174 = vmatpush1.msra.mxu0 0.0
      %1175 = vmatprep.subr.mxu0 0.0
      %1176 = vmatpush1.msra.mxu0 0.0
      %1177 = vmatprep.subr.mxu0 0.0
      %1178 = vmatpush1.msra.mxu0 0.0
      %1179 = vmatprep.subr.mxu0 0.0
      %1180 = vmatpush1.msra.mxu0 0.0
      %1181 = vmatprep.subr.mxu0 0.0
      %1182 = vmatpush1.msra.mxu0 0.0
      %1183 = vmatprep.subr.mxu0 0.0
      %1184 = vmatpush1.msra.mxu0 0.0
      %1185 = vmatprep.subr.mxu0 0.0
      %1186 = vmatpush1.msra.mxu0 0.0
      %1187 = vmatprep.subr.mxu0 0.0
      %1188 = vmatpush1.msra.mxu0 0.0
      %1189 = vmatprep.subr.mxu0 0.0
      %1190 = vmatpush1.msra.mxu0 0.0
      %1191 = vmatprep.subr.mxu0 0.0
      %1192 = vmatpush1.msra.mxu0 0.0
      %1193 = vmatprep.subr.mxu0 0.0
      %1194 = vmatpush1.msra.mxu0 0.0
      %1195 = vmatprep.subr.mxu0 0.0
      %1196 = vmatpush1.msra.mxu0 0.0
      %1197 = vmatprep.subr.mxu0 0.0
      %1198 = vmatpush1.msra.mxu0 0.0
      %1199 = vmatprep.subr.mxu0 0.0
      %1200 = vmatpush1.msra.mxu0 0.0
      %1201 = vmatprep.subr.mxu0 0.0
      %1202 = vmatpush1.msra.mxu0 0.0
      %1203 = vmatprep.mubr.f32.mxu0 0.0
      %1204 = vmatmul.mubr.f32.gmra.mrb[0].mxu0 %v978
      %v1205 = vpop.f32.mrb[0].mxu0
      %v1206 = vadd.f32 0.0, %v1205
      %v1207 = vpop.f32.mrb[0].mxu0
      %v1208 = vadd.f32 0.0, %v1207
      %1209 = vmatprep.mubr.f32.mxu0 0.0
      %1210 = vmatmul.mubr.f32.gmra.mrb[0].mxu0 %v981
      %v1211 = vpop.f32.mrb[0].mxu0
      %v1212 = vadd.f32 0.0, %v1211
      %v1213 = vpop.f32.mrb[0].mxu0
      %v1214 = vadd.f32 0.0, %v1213
      %1215 = vdwg.mxu0
      %1216 = vmatprep.subr.mxu0 %v307
      %1217 = vmatpush1.msra.mxu0 %v305
      %1218 = vmatprep.subr.mxu0 0.0
      %1219 = vmatpush1.msra.mxu0 0.0
      %1220 = vmatprep.subr.mxu0 0.0
      %1221 = vmatpush1.msra.mxu0 0.0
      %1222 = vmatprep.subr.mxu0 0.0
      %1223 = vmatpush1.msra.mxu0 0.0
      %1224 = vmatprep.subr.mxu0 0.0
      %1225 = vmatpush1.msra.mxu0 0.0
      %1226 = vmatprep.subr.mxu0 0.0
      %1227 = vmatpush1.msra.mxu0 0.0
      %1228 = vmatprep.subr.mxu0 0.0
      %1229 = vmatpush1.msra.mxu0 0.0
      %1230 = vmatprep.subr.mxu0 0.0
      %1231 = vmatpush1.msra.mxu0 0.0
      %1232 = vmatprep.subr.mxu0 0.0
      %1233 = vmatpush1.msra.mxu0 0.0
      %1234 = vmatprep.subr.mxu0 0.0
      %1235 = vmatpush1.msra.mxu0 0.0
      %1236 = vmatprep.subr.mxu0 0.0
      %1237 = vmatpush1.msra.mxu0 0.0
      %1238 = vmatprep.subr.mxu0 0.0
      %1239 = vmatpush1.msra.mxu0 0.0
      %1240 = vmatprep.subr.mxu0 0.0
      %1241 = vmatpush1.msra.mxu0 0.0
      %1242 = vmatprep.subr.mxu0 0.0
      %1243 = vmatpush1.msra.mxu0 0.0
      %1244 = vmatprep.subr.mxu0 0.0
      %1245 = vmatpush1.msra.mxu0 0.0
      %1246 = vmatprep.subr.mxu0 0.0
      %1247 = vmatpush1.msra.mxu0 0.0
      %1248 = vmatprep.subr.mxu0 0.0
      %1249 = vmatpush1.msra.mxu0 0.0
      %1250 = vmatprep.subr.mxu0 0.0
      %1251 = vmatpush1.msra.mxu0 0.0
      %1252 = vmatprep.subr.mxu0 0.0
      %1253 = vmatpush1.msra.mxu0 0.0
      %1254 = vmatprep.subr.mxu0 0.0
      %1255 = vmatpush1.msra.mxu0 0.0
      %1256 = vmatprep.subr.mxu0 0.0
      %1257 = vmatpush1.msra.mxu0 0.0
      %1258 = vmatprep.subr.mxu0 0.0
      %1259 = vmatpush1.msra.mxu0 0.0
      %1260 = vmatprep.subr.mxu0 0.0
      %1261 = vmatpush1.msra.mxu0 0.0
      %1262 = vmatprep.subr.mxu0 0.0
      %1263 = vmatpush1.msra.mxu0 0.0
      %1264 = vmatprep.subr.mxu0 0.0
      %1265 = vmatpush1.msra.mxu0 0.0
      %1266 = vmatprep.subr.mxu0 0.0
      %1267 = vmatpush1.msra.mxu0 0.0
      %1268 = vmatprep.subr.mxu0 0.0
      %1269 = vmatpush1.msra.mxu0 0.0
      %1270 = vmatprep.subr.mxu0 0.0
      %1271 = vmatpush1.msra.mxu0 0.0
      %1272 = vmatprep.subr.mxu0 0.0
      %1273 = vmatpush1.msra.mxu0 0.0
      %1274 = vmatprep.subr.mxu0 0.0
      %1275 = vmatpush1.msra.mxu0 0.0
      %1276 = vmatprep.subr.mxu0 0.0
      %1277 = vmatpush1.msra.mxu0 0.0
      %1278 = vmatprep.subr.mxu0 0.0
      %1279 = vmatpush1.msra.mxu0 0.0
      %1280 = vmatprep.mubr.f32.mxu0 0.0
      %1281 = vmatmul.mubr.f32.gmra.mrb[0].mxu0 %v978
      %v1282 = vpop.f32.mrb[0].mxu0
      %v1283 = vadd.f32 0.0, %v1282
      %v1284 = vpop.f32.mrb[0].mxu0
      %v1285 = vadd.f32 0.0, %v1284
      %1286 = vmatprep.mubr.f32.mxu0 0.0
      %1287 = vmatmul.mubr.f32.gmra.mrb[0].mxu0 %v981
      %v1288 = vpop.f32.mrb[0].mxu0
      %v1289 = vadd.f32 0.0, %v1288
      %v1290 = vpop.f32.mrb[0].mxu0
      %v1291 = vadd.f32 0.0, %v1290
      %1292 = vdwg.mxu0
      %1293 = vmatprep.subr.mxu0 %v311
      %1294 = vmatpush1.msra.mxu0 %v309
      %1295 = vmatprep.subr.mxu0 0.0
      %1296 = vmatpush1.msra.mxu0 0.0
      %1297 = vmatprep.subr.mxu0 0.0
      %1298 = vmatpush1.msra.mxu0 0.0
      %1299 = vmatprep.subr.mxu0 0.0
      %1300 = vmatpush1.msra.mxu0 0.0
      %1301 = vmatprep.subr.mxu0 0.0
      %1302 = vmatpush1.msra.mxu0 0.0
      %1303 = vmatprep.subr.mxu0 0.0
      %1304 = vmatpush1.msra.mxu0 0.0
      %1305 = vmatprep.subr.mxu0 0.0
      %1306 = vmatpush1.msra.mxu0 0.0
      %1307 = vmatprep.subr.mxu0 0.0
      %1308 = vmatpush1.msra.mxu0 0.0
      %1309 = vmatprep.subr.mxu0 0.0
      %1310 = vmatpush1.msra.mxu0 0.0
      %1311 = vmatprep.subr.mxu0 0.0
      %1312 = vmatpush1.msra.mxu0 0.0
      %1313 = vmatprep.subr.mxu0 0.0
      %1314 = vmatpush1.msra.mxu0 0.0
      %1315 = vmatprep.subr.mxu0 0.0
      %1316 = vmatpush1.msra.mxu0 0.0
      %1317 = vmatprep.subr.mxu0 0.0
      %1318 = vmatpush1.msra.mxu0 0.0
      %1319 = vmatprep.subr.mxu0 0.0
      %1320 = vmatpush1.msra.mxu0 0.0
      %1321 = vmatprep.subr.mxu0 0.0
      %1322 = vmatpush1.msra.mxu0 0.0
      %1323 = vmatprep.subr.mxu0 0.0
      %1324 = vmatpush1.msra.mxu0 0.0
      %1325 = vmatprep.subr.mxu0 0.0
      %1326 = vmatpush1.msra.mxu0 0.0
      %1327 = vmatprep.subr.mxu0 0.0
      %1328 = vmatpush1.msra.mxu0 0.0
      %1329 = vmatprep.subr.mxu0 0.0
      %1330 = vmatpush1.msra.mxu0 0.0
      %1331 = vmatprep.subr.mxu0 0.0
      %1332 = vmatpush1.msra.mxu0 0.0
      %1333 = vmatprep.subr.mxu0 0.0
      %1334 = vmatpush1.msra.mxu0 0.0
      %1335 = vmatprep.subr.mxu0 0.0
      %1336 = vmatpush1.msra.mxu0 0.0
      %1337 = vmatprep.subr.mxu0 0.0
      %1338 = vmatpush1.msra.mxu0 0.0
      %1339 = vmatprep.subr.mxu0 0.0
      %1340 = vmatpush1.msra.mxu0 0.0
      %1341 = vmatprep.subr.mxu0 0.0
      %1342 = vmatpush1.msra.mxu0 0.0
      %1343 = vmatprep.subr.mxu0 0.0
      %1344 = vmatpush1.msra.mxu0 0.0
      %1345 = vmatprep.subr.mxu0 0.0
      %1346 = vmatpush1.msra.mxu0 0.0
      %1347 = vmatprep.subr.mxu0 0.0
      %1348 = vmatpush1.msra.mxu0 0.0
      %1349 = vmatprep.subr.mxu0 0.0
      %1350 = vmatpush1.msra.mxu0 0.0
      %1351 = vmatprep.subr.mxu0 0.0
      %1352 = vmatpush1.msra.mxu0 0.0
      %1353 = vmatprep.subr.mxu0 0.0
      %1354 = vmatpush1.msra.mxu0 0.0
      %1355 = vmatprep.subr.mxu0 0.0
      %1356 = vmatpush1.msra.mxu0 0.0
      %1357 = vmatprep.mubr.f32.mxu0 0.0
      %1358 = vmatmul.mubr.f32.gmra.mrb[0].mxu0 %v978
      %v1359 = vpop.f32.mrb[0].mxu0
      %v1360 = vadd.f32 0.0, %v1359
      %v1361 = vpop.f32.mrb[0].mxu0
      %v1362 = vadd.f32 0.0, %v1361
      %1363 = vmatprep.mubr.f32.mxu0 0.0
      %1364 = vmatmul.mubr.f32.gmra.mrb[0].mxu0 %v981
      %v1365 = vpop.f32.mrb[0].mxu0
      %v1366 = vadd.f32 0.0, %v1365
      %v1367 = vpop.f32.mrb[0].mxu0
      %v1368 = vadd.f32 0.0, %v1367
      %1369 = vdwg.mxu0
      %1370 = vmatprep.subr.mxu0 %v315
      %1371 = vmatpush1.msra.mxu0 %v313
      %1372 = vmatprep.subr.mxu0 0.0
      %1373 = vmatpush1.msra.mxu0 0.0
      %1374 = vmatprep.subr.mxu0 0.0
      %1375 = vmatpush1.msra.mxu0 0.0
      %1376 = vmatprep.subr.mxu0 0.0
      %1377 = vmatpush1.msra.mxu0 0.0
      %1378 = vmatprep.subr.mxu0 0.0
      %1379 = vmatpush1.msra.mxu0 0.0
      %1380 = vmatprep.subr.mxu0 0.0
      %1381 = vmatpush1.msra.mxu0 0.0
      %1382 = vmatprep.subr.mxu0 0.0
      %1383 = vmatpush1.msra.mxu0 0.0
      %1384 = vmatprep.subr.mxu0 0.0
      %1385 = vmatpush1.msra.mxu0 0.0
      %1386 = vmatprep.subr.mxu0 0.0
      %1387 = vmatpush1.msra.mxu0 0.0
      %1388 = vmatprep.subr.mxu0 0.0
      %1389 = vmatpush1.msra.mxu0 0.0
      %1390 = vmatprep.subr.mxu0 0.0
      %1391 = vmatpush1.msra.mxu0 0.0
      %1392 = vmatprep.subr.mxu0 0.0
      %1393 = vmatpush1.msra.mxu0 0.0
      %1394 = vmatprep.subr.mxu0 0.0
      %1395 = vmatpush1.msra.mxu0 0.0
      %1396 = vmatprep.subr.mxu0 0.0
      %1397 = vmatpush1.msra.mxu0 0.0
      %1398 = vmatprep.subr.mxu0 0.0
      %1399 = vmatpush1.msra.mxu0 0.0
      %1400 = vmatprep.subr.mxu0 0.0
      %1401 = vmatpush1.msra.mxu0 0.0
      %1402 = vmatprep.subr.mxu0 0.0
      %1403 = vmatpush1.msra.mxu0 0.0
      %1404 = vmatprep.subr.mxu0 0.0
      %1405 = vmatpush1.msra.mxu0 0.0
      %1406 = vmatprep.subr.mxu0 0.0
      %1407 = vmatpush1.msra.mxu0 0.0
      %1408 = vmatprep.subr.mxu0 0.0
      %1409 = vmatpush1.msra.mxu0 0.0
      %1410 = vmatprep.subr.mxu0 0.0
      %1411 = vmatpush1.msra.mxu0 0.0
      %1412 = vmatprep.subr.mxu0 0.0
      %1413 = vmatpush1.msra.mxu0 0.0
      %1414 = vmatprep.subr.mxu0 0.0
      %1415 = vmatpush1.msra.mxu0 0.0
      %1416 = vmatprep.subr.mxu0 0.0
      %1417 = vmatpush1.msra.mxu0 0.0
      %1418 = vmatprep.subr.mxu0 0.0
      %1419 = vmatpush1.msra.mxu0 0.0
      %1420 = vmatprep.subr.mxu0 0.0
      %1421 = vmatpush1.msra.mxu0 0.0
      %1422 = vmatprep.subr.mxu0 0.0
      %1423 = vmatpush1.msra.mxu0 0.0
      %1424 = vmatprep.subr.mxu0 0.0
      %1425 = vmatpush1.msra.mxu0 0.0
      %1426 = vmatprep.subr.mxu0 0.0
      %1427 = vmatpush1.msra.mxu0 0.0
      %1428 = vmatprep.subr.mxu0 0.0
      %1429 = vmatpush1.msra.mxu0 0.0
      %1430 = vmatprep.subr.mxu0 0.0
      %1431 = vmatpush1.msra.mxu0 0.0
      %1432 = vmatprep.subr.mxu0 0.0
      %1433 = vmatpush1.msra.mxu0 0.0
      %1434 = vmatprep.mubr.f32.mxu0 0.0
      %1435 = vmatmul.mubr.f32.gmra.mrb[0].mxu0 %v978
      %v1436 = vpop.f32.mrb[0].mxu0
      %v1437 = vadd.f32 0.0, %v1436
      %v1438 = vpop.f32.mrb[0].mxu0
      %v1439 = vadd.f32 0.0, %v1438
      %1440 = vmatprep.mubr.f32.mxu0 0.0
      %1441 = vmatmul.mubr.f32.gmra.mrb[0].mxu0 %v981
      %v1442 = vpop.f32.mrb[0].mxu0
      %v1443 = vadd.f32 0.0, %v1442
      %v1444 = vpop.f32.mrb[0].mxu0
      %v1445 = vadd.f32 0.0, %v1444
      %1446 = vdwg.mxu0
      %1447 = vmatprep.subr.mxu0 %v319
      %1448 = vmatpush1.msra.mxu0 %v317
      %1449 = vmatprep.subr.mxu0 0.0
      %1450 = vmatpush1.msra.mxu0 0.0
      %1451 = vmatprep.subr.mxu0 0.0
      %1452 = vmatpush1.msra.mxu0 0.0
      %1453 = vmatprep.subr.mxu0 0.0
      %1454 = vmatpush1.msra.mxu0 0.0
      %1455 = vmatprep.subr.mxu0 0.0
      %1456 = vmatpush1.msra.mxu0 0.0
      %1457 = vmatprep.subr.mxu0 0.0
      %1458 = vmatpush1.msra.mxu0 0.0
      %1459 = vmatprep.subr.mxu0 0.0
      %1460 = vmatpush1.msra.mxu0 0.0
      %1461 = vmatprep.subr.mxu0 0.0
      %1462 = vmatpush1.msra.mxu0 0.0
      %1463 = vmatprep.subr.mxu0 0.0
      %1464 = vmatpush1.msra.mxu0 0.0
      %1465 = vmatprep.subr.mxu0 0.0
      %1466 = vmatpush1.msra.mxu0 0.0
      %1467 = vmatprep.subr.mxu0 0.0
      %1468 = vmatpush1.msra.mxu0 0.0
      %1469 = vmatprep.subr.mxu0 0.0
      %1470 = vmatpush1.msra.mxu0 0.0
      %1471 = vmatprep.subr.mxu0 0.0
      %1472 = vmatpush1.msra.mxu0 0.0
      %1473 = vmatprep.subr.mxu0 0.0
      %1474 = vmatpush1.msra.mxu0 0.0
      %1475 = vmatprep.subr.mxu0 0.0
      %1476 = vmatpush1.msra.mxu0 0.0
      %1477 = vmatprep.subr.mxu0 0.0
      %1478 = vmatpush1.msra.mxu0 0.0
      %1479 = vmatprep.subr.mxu0 0.0
      %1480 = vmatpush1.msra.mxu0 0.0
      %1481 = vmatprep.subr.mxu0 0.0
      %1482 = vmatpush1.msra.mxu0 0.0
      %1483 = vmatprep.subr.mxu0 0.0
      %1484 = vmatpush1.msra.mxu0 0.0
      %1485 = vmatprep.subr.mxu0 0.0
      %1486 = vmatpush1.msra.mxu0 0.0
      %1487 = vmatprep.subr.mxu0 0.0
      %1488 = vmatpush1.msra.mxu0 0.0
      %1489 = vmatprep.subr.mxu0 0.0
      %1490 = vmatpush1.msra.mxu0 0.0
      %1491 = vmatprep.subr.mxu0 0.0
      %1492 = vmatpush1.msra.mxu0 0.0
      %1493 = vmatprep.subr.mxu0 0.0
      %1494 = vmatpush1.msra.mxu0 0.0
      %1495 = vmatprep.subr.mxu0 0.0
      %1496 = vmatpush1.msra.mxu0 0.0
      %1497 = vmatprep.subr.mxu0 0.0
      %1498 = vmatpush1.msra.mxu0 0.0
      %1499 = vmatprep.subr.mxu0 0.0
      %1500 = vmatpush1.msra.mxu0 0.0
      %1501 = vmatprep.subr.mxu0 0.0
      %1502 = vmatpush1.msra.mxu0 0.0
      %1503 = vmatprep.subr.mxu0 0.0
      %1504 = vmatpush1.msra.mxu0 0.0
      %1505 = vmatprep.subr.mxu0 0.0
      %1506 = vmatpush1.msra.mxu0 0.0
      %1507 = vmatprep.subr.mxu0 0.0
      %1508 = vmatpush1.msra.mxu0 0.0
      %1509 = vmatprep.subr.mxu0 0.0
      %1510 = vmatpush1.msra.mxu0 0.0
      %1511 = vmatprep.mubr.f32.mxu0 0.0
      %1512 = vmatmul.mubr.f32.gmra.mrb[0].mxu0 %v978
      %v1513 = vpop.f32.mrb[0].mxu0
      %v1514 = vadd.f32 0.0, %v1513
      %v1515 = vpop.f32.mrb[0].mxu0
      %v1516 = vadd.f32 0.0, %v1515
      %1517 = vmatprep.mubr.f32.mxu0 0.0
      %1518 = vmatmul.mubr.f32.gmra.mrb[0].mxu0 %v981
      %v1519 = vpop.f32.mrb[0].mxu0
      %v1520 = vadd.f32 0.0, %v1519
      %v1521 = vpop.f32.mrb[0].mxu0
      %v1522 = vadd.f32 0.0, %v1521
      %1523 = vdwg.mxu0
      %1524 = vmatprep.subr.mxu0 %v323
      %1525 = vmatpush1.msra.mxu0 %v321
      %1526 = vmatprep.subr.mxu0 0.0
      %1527 = vmatpush1.msra.mxu0 0.0
      %1528 = vmatprep.subr.mxu0 0.0
      %1529 = vmatpush1.msra.mxu0 0.0
      %1530 = vmatprep.subr.mxu0 0.0
      %1531 = vmatpush1.msra.mxu0 0.0
      %1532 = vmatprep.subr.mxu0 0.0
      %1533 = vmatpush1.msra.mxu0 0.0
      %1534 = vmatprep.subr.mxu0 0.0
      %1535 = vmatpush1.msra.mxu0 0.0
      %1536 = vmatprep.subr.mxu0 0.0
      %1537 = vmatpush1.msra.mxu0 0.0
      %1538 = vmatprep.subr.mxu0 0.0
      %1539 = vmatpush1.msra.mxu0 0.0
      %1540 = vmatprep.subr.mxu0 0.0
      %1541 = vmatpush1.msra.mxu0 0.0
      %1542 = vmatprep.subr.mxu0 0.0
      %1543 = vmatpush1.msra.mxu0 0.0
      %1544 = vmatprep.subr.mxu0 0.0
      %1545 = vmatpush1.msra.mxu0 0.0
      %1546 = vmatprep.subr.mxu0 0.0
      %1547 = vmatpush1.msra.mxu0 0.0
      %1548 = vmatprep.subr.mxu0 0.0
      %1549 = vmatpush1.msra.mxu0 0.0
      %1550 = vmatprep.subr.mxu0 0.0
      %1551 = vmatpush1.msra.mxu0 0.0
      %1552 = vmatprep.subr.mxu0 0.0
      %1553 = vmatpush1.msra.mxu0 0.0
      %1554 = vmatprep.subr.mxu0 0.0
      %1555 = vmatpush1.msra.mxu0 0.0
      %1556 = vmatprep.subr.mxu0 0.0
      %1557 = vmatpush1.msra.mxu0 0.0
      %1558 = vmatprep.subr.mxu0 0.0
      %1559 = vmatpush1.msra.mxu0 0.0
      %1560 = vmatprep.subr.mxu0 0.0
      %1561 = vmatpush1.msra.mxu0 0.0
      %1562 = vmatprep.subr.mxu0 0.0
      %1563 = vmatpush1.msra.mxu0 0.0
      %1564 = vmatprep.subr.mxu0 0.0
      %1565 = vmatpush1.msra.mxu0 0.0
      %1566 = vmatprep.subr.mxu0 0.0
      %1567 = vmatpush1.msra.mxu0 0.0
      %1568 = vmatprep.subr.mxu0 0.0
      %1569 = vmatpush1.msra.mxu0 0.0
      %1570 = vmatprep.subr.mxu0 0.0
      %1571 = vmatpush1.msra.mxu0 0.0
      %1572 = vmatprep.subr.mxu0 0.0
      %1573 = vmatpush1.msra.mxu0 0.0
      %1574 = vmatprep.subr.mxu0 0.0
      %1575 = vmatpush1.msra.mxu0 0.0
      %1576 = vmatprep.subr.mxu0 0.0
      %1577 = vmatpush1.msra.mxu0 0.0
      %1578 = vmatprep.subr.mxu0 0.0
      %1579 = vmatpush1.msra.mxu0 0.0
      %1580 = vmatprep.subr.mxu0 0.0
      %1581 = vmatpush1.msra.mxu0 0.0
      %1582 = vmatprep.subr.mxu0 0.0
      %1583 = vmatpush1.msra.mxu0 0.0
      %1584 = vmatprep.subr.mxu0 0.0
      %1585 = vmatpush1.msra.mxu0 0.0
      %1586 = vmatprep.subr.mxu0 0.0
      %1587 = vmatpush1.msra.mxu0 0.0
      %1588 = vmatprep.mubr.f32.mxu0 0.0
      %1589 = vmatmul.mubr.f32.gmra.mrb[0].mxu0 %v978
      %v1590 = vpop.f32.mrb[0].mxu0
      %v1591 = vadd.f32 0.0, %v1590
      %v1592 = vpop.f32.mrb[0].mxu0
      %v1593 = vadd.f32 0.0, %v1592
      %1594 = vmatprep.mubr.f32.mxu0 0.0
      %1595 = vmatmul.mubr.f32.gmra.mrb[0].mxu0 %v981
      %v1596 = vpop.f32.mrb[0].mxu0
      %v1597 = vadd.f32 0.0, %v1596
      %v1598 = vpop.f32.mrb[0].mxu0
      %v1599 = vadd.f32 0.0, %v1598
      %1600 = vdwg.mxu0
      %1601 = vst [vmem:[#allocation2] sm:$0xff] %v1052
      %1602 = vst [vmem:[#allocation2 + $0x8] sm:$0xff] %v1054
      %1603 = vst [vmem:[#allocation2 + $0x10] sm:$0xff] %v1129
      %1604 = vst [vmem:[#allocation2 + $0x18] sm:$0xff] %v1131
      %1605 = vst [vmem:[#allocation2 + $0x20] sm:$0xff] %v1206
      %1606 = vst [vmem:[#allocation2 + $0x28] sm:$0xff] %v1208
      %1607 = vst [vmem:[#allocation2 + $0x30] sm:$0xff] %v1283
      %1608 = vst [vmem:[#allocation2 + $0x38] sm:$0xff] %v1285
      %1609 = vst [vmem:[#allocation2 + $0x40] sm:$0xff] %v1360
      %1610 = vst [vmem:[#allocation2 + $0x48] sm:$0xff] %v1362
      %1611 = vst [vmem:[#allocation2 + $0x50] sm:$0xff] %v1437
      %1612 = vst [vmem:[#allocation2 + $0x58] sm:$0xff] %v1439
      %1613 = vst [vmem:[#allocation2 + $0x60] sm:$0xff] %v1514
      %1614 = vst [vmem:[#allocation2 + $0x68] sm:$0xff] %v1516
      %1615 = vst [vmem:[#allocation2 + $0x70] sm:$0xff] %v1591
      %1616 = vst [vmem:[#allocation2 + $0x78] sm:$0xff] %v1593
      %s1617 = scalar_lea.vmem [#allocation2], 128
      %1618 = vst [vmem:[%s1617] sm:$0xff] %v1058
      %1619 = vst [vmem:[%s1617 + $0x8] sm:$0xff] %v1060
      %1620 = vst [vmem:[%s1617 + $0x10] sm:$0xff] %v1135
      %1621 = vst [vmem:[%s1617 + $0x18] sm:$0xff] %v1137
      %1622 = vst [vmem:[%s1617 + $0x20] sm:$0xff] %v1212
      %1623 = vst [vmem:[%s1617 + $0x28] sm:$0xff] %v1214
      %1624 = vst [vmem:[%s1617 + $0x30] sm:$0xff] %v1289
      %1625 = vst [vmem:[%s1617 + $0x38] sm:$0xff] %v1291
      %1626 = vst [vmem:[%s1617 + $0x40] sm:$0xff] %v1366
      %1627 = vst [vmem:[%s1617 + $0x48] sm:$0xff] %v1368
      %1628 = vst [vmem:[%s1617 + $0x50] sm:$0xff] %v1443
      %1629 = vst [vmem:[%s1617 + $0x58] sm:$0xff] %v1445
      %1630 = vst [vmem:[%s1617 + $0x60] sm:$0xff] %v1520
      %1631 = vst [vmem:[%s1617 + $0x68] sm:$0xff] %v1522
      %1632 = vst [vmem:[%s1617 + $0x70] sm:$0xff] %v1597
      %1633 = vst [vmem:[%s1617 + $0x78] sm:$0xff] %v1599
      %v1635 = vsel %vm287, %v256, 0
      %v1638 = vsel %vm287, %v257, 0
      %1640 = vmatprep.subr.mxu0 %v295
      %1641 = vmatpush1.msra.mxu0 %v983
      %1642 = vmatprep.subr.mxu0 0.0
      %1643 = vmatpush1.msra.mxu0 0.0
      %1644 = vmatprep.subr.mxu0 0.0
      %1645 = vmatpush1.msra.mxu0 0.0
      %1646 = vmatprep.subr.mxu0 0.0
      %1647 = vmatpush1.msra.mxu0 0.0
      %1648 = vmatprep.subr.mxu0 0.0
      %1649 = vmatpush1.msra.mxu0 0.0
      %1650 = vmatprep.subr.mxu0 0.0
      %1651 = vmatpush1.msra.mxu0 0.0
      %1652 = vmatprep.subr.mxu0 0.0
      %1653 = vmatpush1.msra.mxu0 0.0
      %1654 = vmatprep.subr.mxu0 0.0
      %1655 = vmatpush1.msra.mxu0 0.0
      %1656 = vmatprep.subr.mxu0 0.0
      %1657 = vmatpush1.msra.mxu0 0.0
      %1658 = vmatprep.subr.mxu0 0.0
      %1659 = vmatpush1.msra.mxu0 0.0
      %1660 = vmatprep.subr.mxu0 0.0
      %1661 = vmatpush1.msra.mxu0 0.0
      %1662 = vmatprep.subr.mxu0 0.0
      %1663 = vmatpush1.msra.mxu0 0.0
      %1664 = vmatprep.subr.mxu0 0.0
      %1665 = vmatpush1.msra.mxu0 0.0
      %1666 = vmatprep.subr.mxu0 0.0
      %1667 = vmatpush1.msra.mxu0 0.0
      %1668 = vmatprep.subr.mxu0 0.0
      %1669 = vmatpush1.msra.mxu0 0.0
      %1670 = vmatprep.subr.mxu0 0.0
      %1671 = vmatpush1.msra.mxu0 0.0
      %1672 = vmatprep.subr.mxu0 0.0
      %1673 = vmatpush1.msra.mxu0 0.0
      %1674 = vmatprep.subr.mxu0 0.0
      %1675 = vmatpush1.msra.mxu0 0.0
      %1676 = vmatprep.subr.mxu0 0.0
      %1677 = vmatpush1.msra.mxu0 0.0
      %1678 = vmatprep.subr.mxu0 0.0
      %1679 = vmatpush1.msra.mxu0 0.0
      %1680 = vmatprep.subr.mxu0 0.0
      %1681 = vmatpush1.msra.mxu0 0.0
      %1682 = vmatprep.subr.mxu0 0.0
      %1683 = vmatpush1.msra.mxu0 0.0
      %1684 = vmatprep.subr.mxu0 0.0
      %1685 = vmatpush1.msra.mxu0 0.0
      %1686 = vmatprep.subr.mxu0 0.0
      %1687 = vmatpush1.msra.mxu0 0.0
      %1688 = vmatprep.subr.mxu0 0.0
      %1689 = vmatpush1.msra.mxu0 0.0
      %1690 = vmatprep.subr.mxu0 0.0
      %1691 = vmatpush1.msra.mxu0 0.0
      %1692 = vmatprep.subr.mxu0 0.0
      %1693 = vmatpush1.msra.mxu0 0.0
      %1694 = vmatprep.subr.mxu0 0.0
      %1695 = vmatpush1.msra.mxu0 0.0
      %1696 = vmatprep.subr.mxu0 0.0
      %1697 = vmatpush1.msra.mxu0 0.0
      %1698 = vmatprep.subr.mxu0 0.0
      %1699 = vmatpush1.msra.mxu0 0.0
      %1700 = vmatprep.subr.mxu0 0.0
      %1701 = vmatpush1.msra.mxu0 0.0
      %1702 = vmatprep.subr.mxu0 0.0
      %1703 = vmatpush1.msra.mxu0 0.0
      %1704 = vmatprep.mubr.f32.mxu0 0.0
      %1705 = vmatmul.mubr.f32.gmra.mrb[0].mxu0 %v1635
      %v1706 = vpop.f32.mrb[0].mxu0
      %v1707 = vadd.f32 0.0, %v1706
      %v1708 = vpop.f32.mrb[0].mxu0
      %v1709 = vadd.f32 0.0, %v1708
      %1710 = vmatprep.mubr.f32.mxu0 0.0
      %1711 = vmatmul.mubr.f32.gmra.mrb[0].mxu0 %v1638
      %v1712 = vpop.f32.mrb[0].mxu0
      %v1713 = vadd.f32 0.0, %v1712
      %v1714 = vpop.f32.mrb[0].mxu0
      %v1715 = vadd.f32 0.0, %v1714
      %1716 = vdwg.mxu0
      %1717 = vmatprep.subr.mxu0 %v299
      %1718 = vmatpush1.msra.mxu0 %v297
      %1719 = vmatprep.subr.mxu0 0.0
      %1720 = vmatpush1.msra.mxu0 0.0
      %1721 = vmatprep.subr.mxu0 0.0
      %1722 = vmatpush1.msra.mxu0 0.0
      %1723 = vmatprep.subr.mxu0 0.0
      %1724 = vmatpush1.msra.mxu0 0.0
      %1725 = vmatprep.subr.mxu0 0.0
      %1726 = vmatpush1.msra.mxu0 0.0
      %1727 = vmatprep.subr.mxu0 0.0
      %1728 = vmatpush1.msra.mxu0 0.0
      %1729 = vmatprep.subr.mxu0 0.0
      %1730 = vmatpush1.msra.mxu0 0.0
      %1731 = vmatprep.subr.mxu0 0.0
      %1732 = vmatpush1.msra.mxu0 0.0
      %1733 = vmatprep.subr.mxu0 0.0
      %1734 = vmatpush1.msra.mxu0 0.0
      %1735 = vmatprep.subr.mxu0 0.0
      %1736 = vmatpush1.msra.mxu0 0.0
      %1737 = vmatprep.subr.mxu0 0.0
      %1738 = vmatpush1.msra.mxu0 0.0
      %1739 = vmatprep.subr.mxu0 0.0
      %1740 = vmatpush1.msra.mxu0 0.0
      %1741 = vmatprep.subr.mxu0 0.0
      %1742 = vmatpush1.msra.mxu0 0.0
      %1743 = vmatprep.subr.mxu0 0.0
      %1744 = vmatpush1.msra.mxu0 0.0
      %1745 = vmatprep.subr.mxu0 0.0
      %1746 = vmatpush1.msra.mxu0 0.0
      %1747 = vmatprep.subr.mxu0 0.0
      %1748 = vmatpush1.msra.mxu0 0.0
      %1749 = vmatprep.subr.mxu0 0.0
      %1750 = vmatpush1.msra.mxu0 0.0
      %1751 = vmatprep.subr.mxu0 0.0
      %1752 = vmatpush1.msra.mxu0 0.0
      %1753 = vmatprep.subr.mxu0 0.0
      %1754 = vmatpush1.msra.mxu0 0.0
      %1755 = vmatprep.subr.mxu0 0.0
      %1756 = vmatpush1.msra.mxu0 0.0
      %1757 = vmatprep.subr.mxu0 0.0
      %1758 = vmatpush1.msra.mxu0 0.0
      %1759 = vmatprep.subr.mxu0 0.0
      %1760 = vmatpush1.msra.mxu0 0.0
      %1761 = vmatprep.subr.mxu0 0.0
      %1762 = vmatpush1.msra.mxu0 0.0
      %1763 = vmatprep.subr.mxu0 0.0
      %1764 = vmatpush1.msra.mxu0 0.0
      %1765 = vmatprep.subr.mxu0 0.0
      %1766 = vmatpush1.msra.mxu0 0.0
      %1767 = vmatprep.subr.mxu0 0.0
      %1768 = vmatpush1.msra.mxu0 0.0
      %1769 = vmatprep.subr.mxu0 0.0
      %1770 = vmatpush1.msra.mxu0 0.0
      %1771 = vmatprep.subr.mxu0 0.0
      %1772 = vmatpush1.msra.mxu0 0.0
      %1773 = vmatprep.subr.mxu0 0.0
      %1774 = vmatpush1.msra.mxu0 0.0
      %1775 = vmatprep.subr.mxu0 0.0
      %1776 = vmatpush1.msra.mxu0 0.0
      %1777 = vmatprep.subr.mxu0 0.0
      %1778 = vmatpush1.msra.mxu0 0.0
      %1779 = vmatprep.subr.mxu0 0.0
      %1780 = vmatpush1.msra.mxu0 0.0
      %1781 = vmatprep.mubr.f32.mxu0 0.0
      %1782 = vmatmul.mubr.f32.gmra.mrb[0].mxu0 %v1635
      %v1783 = vpop.f32.mrb[0].mxu0
      %v1784 = vadd.f32 0.0, %v1783
      %v1785 = vpop.f32.mrb[0].mxu0
      %v1786 = vadd.f32 0.0, %v1785
      %1787 = vmatprep.mubr.f32.mxu0 0.0
      %1788 = vmatmul.mubr.f32.gmra.mrb[0].mxu0 %v1638
      %v1789 = vpop.f32.mrb[0].mxu0
      %v1790 = vadd.f32 0.0, %v1789
      %v1791 = vpop.f32.mrb[0].mxu0
      %v1792 = vadd.f32 0.0, %v1791
      %1793 = vdwg.mxu0
      %1794 = vmatprep.subr.mxu0 %v303
      %1795 = vmatpush1.msra.mxu0 %v301
      %1796 = vmatprep.subr.mxu0 0.0
      %1797 = vmatpush1.msra.mxu0 0.0
      %1798 = vmatprep.subr.mxu0 0.0
      %1799 = vmatpush1.msra.mxu0 0.0
      %1800 = vmatprep.subr.mxu0 0.0
      %1801 = vmatpush1.msra.mxu0 0.0
      %1802 = vmatprep.subr.mxu0 0.0
      %1803 = vmatpush1.msra.mxu0 0.0
      %1804 = vmatprep.subr.mxu0 0.0
      %1805 = vmatpush1.msra.mxu0 0.0
      %1806 = vmatprep.subr.mxu0 0.0
      %1807 = vmatpush1.msra.mxu0 0.0
      %1808 = vmatprep.subr.mxu0 0.0
      %1809 = vmatpush1.msra.mxu0 0.0
      %1810 = vmatprep.subr.mxu0 0.0
      %1811 = vmatpush1.msra.mxu0 0.0
      %1812 = vmatprep.subr.mxu0 0.0
      %1813 = vmatpush1.msra.mxu0 0.0
      %1814 = vmatprep.subr.mxu0 0.0
      %1815 = vmatpush1.msra.mxu0 0.0
      %1816 = vmatprep.subr.mxu0 0.0
      %1817 = vmatpush1.msra.mxu0 0.0
      %1818 = vmatprep.subr.mxu0 0.0
      %1819 = vmatpush1.msra.mxu0 0.0
      %1820 = vmatprep.subr.mxu0 0.0
      %1821 = vmatpush1.msra.mxu0 0.0
      %1822 = vmatprep.subr.mxu0 0.0
      %1823 = vmatpush1.msra.mxu0 0.0
      %1824 = vmatprep.subr.mxu0 0.0
      %1825 = vmatpush1.msra.mxu0 0.0
      %1826 = vmatprep.subr.mxu0 0.0
      %1827 = vmatpush1.msra.mxu0 0.0
      %1828 = vmatprep.subr.mxu0 0.0
      %1829 = vmatpush1.msra.mxu0 0.0
      %1830 = vmatprep.subr.mxu0 0.0
      %1831 = vmatpush1.msra.mxu0 0.0
      %1832 = vmatprep.subr.mxu0 0.0
      %1833 = vmatpush1.msra.mxu0 0.0
      %1834 = vmatprep.subr.mxu0 0.0
      %1835 = vmatpush1.msra.mxu0 0.0
      %1836 = vmatprep.subr.mxu0 0.0
      %1837 = vmatpush1.msra.mxu0 0.0
      %1838 = vmatprep.subr.mxu0 0.0
      %1839 = vmatpush1.msra.mxu0 0.0
      %1840 = vmatprep.subr.mxu0 0.0
      %1841 = vmatpush1.msra.mxu0 0.0
      %1842 = vmatprep.subr.mxu0 0.0
      %1843 = vmatpush1.msra.mxu0 0.0
      %1844 = vmatprep.subr.mxu0 0.0
      %1845 = vmatpush1.msra.mxu0 0.0
      %1846 = vmatprep.subr.mxu0 0.0
      %1847 = vmatpush1.msra.mxu0 0.0
      %1848 = vmatprep.subr.mxu0 0.0
      %1849 = vmatpush1.msra.mxu0 0.0
      %1850 = vmatprep.subr.mxu0 0.0
      %1851 = vmatpush1.msra.mxu0 0.0
      %1852 = vmatprep.subr.mxu0 0.0
      %1853 = vmatpush1.msra.mxu0 0.0
      %1854 = vmatprep.subr.mxu0 0.0
      %1855 = vmatpush1.msra.mxu0 0.0
      %1856 = vmatprep.subr.mxu0 0.0
      %1857 = vmatpush1.msra.mxu0 0.0
      %1858 = vmatprep.mubr.f32.mxu0 0.0
      %1859 = vmatmul.mubr.f32.gmra.mrb[0].mxu0 %v1635
      %v1860 = vpop.f32.mrb[0].mxu0
      %v1861 = vadd.f32 0.0, %v1860
      %v1862 = vpop.f32.mrb[0].mxu0
      %v1863 = vadd.f32 0.0, %v1862
      %1864 = vmatprep.mubr.f32.mxu0 0.0
      %1865 = vmatmul.mubr.f32.gmra.mrb[0].mxu0 %v1638
      %v1866 = vpop.f32.mrb[0].mxu0
      %v1867 = vadd.f32 0.0, %v1866
      %v1868 = vpop.f32.mrb[0].mxu0
      %v1869 = vadd.f32 0.0, %v1868
      %1870 = vdwg.mxu0
      %1871 = vmatprep.subr.mxu0 %v307
      %1872 = vmatpush1.msra.mxu0 %v305
      %1873 = vmatprep.subr.mxu0 0.0
      %1874 = vmatpush1.msra.mxu0 0.0
      %1875 = vmatprep.subr.mxu0 0.0
      %1876 = vmatpush1.msra.mxu0 0.0
      %1877 = vmatprep.subr.mxu0 0.0
      %1878 = vmatpush1.msra.mxu0 0.0
      %1879 = vmatprep.subr.mxu0 0.0
      %1880 = vmatpush1.msra.mxu0 0.0
      %1881 = vmatprep.subr.mxu0 0.0
      %1882 = vmatpush1.msra.mxu0 0.0
      %1883 = vmatprep.subr.mxu0 0.0
      %1884 = vmatpush1.msra.mxu0 0.0
      %1885 = vmatprep.subr.mxu0 0.0
      %1886 = vmatpush1.msra.mxu0 0.0
      %1887 = vmatprep.subr.mxu0 0.0
      %1888 = vmatpush1.msra.mxu0 0.0
      %1889 = vmatprep.subr.mxu0 0.0
      %1890 = vmatpush1.msra.mxu0 0.0
      %1891 = vmatprep.subr.mxu0 0.0
      %1892 = vmatpush1.msra.mxu0 0.0
      %1893 = vmatprep.subr.mxu0 0.0
      %1894 = vmatpush1.msra.mxu0 0.0
      %1895 = vmatprep.subr.mxu0 0.0
      %1896 = vmatpush1.msra.mxu0 0.0
      %1897 = vmatprep.subr.mxu0 0.0
      %1898 = vmatpush1.msra.mxu0 0.0
      %1899 = vmatprep.subr.mxu0 0.0
      %1900 = vmatpush1.msra.mxu0 0.0
      %1901 = vmatprep.subr.mxu0 0.0
      %1902 = vmatpush1.msra.mxu0 0.0
      %1903 = vmatprep.subr.mxu0 0.0
      %1904 = vmatpush1.msra.mxu0 0.0
      %1905 = vmatprep.subr.mxu0 0.0
      %1906 = vmatpush1.msra.mxu0 0.0
      %1907 = vmatprep.subr.mxu0 0.0
      %1908 = vmatpush1.msra.mxu0 0.0
      %1909 = vmatprep.subr.mxu0 0.0
      %1910 = vmatpush1.msra.mxu0 0.0
      %1911 = vmatprep.subr.mxu0 0.0
      %1912 = vmatpush1.msra.mxu0 0.0
      %1913 = vmatprep.subr.mxu0 0.0
      %1914 = vmatpush1.msra.mxu0 0.0
      %1915 = vmatprep.subr.mxu0 0.0
      %1916 = vmatpush1.msra.mxu0 0.0
      %1917 = vmatprep.subr.mxu0 0.0
      %1918 = vmatpush1.msra.mxu0 0.0
      %1919 = vmatprep.subr.mxu0 0.0
      %1920 = vmatpush1.msra.mxu0 0.0
      %1921 = vmatprep.subr.mxu0 0.0
      %1922 = vmatpush1.msra.mxu0 0.0
      %1923 = vmatprep.subr.mxu0 0.0
      %1924 = vmatpush1.msra.mxu0 0.0
      %1925 = vmatprep.subr.mxu0 0.0
      %1926 = vmatpush1.msra.mxu0 0.0
      %1927 = vmatprep.subr.mxu0 0.0
      %1928 = vmatpush1.msra.mxu0 0.0
      %1929 = vmatprep.subr.mxu0 0.0
      %1930 = vmatpush1.msra.mxu0 0.0
      %1931 = vmatprep.subr.mxu0 0.0
      %1932 = vmatpush1.msra.mxu0 0.0
      %1933 = vmatprep.subr.mxu0 0.0
      %1934 = vmatpush1.msra.mxu0 0.0
      %1935 = vmatprep.mubr.f32.mxu0 0.0
      %1936 = vmatmul.mubr.f32.gmra.mrb[0].mxu0 %v1635
      %v1937 = vpop.f32.mrb[0].mxu0
      %v1938 = vadd.f32 0.0, %v1937
      %v1939 = vpop.f32.mrb[0].mxu0
      %v1940 = vadd.f32 0.0, %v1939
      %1941 = vmatprep.mubr.f32.mxu0 0.0
      %1942 = vmatmul.mubr.f32.gmra.mrb[0].mxu0 %v1638
      %v1943 = vpop.f32.mrb[0].mxu0
      %v1944 = vadd.f32 0.0, %v1943
      %v1945 = vpop.f32.mrb[0].mxu0
      %v1946 = vadd.f32 0.0, %v1945
      %1947 = vdwg.mxu0
      %1948 = vmatprep.subr.mxu0 %v311
      %1949 = vmatpush1.msra.mxu0 %v309
      %1950 = vmatprep.subr.mxu0 0.0
      %1951 = vmatpush1.msra.mxu0 0.0
      %1952 = vmatprep.subr.mxu0 0.0
      %1953 = vmatpush1.msra.mxu0 0.0
      %1954 = vmatprep.subr.mxu0 0.0
      %1955 = vmatpush1.msra.mxu0 0.0
      %1956 = vmatprep.subr.mxu0 0.0
      %1957 = vmatpush1.msra.mxu0 0.0
      %1958 = vmatprep.subr.mxu0 0.0
      %1959 = vmatpush1.msra.mxu0 0.0
      %1960 = vmatprep.subr.mxu0 0.0
      %1961 = vmatpush1.msra.mxu0 0.0
      %1962 = vmatprep.subr.mxu0 0.0
      %1963 = vmatpush1.msra.mxu0 0.0
      %1964 = vmatprep.subr.mxu0 0.0
      %1965 = vmatpush1.msra.mxu0 0.0
      %1966 = vmatprep.subr.mxu0 0.0
      %1967 = vmatpush1.msra.mxu0 0.0
      %1968 = vmatprep.subr.mxu0 0.0
      %1969 = vmatpush1.msra.mxu0 0.0
      %1970 = vmatprep.subr.mxu0 0.0
      %1971 = vmatpush1.msra.mxu0 0.0
      %1972 = vmatprep.subr.mxu0 0.0
      %1973 = vmatpush1.msra.mxu0 0.0
      %1974 = vmatprep.subr.mxu0 0.0
      %1975 = vmatpush1.msra.mxu0 0.0
      %1976 = vmatprep.subr.mxu0 0.0
      %1977 = vmatpush1.msra.mxu0 0.0
      %1978 = vmatprep.subr.mxu0 0.0
      %1979 = vmatpush1.msra.mxu0 0.0
      %1980 = vmatprep.subr.mxu0 0.0
      %1981 = vmatpush1.msra.mxu0 0.0
      %1982 = vmatprep.subr.mxu0 0.0
      %1983 = vmatpush1.msra.mxu0 0.0
      %1984 = vmatprep.subr.mxu0 0.0
      %1985 = vmatpush1.msra.mxu0 0.0
      %1986 = vmatprep.subr.mxu0 0.0
      %1987 = vmatpush1.msra.mxu0 0.0
      %1988 = vmatprep.subr.mxu0 0.0
      %1989 = vmatpush1.msra.mxu0 0.0
      %1990 = vmatprep.subr.mxu0 0.0
      %1991 = vmatpush1.msra.mxu0 0.0
      %1992 = vmatprep.subr.mxu0 0.0
      %1993 = vmatpush1.msra.mxu0 0.0
      %1994 = vmatprep.subr.mxu0 0.0
      %1995 = vmatpush1.msra.mxu0 0.0
      %1996 = vmatprep.subr.mxu0 0.0
      %1997 = vmatpush1.msra.mxu0 0.0
      %1998 = vmatprep.subr.mxu0 0.0
      %1999 = vmatpush1.msra.mxu0 0.0
      %2000 = vmatprep.subr.mxu0 0.0
      %2001 = vmatpush1.msra.mxu0 0.0
      %2002 = vmatprep.subr.mxu0 0.0
      %2003 = vmatpush1.msra.mxu0 0.0
      %2004 = vmatprep.subr.mxu0 0.0
      %2005 = vmatpush1.msra.mxu0 0.0
      %2006 = vmatprep.subr.mxu0 0.0
      %2007 = vmatpush1.msra.mxu0 0.0
      %2008 = vmatprep.subr.mxu0 0.0
      %2009 = vmatpush1.msra.mxu0 0.0
      %2010 = vmatprep.subr.mxu0 0.0
      %2011 = vmatpush1.msra.mxu0 0.0
      %2012 = vmatprep.mubr.f32.mxu0 0.0
      %2013 = vmatmul.mubr.f32.gmra.mrb[0].mxu0 %v1635
      %v2014 = vpop.f32.mrb[0].mxu0
      %v2015 = vadd.f32 0.0, %v2014
      %v2016 = vpop.f32.mrb[0].mxu0
      %v2017 = vadd.f32 0.0, %v2016
      %2018 = vmatprep.mubr.f32.mxu0 0.0
      %2019 = vmatmul.mubr.f32.gmra.mrb[0].mxu0 %v1638
      %v2020 = vpop.f32.mrb[0].mxu0
      %v2021 = vadd.f32 0.0, %v2020
      %v2022 = vpop.f32.mrb[0].mxu0
      %v2023 = vadd.f32 0.0, %v2022
      %2024 = vdwg.mxu0
      %2025 = vmatprep.subr.mxu0 %v315
      %2026 = vmatpush1.msra.mxu0 %v313
      %2027 = vmatprep.subr.mxu0 0.0
      %2028 = vmatpush1.msra.mxu0 0.0
      %2029 = vmatprep.subr.mxu0 0.0
      %2030 = vmatpush1.msra.mxu0 0.0
      %2031 = vmatprep.subr.mxu0 0.0
      %2032 = vmatpush1.msra.mxu0 0.0
      %2033 = vmatprep.subr.mxu0 0.0
      %2034 = vmatpush1.msra.mxu0 0.0
      %2035 = vmatprep.subr.mxu0 0.0
      %2036 = vmatpush1.msra.mxu0 0.0
      %2037 = vmatprep.subr.mxu0 0.0
      %2038 = vmatpush1.msra.mxu0 0.0
      %2039 = vmatprep.subr.mxu0 0.0
      %2040 = vmatpush1.msra.mxu0 0.0
      %2041 = vmatprep.subr.mxu0 0.0
      %2042 = vmatpush1.msra.mxu0 0.0
      %2043 = vmatprep.subr.mxu0 0.0
      %2044 = vmatpush1.msra.mxu0 0.0
      %2045 = vmatprep.subr.mxu0 0.0
      %2046 = vmatpush1.msra.mxu0 0.0
      %2047 = vmatprep.subr.mxu0 0.0
      %2048 = vmatpush1.msra.mxu0 0.0
      %2049 = vmatprep.subr.mxu0 0.0
      %2050 = vmatpush1.msra.mxu0 0.0
      %2051 = vmatprep.subr.mxu0 0.0
      %2052 = vmatpush1.msra.mxu0 0.0
      %2053 = vmatprep.subr.mxu0 0.0
      %2054 = vmatpush1.msra.mxu0 0.0
      %2055 = vmatprep.subr.mxu0 0.0
      %2056 = vmatpush1.msra.mxu0 0.0
      %2057 = vmatprep.subr.mxu0 0.0
      %2058 = vmatpush1.msra.mxu0 0.0
      %2059 = vmatprep.subr.mxu0 0.0
      %2060 = vmatpush1.msra.mxu0 0.0
      %2061 = vmatprep.subr.mxu0 0.0
      %2062 = vmatpush1.msra.mxu0 0.0
      %2063 = vmatprep.subr.mxu0 0.0
      %2064 = vmatpush1.msra.mxu0 0.0
      %2065 = vmatprep.subr.mxu0 0.0
      %2066 = vmatpush1.msra.mxu0 0.0
      %2067 = vmatprep.subr.mxu0 0.0
      %2068 = vmatpush1.msra.mxu0 0.0
      %2069 = vmatprep.subr.mxu0 0.0
      %2070 = vmatpush1.msra.mxu0 0.0
      %2071 = vmatprep.subr.mxu0 0.0
      %2072 = vmatpush1.msra.mxu0 0.0
      %2073 = vmatprep.subr.mxu0 0.0
      %2074 = vmatpush1.msra.mxu0 0.0
      %2075 = vmatprep.subr.mxu0 0.0
      %2076 = vmatpush1.msra.mxu0 0.0
      %2077 = vmatprep.subr.mxu0 0.0
      %2078 = vmatpush1.msra.mxu0 0.0
      %2079 = vmatprep.subr.mxu0 0.0
      %2080 = vmatpush1.msra.mxu0 0.0
      %2081 = vmatprep.subr.mxu0 0.0
      %2082 = vmatpush1.msra.mxu0 0.0
      %2083 = vmatprep.subr.mxu0 0.0
      %2084 = vmatpush1.msra.mxu0 0.0
      %2085 = vmatprep.subr.mxu0 0.0
      %2086 = vmatpush1.msra.mxu0 0.0
      %2087 = vmatprep.subr.mxu0 0.0
      %2088 = vmatpush1.msra.mxu0 0.0
      %2089 = vmatprep.mubr.f32.mxu0 0.0
      %2090 = vmatmul.mubr.f32.gmra.mrb[0].mxu0 %v1635
      %v2091 = vpop.f32.mrb[0].mxu0
      %v2092 = vadd.f32 0.0, %v2091
      %v2093 = vpop.f32.mrb[0].mxu0
      %v2094 = vadd.f32 0.0, %v2093
      %2095 = vmatprep.mubr.f32.mxu0 0.0
      %2096 = vmatmul.mubr.f32.gmra.mrb[0].mxu0 %v1638
      %v2097 = vpop.f32.mrb[0].mxu0
      %v2098 = vadd.f32 0.0, %v2097
      %v2099 = vpop.f32.mrb[0].mxu0
      %v2100 = vadd.f32 0.0, %v2099
      %2101 = vdwg.mxu0
      %2102 = vmatprep.subr.mxu0 %v319
      %2103 = vmatpush1.msra.mxu0 %v317
      %2104 = vmatprep.subr.mxu0 0.0
      %2105 = vmatpush1.msra.mxu0 0.0
      %2106 = vmatprep.subr.mxu0 0.0
      %2107 = vmatpush1.msra.mxu0 0.0
      %2108 = vmatprep.subr.mxu0 0.0
      %2109 = vmatpush1.msra.mxu0 0.0
      %2110 = vmatprep.subr.mxu0 0.0
      %2111 = vmatpush1.msra.mxu0 0.0
      %2112 = vmatprep.subr.mxu0 0.0
      %2113 = vmatpush1.msra.mxu0 0.0
      %2114 = vmatprep.subr.mxu0 0.0
      %2115 = vmatpush1.msra.mxu0 0.0
      %2116 = vmatprep.subr.mxu0 0.0
      %2117 = vmatpush1.msra.mxu0 0.0
      %2118 = vmatprep.subr.mxu0 0.0
      %2119 = vmatpush1.msra.mxu0 0.0
      %2120 = vmatprep.subr.mxu0 0.0
      %2121 = vmatpush1.msra.mxu0 0.0
      %2122 = vmatprep.subr.mxu0 0.0
      %2123 = vmatpush1.msra.mxu0 0.0
      %2124 = vmatprep.subr.mxu0 0.0
      %2125 = vmatpush1.msra.mxu0 0.0
      %2126 = vmatprep.subr.mxu0 0.0
      %2127 = vmatpush1.msra.mxu0 0.0
      %2128 = vmatprep.subr.mxu0 0.0
      %2129 = vmatpush1.msra.mxu0 0.0
      %2130 = vmatprep.subr.mxu0 0.0
      %2131 = vmatpush1.msra.mxu0 0.0
      %2132 = vmatprep.subr.mxu0 0.0
      %2133 = vmatpush1.msra.mxu0 0.0
      %2134 = vmatprep.subr.mxu0 0.0
      %2135 = vmatpush1.msra.mxu0 0.0
      %2136 = vmatprep.subr.mxu0 0.0
      %2137 = vmatpush1.msra.mxu0 0.0
      %2138 = vmatprep.subr.mxu0 0.0
      %2139 = vmatpush1.msra.mxu0 0.0
      %2140 = vmatprep.subr.mxu0 0.0
      %2141 = vmatpush1.msra.mxu0 0.0
      %2142 = vmatprep.subr.mxu0 0.0
      %2143 = vmatpush1.msra.mxu0 0.0
      %2144 = vmatprep.subr.mxu0 0.0
      %2145 = vmatpush1.msra.mxu0 0.0
      %2146 = vmatprep.subr.mxu0 0.0
      %2147 = vmatpush1.msra.mxu0 0.0
      %2148 = vmatprep.subr.mxu0 0.0
      %2149 = vmatpush1.msra.mxu0 0.0
      %2150 = vmatprep.subr.mxu0 0.0
      %2151 = vmatpush1.msra.mxu0 0.0
      %2152 = vmatprep.subr.mxu0 0.0
      %2153 = vmatpush1.msra.mxu0 0.0
      %2154 = vmatprep.subr.mxu0 0.0
      %2155 = vmatpush1.msra.mxu0 0.0
      %2156 = vmatprep.subr.mxu0 0.0
      %2157 = vmatpush1.msra.mxu0 0.0
      %2158 = vmatprep.subr.mxu0 0.0
      %2159 = vmatpush1.msra.mxu0 0.0
      %2160 = vmatprep.subr.mxu0 0.0
      %2161 = vmatpush1.msra.mxu0 0.0
      %2162 = vmatprep.subr.mxu0 0.0
      %2163 = vmatpush1.msra.mxu0 0.0
      %2164 = vmatprep.subr.mxu0 0.0
      %2165 = vmatpush1.msra.mxu0 0.0
      %2166 = vmatprep.mubr.f32.mxu0 0.0
      %2167 = vmatmul.mubr.f32.gmra.mrb[0].mxu0 %v1635
      %v2168 = vpop.f32.mrb[0].mxu0
      %v2169 = vadd.f32 0.0, %v2168
      %v2170 = vpop.f32.mrb[0].mxu0
      %v2171 = vadd.f32 0.0, %v2170
      %2172 = vmatprep.mubr.f32.mxu0 0.0
      %2173 = vmatmul.mubr.f32.gmra.mrb[0].mxu0 %v1638
      %v2174 = vpop.f32.mrb[0].mxu0
      %v2175 = vadd.f32 0.0, %v2174
      %v2176 = vpop.f32.mrb[0].mxu0
      %v2177 = vadd.f32 0.0, %v2176
      %2178 = vdwg.mxu0
      %2179 = vmatprep.subr.mxu0 %v323
      %2180 = vmatpush1.msra.mxu0 %v321
      %2181 = vmatprep.subr.mxu0 0.0
      %2182 = vmatpush1.msra.mxu0 0.0
      %2183 = vmatprep.subr.mxu0 0.0
      %2184 = vmatpush1.msra.mxu0 0.0
      %2185 = vmatprep.subr.mxu0 0.0
      %2186 = vmatpush1.msra.mxu0 0.0
      %2187 = vmatprep.subr.mxu0 0.0
      %2188 = vmatpush1.msra.mxu0 0.0
      %2189 = vmatprep.subr.mxu0 0.0
      %2190 = vmatpush1.msra.mxu0 0.0
      %2191 = vmatprep.subr.mxu0 0.0
      %2192 = vmatpush1.msra.mxu0 0.0
      %2193 = vmatprep.subr.mxu0 0.0
      %2194 = vmatpush1.msra.mxu0 0.0
      %2195 = vmatprep.subr.mxu0 0.0
      %2196 = vmatpush1.msra.mxu0 0.0
      %2197 = vmatprep.subr.mxu0 0.0
      %2198 = vmatpush1.msra.mxu0 0.0
      %2199 = vmatprep.subr.mxu0 0.0
      %2200 = vmatpush1.msra.mxu0 0.0
      %2201 = vmatprep.subr.mxu0 0.0
      %2202 = vmatpush1.msra.mxu0 0.0
      %2203 = vmatprep.subr.mxu0 0.0
      %2204 = vmatpush1.msra.mxu0 0.0
      %2205 = vmatprep.subr.mxu0 0.0
      %2206 = vmatpush1.msra.mxu0 0.0
      %2207 = vmatprep.subr.mxu0 0.0
      %2208 = vmatpush1.msra.mxu0 0.0
      %2209 = vmatprep.subr.mxu0 0.0
      %2210 = vmatpush1.msra.mxu0 0.0
      %2211 = vmatprep.subr.mxu0 0.0
      %2212 = vmatpush1.msra.mxu0 0.0
      %2213 = vmatprep.subr.mxu0 0.0
      %2214 = vmatpush1.msra.mxu0 0.0
      %2215 = vmatprep.subr.mxu0 0.0
      %2216 = vmatpush1.msra.mxu0 0.0
      %2217 = vmatprep.subr.mxu0 0.0
      %2218 = vmatpush1.msra.mxu0 0.0
      %2219 = vmatprep.subr.mxu0 0.0
      %2220 = vmatpush1.msra.mxu0 0.0
      %2221 = vmatprep.subr.mxu0 0.0
      %2222 = vmatpush1.msra.mxu0 0.0
      %2223 = vmatprep.subr.mxu0 0.0
      %2224 = vmatpush1.msra.mxu0 0.0
      %2225 = vmatprep.subr.mxu0 0.0
      %2226 = vmatpush1.msra.mxu0 0.0
      %2227 = vmatprep.subr.mxu0 0.0
      %2228 = vmatpush1.msra.mxu0 0.0
      %2229 = vmatprep.subr.mxu0 0.0
      %2230 = vmatpush1.msra.mxu0 0.0
      %2231 = vmatprep.subr.mxu0 0.0
      %2232 = vmatpush1.msra.mxu0 0.0
      %2233 = vmatprep.subr.mxu0 0.0
      %2234 = vmatpush1.msra.mxu0 0.0
      %2235 = vmatprep.subr.mxu0 0.0
      %2236 = vmatpush1.msra.mxu0 0.0
      %2237 = vmatprep.subr.mxu0 0.0
      %2238 = vmatpush1.msra.mxu0 0.0
      %2239 = vmatprep.subr.mxu0 0.0
      %2240 = vmatpush1.msra.mxu0 0.0
      %2241 = vmatprep.subr.mxu0 0.0
      %2242 = vmatpush1.msra.mxu0 0.0
      %2243 = vmatprep.mubr.f32.mxu0 0.0
      %2244 = vmatmul.mubr.f32.gmra.mrb[0].mxu0 %v1635
      %v2245 = vpop.f32.mrb[0].mxu0
      %v2246 = vadd.f32 0.0, %v2245
      %v2247 = vpop.f32.mrb[0].mxu0
      %v2248 = vadd.f32 0.0, %v2247
      %2249 = vmatprep.mubr.f32.mxu0 0.0
      %2250 = vmatmul.mubr.f32.gmra.mrb[0].mxu0 %v1638
      %v2251 = vpop.f32.mrb[0].mxu0
      %v2252 = vadd.f32 0.0, %v2251
      %v2253 = vpop.f32.mrb[0].mxu0
      %v2254 = vadd.f32 0.0, %v2253
      %2255 = vdwg.mxu0
      %v2256 = vld [vmem:[%s943] sm:$0xff]
      %v2257 = vld [vmem:[%s943 + $0x8] sm:$0xff]
      %v2258 = vld [vmem:[%s943 + $0x10] sm:$0xff]
      %v2259 = vld [vmem:[%s943 + $0x18] sm:$0xff]
      %v2260 = vld [vmem:[%s943 + $0x20] sm:$0xff]
      %v2261 = vld [vmem:[%s943 + $0x28] sm:$0xff]
      %v2262 = vld [vmem:[%s943 + $0x30] sm:$0xff]
      %v2263 = vld [vmem:[%s943 + $0x38] sm:$0xff]
      %v2264 = vld [vmem:[%s943 + $0x40] sm:$0xff]
      %v2265 = vld [vmem:[%s943 + $0x48] sm:$0xff]
      %v2266 = vld [vmem:[%s943 + $0x50] sm:$0xff]
      %v2267 = vld [vmem:[%s943 + $0x58] sm:$0xff]
      %v2268 = vld [vmem:[%s943 + $0x60] sm:$0xff]
      %v2269 = vld [vmem:[%s943 + $0x68] sm:$0xff]
      %v2270 = vld [vmem:[%s943 + $0x70] sm:$0xff]
      %v2271 = vld [vmem:[%s943 + $0x78] sm:$0xff]
      %v2272 = vadd.f32 %v2256, %v1707
      %v2273 = vadd.f32 %v2257, %v1709
      %v2274 = vadd.f32 %v2258, %v1784
      %v2275 = vadd.f32 %v2259, %v1786
      %v2276 = vadd.f32 %v2260, %v1861
      %v2277 = vadd.f32 %v2261, %v1863
      %v2278 = vadd.f32 %v2262, %v1938
      %v2279 = vadd.f32 %v2263, %v1940
      %v2280 = vadd.f32 %v2264, %v2015
      %v2281 = vadd.f32 %v2265, %v2017
      %v2282 = vadd.f32 %v2266, %v2092
      %v2283 = vadd.f32 %v2267, %v2094
      %v2284 = vadd.f32 %v2268, %v2169
      %v2285 = vadd.f32 %v2269, %v2171
      %v2286 = vadd.f32 %v2270, %v2246
      %v2287 = vadd.f32 %v2271, %v2248
      %2288 = vst [vmem:[%s943] sm:$0xff] %v2272
      %2289 = vst [vmem:[%s943 + $0x8] sm:$0xff] %v2273
      %2290 = vst [vmem:[%s943 + $0x10] sm:$0xff] %v2274
      %2291 = vst [vmem:[%s943 + $0x18] sm:$0xff] %v2275
      %2292 = vst [vmem:[%s943 + $0x20] sm:$0xff] %v2276
      %2293 = vst [vmem:[%s943 + $0x28] sm:$0xff] %v2277
      %2294 = vst [vmem:[%s943 + $0x30] sm:$0xff] %v2278
      %2295 = vst [vmem:[%s943 + $0x38] sm:$0xff] %v2279
      %2296 = vst [vmem:[%s943 + $0x40] sm:$0xff] %v2280
      %2297 = vst [vmem:[%s943 + $0x48] sm:$0xff] %v2281
      %2298 = vst [vmem:[%s943 + $0x50] sm:$0xff] %v2282
      %2299 = vst [vmem:[%s943 + $0x58] sm:$0xff] %v2283
      %2300 = vst [vmem:[%s943 + $0x60] sm:$0xff] %v2284
      %2301 = vst [vmem:[%s943 + $0x68] sm:$0xff] %v2285
      %2302 = vst [vmem:[%s943 + $0x70] sm:$0xff] %v2286
      %2303 = vst [vmem:[%s943 + $0x78] sm:$0xff] %v2287
      %v2304 = vld [vmem:[%s960] sm:$0xff]
      %v2305 = vld [vmem:[%s960 + $0x8] sm:$0xff]
      %v2306 = vld [vmem:[%s960 + $0x10] sm:$0xff]
      %v2307 = vld [vmem:[%s960 + $0x18] sm:$0xff]
      %v2308 = vld [vmem:[%s960 + $0x20] sm:$0xff]
      %v2309 = vld [vmem:[%s960 + $0x28] sm:$0xff]
      %v2310 = vld [vmem:[%s960 + $0x30] sm:$0xff]
      %v2311 = vld [vmem:[%s960 + $0x38] sm:$0xff]
      %v2312 = vld [vmem:[%s960 + $0x40] sm:$0xff]
      %v2313 = vld [vmem:[%s960 + $0x48] sm:$0xff]
      %v2314 = vld [vmem:[%s960 + $0x50] sm:$0xff]
      %v2315 = vld [vmem:[%s960 + $0x58] sm:$0xff]
      %v2316 = vld [vmem:[%s960 + $0x60] sm:$0xff]
      %v2317 = vld [vmem:[%s960 + $0x68] sm:$0xff]
      %v2318 = vld [vmem:[%s960 + $0x70] sm:$0xff]
      %v2319 = vld [vmem:[%s960 + $0x78] sm:$0xff]
      %v2320 = vadd.f32 %v2304, %v1713
      %v2321 = vadd.f32 %v2305, %v1715
      %v2322 = vadd.f32 %v2306, %v1790
      %v2323 = vadd.f32 %v2307, %v1792
      %v2324 = vadd.f32 %v2308, %v1867
      %v2325 = vadd.f32 %v2309, %v1869
      %v2326 = vadd.f32 %v2310, %v1944
      %v2327 = vadd.f32 %v2311, %v1946
      %v2328 = vadd.f32 %v2312, %v2021
      %v2329 = vadd.f32 %v2313, %v2023
      %v2330 = vadd.f32 %v2314, %v2098
      %v2331 = vadd.f32 %v2315, %v2100
      %v2332 = vadd.f32 %v2316, %v2175
      %v2333 = vadd.f32 %v2317, %v2177
      %v2334 = vadd.f32 %v2318, %v2252
      %v2335 = vadd.f32 %v2319, %v2254
      %2336 = vst [vmem:[%s960] sm:$0xff] %v2320
      %2337 = vst [vmem:[%s960 + $0x8] sm:$0xff] %v2321
      %2338 = vst [vmem:[%s960 + $0x10] sm:$0xff] %v2322
      %2339 = vst [vmem:[%s960 + $0x18] sm:$0xff] %v2323
      %2340 = vst [vmem:[%s960 + $0x20] sm:$0xff] %v2324
      %2341 = vst [vmem:[%s960 + $0x28] sm:$0xff] %v2325
      %2342 = vst [vmem:[%s960 + $0x30] sm:$0xff] %v2326
      %2343 = vst [vmem:[%s960 + $0x38] sm:$0xff] %v2327
      %2344 = vst [vmem:[%s960 + $0x40] sm:$0xff] %v2328
      %2345 = vst [vmem:[%s960 + $0x48] sm:$0xff] %v2329
      %2346 = vst [vmem:[%s960 + $0x50] sm:$0xff] %v2330
      %2347 = vst [vmem:[%s960 + $0x58] sm:$0xff] %v2331
      %2348 = vst [vmem:[%s960 + $0x60] sm:$0xff] %v2332
      %2349 = vst [vmem:[%s960 + $0x68] sm:$0xff] %v2333
      %2350 = vst [vmem:[%s960 + $0x70] sm:$0xff] %v2334
      %2351 = vst [vmem:[%s960 + $0x78] sm:$0xff] %v2335
      %v2352 = vld [vmem:[%s246] sm:$0xff]
      %v2353 = vld [vmem:[%s246 + $0x8] sm:$0xff]
      %v2354 = vld [vmem:[%s246 + $0x10] sm:$0xff]
      %v2355 = vld [vmem:[%s246 + $0x18] sm:$0xff]
      %v2356 = vld [vmem:[%s246 + $0x20] sm:$0xff]
      %v2357 = vld [vmem:[%s246 + $0x28] sm:$0xff]
      %v2358 = vld [vmem:[%s246 + $0x30] sm:$0xff]
      %v2359 = vld [vmem:[%s246 + $0x38] sm:$0xff]
      %v2360 = vld [vmem:[%s246 + $0x40] sm:$0xff]
      %v2370 = vcombine.high %v2352, %v2352
      %v2371 = vcombine.high %v2353, %v2353
      %v2372 = vcombine.high %v2354, %v2354
      %v2373 = vcombine.high %v2355, %v2355
      %v2374 = vcombine.high %v2356, %v2356
      %v2375 = vcombine.high %v2357, %v2357
      %v2376 = vcombine.high %v2358, %v2358
      %v2377 = vcombine.high %v2359, %v2359
      %v2378 = vcombine.high %v2360, %v2360
      %2379 = vrot.lane.b32.xlu0 %v2370, 127
      %v2380 = vpop.permute.xlu0 %2379
      %2381 = vrot.lane.b32.xlu0 %v2353, 127
      %v2382 = vpop.permute.xlu0 %2381
      %2383 = vrot.lane.b32.xlu0 %v2371, 127
      %v2384 = vpop.permute.xlu0 %2383
      %2385 = vrot.lane.b32.xlu0 %v2354, 127
      %v2386 = vpop.permute.xlu0 %2385
      %2387 = vrot.lane.b32.xlu0 %v2372, 127
      %v2388 = vpop.permute.xlu0 %2387
      %2389 = vrot.lane.b32.xlu0 %v2355, 127
      %v2390 = vpop.permute.xlu0 %2389
      %2391 = vrot.lane.b32.xlu0 %v2373, 127
      %v2392 = vpop.permute.xlu0 %2391
      %2393 = vrot.lane.b32.xlu0 %v2356, 127
      %v2394 = vpop.permute.xlu0 %2393
      %2395 = vrot.lane.b32.xlu0 %v2374, 127
      %v2396 = vpop.permute.xlu0 %2395
      %2397 = vrot.lane.b32.xlu0 %v2357, 127
      %v2398 = vpop.permute.xlu0 %2397
      %2399 = vrot.lane.b32.xlu0 %v2375, 127
      %v2400 = vpop.permute.xlu0 %2399
      %2401 = vrot.lane.b32.xlu0 %v2358, 127
      %v2402 = vpop.permute.xlu0 %2401
      %2403 = vrot.lane.b32.xlu0 %v2376, 127
      %v2404 = vpop.permute.xlu0 %2403
      %2405 = vrot.lane.b32.xlu0 %v2359, 127
      %v2406 = vpop.permute.xlu0 %2405
      %2407 = vrot.lane.b32.xlu0 %v2377, 127
      %v2408 = vpop.permute.xlu0 %2407
      %2409 = vrot.lane.b32.xlu0 %v2360, 127
      %v2410 = vpop.permute.xlu0 %2409
      %2411 = vrot.lane.b32.xlu0 %v2378, 127
      %v2412 = vpop.permute.xlu0 %2411
      %vm2413 = vcmask 1039360
      %v2414 = vsel %vm2413, %v2380, %v2382
      %v2415 = vsel %vm2413, %v2382, %v2384
      %v2416 = vsel %vm2413, %v2384, %v2386
      %v2417 = vsel %vm2413, %v2386, %v2388
      %v2418 = vsel %vm2413, %v2388, %v2390
      %v2419 = vsel %vm2413, %v2390, %v2392
      %v2420 = vsel %vm2413, %v2392, %v2394
      %v2421 = vsel %vm2413, %v2394, %v2396
      %v2422 = vsel %vm2413, %v2396, %v2398
      %v2423 = vsel %vm2413, %v2398, %v2400
      %v2424 = vsel %vm2413, %v2400, %v2402
      %v2425 = vsel %vm2413, %v2402, %v2404
      %v2426 = vsel %vm2413, %v2404, %v2406
      %v2427 = vsel %vm2413, %v2406, %v2408
      %v2428 = vsel %vm2413, %v2408, %v2410
      %v2429 = vsel %vm2413, %v2410, %v2412
      %v2431 = vsel %vm287, %v258, 0
      %v2433 = vsel %vm294, %v2414, 0
      %v2435 = vsel %vm294, %v2415, 0
      %v2437 = vsel %vm294, %v2416, 0
      %v2439 = vsel %vm294, %v2417, 0
      %v2441 = vsel %vm294, %v2418, 0
      %v2443 = vsel %vm294, %v2419, 0
      %v2445 = vsel %vm294, %v2420, 0
      %v2447 = vsel %vm294, %v2421, 0
      %v2449 = vsel %vm294, %v2422, 0
      %v2451 = vsel %vm294, %v2423, 0
      %v2453 = vsel %vm294, %v2424, 0
      %v2455 = vsel %vm294, %v2425, 0
      %v2457 = vsel %vm294, %v2426, 0
      %v2459 = vsel %vm294, %v2427, 0
      %v2461 = vsel %vm294, %v2428, 0
      %v2463 = vsel %vm294, %v2429, 0
      %2465 = vmatprep.subr.mxu0 %v2435
      %2466 = vmatpush1.msra.mxu0 %v2433
      %2467 = vmatprep.subr.mxu0 0.0
      %2468 = vmatpush1.msra.mxu0 0.0
      %2469 = vmatprep.subr.mxu0 0.0
      %2470 = vmatpush1.msra.mxu0 0.0
      %2471 = vmatprep.subr.mxu0 0.0
      %2472 = vmatpush1.msra.mxu0 0.0
      %2473 = vmatprep.subr.mxu0 0.0
      %2474 = vmatpush1.msra.mxu0 0.0
      %2475 = vmatprep.subr.mxu0 0.0
      %2476 = vmatpush1.msra.mxu0 0.0
      %2477 = vmatprep.subr.mxu0 0.0
      %2478 = vmatpush1.msra.mxu0 0.0
      %2479 = vmatprep.subr.mxu0 0.0
      %2480 = vmatpush1.msra.mxu0 0.0
      %2481 = vmatprep.subr.mxu0 0.0
      %2482 = vmatpush1.msra.mxu0 0.0
      %2483 = vmatprep.subr.mxu0 0.0
      %2484 = vmatpush1.msra.mxu0 0.0
      %2485 = vmatprep.subr.mxu0 0.0
      %2486 = vmatpush1.msra.mxu0 0.0
      %2487 = vmatprep.subr.mxu0 0.0
      %2488 = vmatpush1.msra.mxu0 0.0
      %2489 = vmatprep.subr.mxu0 0.0
      %2490 = vmatpush1.msra.mxu0 0.0
      %2491 = vmatprep.subr.mxu0 0.0
      %2492 = vmatpush1.msra.mxu0 0.0
      %2493 = vmatprep.subr.mxu0 0.0
      %2494 = vmatpush1.msra.mxu0 0.0
      %2495 = vmatprep.subr.mxu0 0.0
      %2496 = vmatpush1.msra.mxu0 0.0
      %2497 = vmatprep.subr.mxu0 0.0
      %2498 = vmatpush1.msra.mxu0 0.0
      %2499 = vmatprep.subr.mxu0 0.0
      %2500 = vmatpush1.msra.mxu0 0.0
      %2501 = vmatprep.subr.mxu0 0.0
      %2502 = vmatpush1.msra.mxu0 0.0
      %2503 = vmatprep.subr.mxu0 0.0
      %2504 = vmatpush1.msra.mxu0 0.0
      %2505 = vmatprep.subr.mxu0 0.0
      %2506 = vmatpush1.msra.mxu0 0.0
      %2507 = vmatprep.subr.mxu0 0.0
      %2508 = vmatpush1.msra.mxu0 0.0
      %2509 = vmatprep.subr.mxu0 0.0
      %2510 = vmatpush1.msra.mxu0 0.0
      %2511 = vmatprep.subr.mxu0 0.0
      %2512 = vmatpush1.msra.mxu0 0.0
      %2513 = vmatprep.subr.mxu0 0.0
      %2514 = vmatpush1.msra.mxu0 0.0
      %2515 = vmatprep.subr.mxu0 0.0
      %2516 = vmatpush1.msra.mxu0 0.0
      %2517 = vmatprep.subr.mxu0 0.0
      %2518 = vmatpush1.msra.mxu0 0.0
      %2519 = vmatprep.subr.mxu0 0.0
      %2520 = vmatpush1.msra.mxu0 0.0
      %2521 = vmatprep.subr.mxu0 0.0
      %2522 = vmatpush1.msra.mxu0 0.0
      %2523 = vmatprep.subr.mxu0 0.0
      %2524 = vmatpush1.msra.mxu0 0.0
      %2525 = vmatprep.subr.mxu0 0.0
      %2526 = vmatpush1.msra.mxu0 0.0
      %2527 = vmatprep.subr.mxu0 0.0
      %2528 = vmatpush1.msra.mxu0 0.0
      %2529 = vmatprep.mubr.f32.mxu0 0.0
      %2530 = vmatmul.mubr.f32.gmra.mrb[0].mxu0 %v2431
      %v2531 = vpop.f32.mrb[0].mxu0
      %v2532 = vadd.f32 0.0, %v2531
      %v2533 = vpop.f32.mrb[0].mxu0
      %v2534 = vadd.f32 0.0, %v2533
      %2535 = vdwg.mxu0
      %2536 = vmatprep.subr.mxu0 %v2439
      %2537 = vmatpush1.msra.mxu0 %v2437
      %2538 = vmatprep.subr.mxu0 0.0
      %2539 = vmatpush1.msra.mxu0 0.0
      %2540 = vmatprep.subr.mxu0 0.0
      %2541 = vmatpush1.msra.mxu0 0.0
      %2542 = vmatprep.subr.mxu0 0.0
      %2543 = vmatpush1.msra.mxu0 0.0
      %2544 = vmatprep.subr.mxu0 0.0
      %2545 = vmatpush1.msra.mxu0 0.0
      %2546 = vmatprep.subr.mxu0 0.0
      %2547 = vmatpush1.msra.mxu0 0.0
      %2548 = vmatprep.subr.mxu0 0.0
      %2549 = vmatpush1.msra.mxu0 0.0
      %2550 = vmatprep.subr.mxu0 0.0
      %2551 = vmatpush1.msra.mxu0 0.0
      %2552 = vmatprep.subr.mxu0 0.0
      %2553 = vmatpush1.msra.mxu0 0.0
      %2554 = vmatprep.subr.mxu0 0.0
      %2555 = vmatpush1.msra.mxu0 0.0
      %2556 = vmatprep.subr.mxu0 0.0
      %2557 = vmatpush1.msra.mxu0 0.0
      %2558 = vmatprep.subr.mxu0 0.0
      %2559 = vmatpush1.msra.mxu0 0.0
      %2560 = vmatprep.subr.mxu0 0.0
      %2561 = vmatpush1.msra.mxu0 0.0
      %2562 = vmatprep.subr.mxu0 0.0
      %2563 = vmatpush1.msra.mxu0 0.0
      %2564 = vmatprep.subr.mxu0 0.0
      %2565 = vmatpush1.msra.mxu0 0.0
      %2566 = vmatprep.subr.mxu0 0.0
      %2567 = vmatpush1.msra.mxu0 0.0
      %2568 = vmatprep.subr.mxu0 0.0
      %2569 = vmatpush1.msra.mxu0 0.0
      %2570 = vmatprep.subr.mxu0 0.0
      %2571 = vmatpush1.msra.mxu0 0.0
      %2572 = vmatprep.subr.mxu0 0.0
      %2573 = vmatpush1.msra.mxu0 0.0
      %2574 = vmatprep.subr.mxu0 0.0
      %2575 = vmatpush1.msra.mxu0 0.0
      %2576 = vmatprep.subr.mxu0 0.0
      %2577 = vmatpush1.msra.mxu0 0.0
      %2578 = vmatprep.subr.mxu0 0.0
      %2579 = vmatpush1.msra.mxu0 0.0
      %2580 = vmatprep.subr.mxu0 0.0
      %2581 = vmatpush1.msra.mxu0 0.0
      %2582 = vmatprep.subr.mxu0 0.0
      %2583 = vmatpush1.msra.mxu0 0.0
      %2584 = vmatprep.subr.mxu0 0.0
      %2585 = vmatpush1.msra.mxu0 0.0
      %2586 = vmatprep.subr.mxu0 0.0
      %2587 = vmatpush1.msra.mxu0 0.0
      %2588 = vmatprep.subr.mxu0 0.0
      %2589 = vmatpush1.msra.mxu0 0.0
      %2590 = vmatprep.subr.mxu0 0.0
      %2591 = vmatpush1.msra.mxu0 0.0
      %2592 = vmatprep.subr.mxu0 0.0
      %2593 = vmatpush1.msra.mxu0 0.0
      %2594 = vmatprep.subr.mxu0 0.0
      %2595 = vmatpush1.msra.mxu0 0.0
      %2596 = vmatprep.subr.mxu0 0.0
      %2597 = vmatpush1.msra.mxu0 0.0
      %2598 = vmatprep.subr.mxu0 0.0
      %2599 = vmatpush1.msra.mxu0 0.0
      %2600 = vmatprep.mubr.f32.mxu0 0.0
      %2601 = vmatmul.mubr.f32.gmra.mrb[0].mxu0 %v2431
      %v2602 = vpop.f32.mrb[0].mxu0
      %v2603 = vadd.f32 0.0, %v2602
      %v2604 = vpop.f32.mrb[0].mxu0
      %v2605 = vadd.f32 0.0, %v2604
      %2606 = vdwg.mxu0
      %2607 = vmatprep.subr.mxu0 %v2443
      %2608 = vmatpush1.msra.mxu0 %v2441
      %2609 = vmatprep.subr.mxu0 0.0
      %2610 = vmatpush1.msra.mxu0 0.0
      %2611 = vmatprep.subr.mxu0 0.0
      %2612 = vmatpush1.msra.mxu0 0.0
      %2613 = vmatprep.subr.mxu0 0.0
      %2614 = vmatpush1.msra.mxu0 0.0
      %2615 = vmatprep.subr.mxu0 0.0
      %2616 = vmatpush1.msra.mxu0 0.0
      %2617 = vmatprep.subr.mxu0 0.0
      %2618 = vmatpush1.msra.mxu0 0.0
      %2619 = vmatprep.subr.mxu0 0.0
      %2620 = vmatpush1.msra.mxu0 0.0
      %2621 = vmatprep.subr.mxu0 0.0
      %2622 = vmatpush1.msra.mxu0 0.0
      %2623 = vmatprep.subr.mxu0 0.0
      %2624 = vmatpush1.msra.mxu0 0.0
      %2625 = vmatprep.subr.mxu0 0.0
      %2626 = vmatpush1.msra.mxu0 0.0
      %2627 = vmatprep.subr.mxu0 0.0
      %2628 = vmatpush1.msra.mxu0 0.0
      %2629 = vmatprep.subr.mxu0 0.0
      %2630 = vmatpush1.msra.mxu0 0.0
      %2631 = vmatprep.subr.mxu0 0.0
      %2632 = vmatpush1.msra.mxu0 0.0
      %2633 = vmatprep.subr.mxu0 0.0
      %2634 = vmatpush1.msra.mxu0 0.0
      %2635 = vmatprep.subr.mxu0 0.0
      %2636 = vmatpush1.msra.mxu0 0.0
      %2637 = vmatprep.subr.mxu0 0.0
      %2638 = vmatpush1.msra.mxu0 0.0
      %2639 = vmatprep.subr.mxu0 0.0
      %2640 = vmatpush1.msra.mxu0 0.0
      %2641 = vmatprep.subr.mxu0 0.0
      %2642 = vmatpush1.msra.mxu0 0.0
      %2643 = vmatprep.subr.mxu0 0.0
      %2644 = vmatpush1.msra.mxu0 0.0
      %2645 = vmatprep.subr.mxu0 0.0
      %2646 = vmatpush1.msra.mxu0 0.0
      %2647 = vmatprep.subr.mxu0 0.0
      %2648 = vmatpush1.msra.mxu0 0.0
      %2649 = vmatprep.subr.mxu0 0.0
      %2650 = vmatpush1.msra.mxu0 0.0
      %2651 = vmatprep.subr.mxu0 0.0
      %2652 = vmatpush1.msra.mxu0 0.0
      %2653 = vmatprep.subr.mxu0 0.0
      %2654 = vmatpush1.msra.mxu0 0.0
      %2655 = vmatprep.subr.mxu0 0.0
      %2656 = vmatpush1.msra.mxu0 0.0
      %2657 = vmatprep.subr.mxu0 0.0
      %2658 = vmatpush1.msra.mxu0 0.0
      %2659 = vmatprep.subr.mxu0 0.0
      %2660 = vmatpush1.msra.mxu0 0.0
      %2661 = vmatprep.subr.mxu0 0.0
      %2662 = vmatpush1.msra.mxu0 0.0
      %2663 = vmatprep.subr.mxu0 0.0
      %2664 = vmatpush1.msra.mxu0 0.0
      %2665 = vmatprep.subr.mxu0 0.0
      %2666 = vmatpush1.msra.mxu0 0.0
      %2667 = vmatprep.subr.mxu0 0.0
      %2668 = vmatpush1.msra.mxu0 0.0
      %2669 = vmatprep.subr.mxu0 0.0
      %2670 = vmatpush1.msra.mxu0 0.0
      %2671 = vmatprep.mubr.f32.mxu0 0.0
      %2672 = vmatmul.mubr.f32.gmra.mrb[0].mxu0 %v2431
      %v2673 = vpop.f32.mrb[0].mxu0
      %v2674 = vadd.f32 0.0, %v2673
      %v2675 = vpop.f32.mrb[0].mxu0
      %v2676 = vadd.f32 0.0, %v2675
      %2677 = vdwg.mxu0
      %2678 = vmatprep.subr.mxu0 %v2447
      %2679 = vmatpush1.msra.mxu0 %v2445
      %2680 = vmatprep.subr.mxu0 0.0
      %2681 = vmatpush1.msra.mxu0 0.0
      %2682 = vmatprep.subr.mxu0 0.0
      %2683 = vmatpush1.msra.mxu0 0.0
      %2684 = vmatprep.subr.mxu0 0.0
      %2685 = vmatpush1.msra.mxu0 0.0
      %2686 = vmatprep.subr.mxu0 0.0
      %2687 = vmatpush1.msra.mxu0 0.0
      %2688 = vmatprep.subr.mxu0 0.0
      %2689 = vmatpush1.msra.mxu0 0.0
      %2690 = vmatprep.subr.mxu0 0.0
      %2691 = vmatpush1.msra.mxu0 0.0
      %2692 = vmatprep.subr.mxu0 0.0
      %2693 = vmatpush1.msra.mxu0 0.0
      %2694 = vmatprep.subr.mxu0 0.0
      %2695 = vmatpush1.msra.mxu0 0.0
      %2696 = vmatprep.subr.mxu0 0.0
      %2697 = vmatpush1.msra.mxu0 0.0
      %2698 = vmatprep.subr.mxu0 0.0
      %2699 = vmatpush1.msra.mxu0 0.0
      %2700 = vmatprep.subr.mxu0 0.0
      %2701 = vmatpush1.msra.mxu0 0.0
      %2702 = vmatprep.subr.mxu0 0.0
      %2703 = vmatpush1.msra.mxu0 0.0
      %2704 = vmatprep.subr.mxu0 0.0
      %2705 = vmatpush1.msra.mxu0 0.0
      %2706 = vmatprep.subr.mxu0 0.0
      %2707 = vmatpush1.msra.mxu0 0.0
      %2708 = vmatprep.subr.mxu0 0.0
      %2709 = vmatpush1.msra.mxu0 0.0
      %2710 = vmatprep.subr.mxu0 0.0
      %2711 = vmatpush1.msra.mxu0 0.0
      %2712 = vmatprep.subr.mxu0 0.0
      %2713 = vmatpush1.msra.mxu0 0.0
      %2714 = vmatprep.subr.mxu0 0.0
      %2715 = vmatpush1.msra.mxu0 0.0
      %2716 = vmatprep.subr.mxu0 0.0
      %2717 = vmatpush1.msra.mxu0 0.0
      %2718 = vmatprep.subr.mxu0 0.0
      %2719 = vmatpush1.msra.mxu0 0.0
      %2720 = vmatprep.subr.mxu0 0.0
      %2721 = vmatpush1.msra.mxu0 0.0
      %2722 = vmatprep.subr.mxu0 0.0
      %2723 = vmatpush1.msra.mxu0 0.0
      %2724 = vmatprep.subr.mxu0 0.0
      %2725 = vmatpush1.msra.mxu0 0.0
      %2726 = vmatprep.subr.mxu0 0.0
      %2727 = vmatpush1.msra.mxu0 0.0
      %2728 = vmatprep.subr.mxu0 0.0
      %2729 = vmatpush1.msra.mxu0 0.0
      %2730 = vmatprep.subr.mxu0 0.0
      %2731 = vmatpush1.msra.mxu0 0.0
      %2732 = vmatprep.subr.mxu0 0.0
      %2733 = vmatpush1.msra.mxu0 0.0
      %2734 = vmatprep.subr.mxu0 0.0
      %2735 = vmatpush1.msra.mxu0 0.0
      %2736 = vmatprep.subr.mxu0 0.0
      %2737 = vmatpush1.msra.mxu0 0.0
      %2738 = vmatprep.subr.mxu0 0.0
      %2739 = vmatpush1.msra.mxu0 0.0
      %2740 = vmatprep.subr.mxu0 0.0
      %2741 = vmatpush1.msra.mxu0 0.0
      %2742 = vmatprep.mubr.f32.mxu0 0.0
      %2743 = vmatmul.mubr.f32.gmra.mrb[0].mxu0 %v2431
      %v2744 = vpop.f32.mrb[0].mxu0
      %v2745 = vadd.f32 0.0, %v2744
      %v2746 = vpop.f32.mrb[0].mxu0
      %v2747 = vadd.f32 0.0, %v2746
      %2748 = vdwg.mxu0
      %2749 = vmatprep.subr.mxu0 %v2451
      %2750 = vmatpush1.msra.mxu0 %v2449
      %2751 = vmatprep.subr.mxu0 0.0
      %2752 = vmatpush1.msra.mxu0 0.0
      %2753 = vmatprep.subr.mxu0 0.0
      %2754 = vmatpush1.msra.mxu0 0.0
      %2755 = vmatprep.subr.mxu0 0.0
      %2756 = vmatpush1.msra.mxu0 0.0
      %2757 = vmatprep.subr.mxu0 0.0
      %2758 = vmatpush1.msra.mxu0 0.0
      %2759 = vmatprep.subr.mxu0 0.0
      %2760 = vmatpush1.msra.mxu0 0.0
      %2761 = vmatprep.subr.mxu0 0.0
      %2762 = vmatpush1.msra.mxu0 0.0
      %2763 = vmatprep.subr.mxu0 0.0
      %2764 = vmatpush1.msra.mxu0 0.0
      %2765 = vmatprep.subr.mxu0 0.0
      %2766 = vmatpush1.msra.mxu0 0.0
      %2767 = vmatprep.subr.mxu0 0.0
      %2768 = vmatpush1.msra.mxu0 0.0
      %2769 = vmatprep.subr.mxu0 0.0
      %2770 = vmatpush1.msra.mxu0 0.0
      %2771 = vmatprep.subr.mxu0 0.0
      %2772 = vmatpush1.msra.mxu0 0.0
      %2773 = vmatprep.subr.mxu0 0.0
      %2774 = vmatpush1.msra.mxu0 0.0
      %2775 = vmatprep.subr.mxu0 0.0
      %2776 = vmatpush1.msra.mxu0 0.0
      %2777 = vmatprep.subr.mxu0 0.0
      %2778 = vmatpush1.msra.mxu0 0.0
      %2779 = vmatprep.subr.mxu0 0.0
      %2780 = vmatpush1.msra.mxu0 0.0
      %2781 = vmatprep.subr.mxu0 0.0
      %2782 = vmatpush1.msra.mxu0 0.0
      %2783 = vmatprep.subr.mxu0 0.0
      %2784 = vmatpush1.msra.mxu0 0.0
      %2785 = vmatprep.subr.mxu0 0.0
      %2786 = vmatpush1.msra.mxu0 0.0
      %2787 = vmatprep.subr.mxu0 0.0
      %2788 = vmatpush1.msra.mxu0 0.0
      %2789 = vmatprep.subr.mxu0 0.0
      %2790 = vmatpush1.msra.mxu0 0.0
      %2791 = vmatprep.subr.mxu0 0.0
      %2792 = vmatpush1.msra.mxu0 0.0
      %2793 = vmatprep.subr.mxu0 0.0
      %2794 = vmatpush1.msra.mxu0 0.0
      %2795 = vmatprep.subr.mxu0 0.0
      %2796 = vmatpush1.msra.mxu0 0.0
      %2797 = vmatprep.subr.mxu0 0.0
      %2798 = vmatpush1.msra.mxu0 0.0
      %2799 = vmatprep.subr.mxu0 0.0
      %2800 = vmatpush1.msra.mxu0 0.0
      %2801 = vmatprep.subr.mxu0 0.0
      %2802 = vmatpush1.msra.mxu0 0.0
      %2803 = vmatprep.subr.mxu0 0.0
      %2804 = vmatpush1.msra.mxu0 0.0
      %2805 = vmatprep.subr.mxu0 0.0
      %2806 = vmatpush1.msra.mxu0 0.0
      %2807 = vmatprep.subr.mxu0 0.0
      %2808 = vmatpush1.msra.mxu0 0.0
      %2809 = vmatprep.subr.mxu0 0.0
      %2810 = vmatpush1.msra.mxu0 0.0
      %2811 = vmatprep.subr.mxu0 0.0
      %2812 = vmatpush1.msra.mxu0 0.0
      %2813 = vmatprep.mubr.f32.mxu0 0.0
      %2814 = vmatmul.mubr.f32.gmra.mrb[0].mxu0 %v2431
      %v2815 = vpop.f32.mrb[0].mxu0
      %v2816 = vadd.f32 0.0, %v2815
      %v2817 = vpop.f32.mrb[0].mxu0
      %v2818 = vadd.f32 0.0, %v2817
      %2819 = vdwg.mxu0
      %2820 = vmatprep.subr.mxu0 %v2455
      %2821 = vmatpush1.msra.mxu0 %v2453
      %2822 = vmatprep.subr.mxu0 0.0
      %2823 = vmatpush1.msra.mxu0 0.0
      %2824 = vmatprep.subr.mxu0 0.0
      %2825 = vmatpush1.msra.mxu0 0.0
      %2826 = vmatprep.subr.mxu0 0.0
      %2827 = vmatpush1.msra.mxu0 0.0
      %2828 = vmatprep.subr.mxu0 0.0
      %2829 = vmatpush1.msra.mxu0 0.0
      %2830 = vmatprep.subr.mxu0 0.0
      %2831 = vmatpush1.msra.mxu0 0.0
      %2832 = vmatprep.subr.mxu0 0.0
      %2833 = vmatpush1.msra.mxu0 0.0
      %2834 = vmatprep.subr.mxu0 0.0
      %2835 = vmatpush1.msra.mxu0 0.0
      %2836 = vmatprep.subr.mxu0 0.0
      %2837 = vmatpush1.msra.mxu0 0.0
      %2838 = vmatprep.subr.mxu0 0.0
      %2839 = vmatpush1.msra.mxu0 0.0
      %2840 = vmatprep.subr.mxu0 0.0
      %2841 = vmatpush1.msra.mxu0 0.0
      %2842 = vmatprep.subr.mxu0 0.0
      %2843 = vmatpush1.msra.mxu0 0.0
      %2844 = vmatprep.subr.mxu0 0.0
      %2845 = vmatpush1.msra.mxu0 0.0
      %2846 = vmatprep.subr.mxu0 0.0
      %2847 = vmatpush1.msra.mxu0 0.0
      %2848 = vmatprep.subr.mxu0 0.0
      %2849 = vmatpush1.msra.mxu0 0.0
      %2850 = vmatprep.subr.mxu0 0.0
      %2851 = vmatpush1.msra.mxu0 0.0
      %2852 = vmatprep.subr.mxu0 0.0
      %2853 = vmatpush1.msra.mxu0 0.0
      %2854 = vmatprep.subr.mxu0 0.0
      %2855 = vmatpush1.msra.mxu0 0.0
      %2856 = vmatprep.subr.mxu0 0.0
      %2857 = vmatpush1.msra.mxu0 0.0
      %2858 = vmatprep.subr.mxu0 0.0
      %2859 = vmatpush1.msra.mxu0 0.0
      %2860 = vmatprep.subr.mxu0 0.0
      %2861 = vmatpush1.msra.mxu0 0.0
      %2862 = vmatprep.subr.mxu0 0.0
      %2863 = vmatpush1.msra.mxu0 0.0
      %2864 = vmatprep.subr.mxu0 0.0
      %2865 = vmatpush1.msra.mxu0 0.0
      %2866 = vmatprep.subr.mxu0 0.0
      %2867 = vmatpush1.msra.mxu0 0.0
      %2868 = vmatprep.subr.mxu0 0.0
      %2869 = vmatpush1.msra.mxu0 0.0
      %2870 = vmatprep.subr.mxu0 0.0
      %2871 = vmatpush1.msra.mxu0 0.0
      %2872 = vmatprep.subr.mxu0 0.0
      %2873 = vmatpush1.msra.mxu0 0.0
      %2874 = vmatprep.subr.mxu0 0.0
      %2875 = vmatpush1.msra.mxu0 0.0
      %2876 = vmatprep.subr.mxu0 0.0
      %2877 = vmatpush1.msra.mxu0 0.0
      %2878 = vmatprep.subr.mxu0 0.0
      %2879 = vmatpush1.msra.mxu0 0.0
      %2880 = vmatprep.subr.mxu0 0.0
      %2881 = vmatpush1.msra.mxu0 0.0
      %2882 = vmatprep.subr.mxu0 0.0
      %2883 = vmatpush1.msra.mxu0 0.0
      %2884 = vmatprep.mubr.f32.mxu0 0.0
      %2885 = vmatmul.mubr.f32.gmra.mrb[0].mxu0 %v2431
      %v2886 = vpop.f32.mrb[0].mxu0
      %v2887 = vadd.f32 0.0, %v2886
      %v2888 = vpop.f32.mrb[0].mxu0
      %v2889 = vadd.f32 0.0, %v2888
      %2890 = vdwg.mxu0
      %2891 = vmatprep.subr.mxu0 %v2459
      %2892 = vmatpush1.msra.mxu0 %v2457
      %2893 = vmatprep.subr.mxu0 0.0
      %2894 = vmatpush1.msra.mxu0 0.0
      %2895 = vmatprep.subr.mxu0 0.0
      %2896 = vmatpush1.msra.mxu0 0.0
      %2897 = vmatprep.subr.mxu0 0.0
      %2898 = vmatpush1.msra.mxu0 0.0
      %2899 = vmatprep.subr.mxu0 0.0
      %2900 = vmatpush1.msra.mxu0 0.0
      %2901 = vmatprep.subr.mxu0 0.0
      %2902 = vmatpush1.msra.mxu0 0.0
      %2903 = vmatprep.subr.mxu0 0.0
      %2904 = vmatpush1.msra.mxu0 0.0
      %2905 = vmatprep.subr.mxu0 0.0
      %2906 = vmatpush1.msra.mxu0 0.0
      %2907 = vmatprep.subr.mxu0 0.0
      %2908 = vmatpush1.msra.mxu0 0.0
      %2909 = vmatprep.subr.mxu0 0.0
      %2910 = vmatpush1.msra.mxu0 0.0
      %2911 = vmatprep.subr.mxu0 0.0
      %2912 = vmatpush1.msra.mxu0 0.0
      %2913 = vmatprep.subr.mxu0 0.0
      %2914 = vmatpush1.msra.mxu0 0.0
      %2915 = vmatprep.subr.mxu0 0.0
      %2916 = vmatpush1.msra.mxu0 0.0
      %2917 = vmatprep.subr.mxu0 0.0
      %2918 = vmatpush1.msra.mxu0 0.0
      %2919 = vmatprep.subr.mxu0 0.0
      %2920 = vmatpush1.msra.mxu0 0.0
      %2921 = vmatprep.subr.mxu0 0.0
      %2922 = vmatpush1.msra.mxu0 0.0
      %2923 = vmatprep.subr.mxu0 0.0
      %2924 = vmatpush1.msra.mxu0 0.0
      %2925 = vmatprep.subr.mxu0 0.0
      %2926 = vmatpush1.msra.mxu0 0.0
      %2927 = vmatprep.subr.mxu0 0.0
      %2928 = vmatpush1.msra.mxu0 0.0
      %2929 = vmatprep.subr.mxu0 0.0
      %2930 = vmatpush1.msra.mxu0 0.0
      %2931 = vmatprep.subr.mxu0 0.0
      %2932 = vmatpush1.msra.mxu0 0.0
      %2933 = vmatprep.subr.mxu0 0.0
      %2934 = vmatpush1.msra.mxu0 0.0
      %2935 = vmatprep.subr.mxu0 0.0
      %2936 = vmatpush1.msra.mxu0 0.0
      %2937 = vmatprep.subr.mxu0 0.0
      %2938 = vmatpush1.msra.mxu0 0.0
      %2939 = vmatprep.subr.mxu0 0.0
      %2940 = vmatpush1.msra.mxu0 0.0
      %2941 = vmatprep.subr.mxu0 0.0
      %2942 = vmatpush1.msra.mxu0 0.0
      %2943 = vmatprep.subr.mxu0 0.0
      %2944 = vmatpush1.msra.mxu0 0.0
      %2945 = vmatprep.subr.mxu0 0.0
      %2946 = vmatpush1.msra.mxu0 0.0
      %2947 = vmatprep.subr.mxu0 0.0
      %2948 = vmatpush1.msra.mxu0 0.0
      %2949 = vmatprep.subr.mxu0 0.0
      %2950 = vmatpush1.msra.mxu0 0.0
      %2951 = vmatprep.subr.mxu0 0.0
      %2952 = vmatpush1.msra.mxu0 0.0
      %2953 = vmatprep.subr.mxu0 0.0
      %2954 = vmatpush1.msra.mxu0 0.0
      %2955 = vmatprep.mubr.f32.mxu0 0.0
      %2956 = vmatmul.mubr.f32.gmra.mrb[0].mxu0 %v2431
      %v2957 = vpop.f32.mrb[0].mxu0
      %v2958 = vadd.f32 0.0, %v2957
      %v2959 = vpop.f32.mrb[0].mxu0
      %v2960 = vadd.f32 0.0, %v2959
      %2961 = vdwg.mxu0
      %2962 = vmatprep.subr.mxu0 %v2463
      %2963 = vmatpush1.msra.mxu0 %v2461
      %2964 = vmatprep.subr.mxu0 0.0
      %2965 = vmatpush1.msra.mxu0 0.0
      %2966 = vmatprep.subr.mxu0 0.0
      %2967 = vmatpush1.msra.mxu0 0.0
      %2968 = vmatprep.subr.mxu0 0.0
      %2969 = vmatpush1.msra.mxu0 0.0
      %2970 = vmatprep.subr.mxu0 0.0
      %2971 = vmatpush1.msra.mxu0 0.0
      %2972 = vmatprep.subr.mxu0 0.0
      %2973 = vmatpush1.msra.mxu0 0.0
      %2974 = vmatprep.subr.mxu0 0.0
      %2975 = vmatpush1.msra.mxu0 0.0
      %2976 = vmatprep.subr.mxu0 0.0
      %2977 = vmatpush1.msra.mxu0 0.0
      %2978 = vmatprep.subr.mxu0 0.0
      %2979 = vmatpush1.msra.mxu0 0.0
      %2980 = vmatprep.subr.mxu0 0.0
      %2981 = vmatpush1.msra.mxu0 0.0
      %2982 = vmatprep.subr.mxu0 0.0
      %2983 = vmatpush1.msra.mxu0 0.0
      %2984 = vmatprep.subr.mxu0 0.0
      %2985 = vmatpush1.msra.mxu0 0.0
      %2986 = vmatprep.subr.mxu0 0.0
      %2987 = vmatpush1.msra.mxu0 0.0
      %2988 = vmatprep.subr.mxu0 0.0
      %2989 = vmatpush1.msra.mxu0 0.0
      %2990 = vmatprep.subr.mxu0 0.0
      %2991 = vmatpush1.msra.mxu0 0.0
      %2992 = vmatprep.subr.mxu0 0.0
      %2993 = vmatpush1.msra.mxu0 0.0
      %2994 = vmatprep.subr.mxu0 0.0
      %2995 = vmatpush1.msra.mxu0 0.0
      %2996 = vmatprep.subr.mxu0 0.0
      %2997 = vmatpush1.msra.mxu0 0.0
      %2998 = vmatprep.subr.mxu0 0.0
      %2999 = vmatpush1.msra.mxu0 0.0
      %3000 = vmatprep.subr.mxu0 0.0
      %3001 = vmatpush1.msra.mxu0 0.0
      %3002 = vmatprep.subr.mxu0 0.0
      %3003 = vmatpush1.msra.mxu0 0.0
      %3004 = vmatprep.subr.mxu0 0.0
      %3005 = vmatpush1.msra.mxu0 0.0
      %3006 = vmatprep.subr.mxu0 0.0
      %3007 = vmatpush1.msra.mxu0 0.0
      %3008 = vmatprep.subr.mxu0 0.0
      %3009 = vmatpush1.msra.mxu0 0.0
      %3010 = vmatprep.subr.mxu0 0.0
      %3011 = vmatpush1.msra.mxu0 0.0
      %3012 = vmatprep.subr.mxu0 0.0
      %3013 = vmatpush1.msra.mxu0 0.0
      %3014 = vmatprep.subr.mxu0 0.0
      %3015 = vmatpush1.msra.mxu0 0.0
      %3016 = vmatprep.subr.mxu0 0.0
      %3017 = vmatpush1.msra.mxu0 0.0
      %3018 = vmatprep.subr.mxu0 0.0
      %3019 = vmatpush1.msra.mxu0 0.0
      %3020 = vmatprep.subr.mxu0 0.0
      %3021 = vmatpush1.msra.mxu0 0.0
      %3022 = vmatprep.subr.mxu0 0.0
      %3023 = vmatpush1.msra.mxu0 0.0
      %3024 = vmatprep.subr.mxu0 0.0
      %3025 = vmatpush1.msra.mxu0 0.0
      %3026 = vmatprep.mubr.f32.mxu0 0.0
      %3027 = vmatmul.mubr.f32.gmra.mrb[0].mxu0 %v2431
      %v3028 = vpop.f32.mrb[0].mxu0
      %v3029 = vadd.f32 0.0, %v3028
      %v3030 = vpop.f32.mrb[0].mxu0
      %v3031 = vadd.f32 0.0, %v3030
      %3032 = vdwg.mxu0
      %v3033 = vld [vmem:[%s960] sm:$0xff]
      %v3034 = vld [vmem:[%s960 + $0x8] sm:$0xff]
      %v3035 = vld [vmem:[%s960 + $0x10] sm:$0xff]
      %v3036 = vld [vmem:[%s960 + $0x18] sm:$0xff]
      %v3037 = vld [vmem:[%s960 + $0x20] sm:$0xff]
      %v3038 = vld [vmem:[%s960 + $0x28] sm:$0xff]
      %v3039 = vld [vmem:[%s960 + $0x30] sm:$0xff]
      %v3040 = vld [vmem:[%s960 + $0x38] sm:$0xff]
      %v3041 = vld [vmem:[%s960 + $0x40] sm:$0xff]
      %v3042 = vld [vmem:[%s960 + $0x48] sm:$0xff]
      %v3043 = vld [vmem:[%s960 + $0x50] sm:$0xff]
      %v3044 = vld [vmem:[%s960 + $0x58] sm:$0xff]
      %v3045 = vld [vmem:[%s960 + $0x60] sm:$0xff]
      %v3046 = vld [vmem:[%s960 + $0x68] sm:$0xff]
      %v3047 = vld [vmem:[%s960 + $0x70] sm:$0xff]
      %v3048 = vld [vmem:[%s960 + $0x78] sm:$0xff]
      %v3049 = vadd.f32 %v3033, %v2532
      %v3050 = vadd.f32 %v3034, %v2534
      %v3051 = vadd.f32 %v3035, %v2603
      %v3052 = vadd.f32 %v3036, %v2605
      %v3053 = vadd.f32 %v3037, %v2674
      %v3054 = vadd.f32 %v3038, %v2676
      %v3055 = vadd.f32 %v3039, %v2745
      %v3056 = vadd.f32 %v3040, %v2747
      %v3057 = vadd.f32 %v3041, %v2816
      %v3058 = vadd.f32 %v3042, %v2818
      %v3059 = vadd.f32 %v3043, %v2887
      %v3060 = vadd.f32 %v3044, %v2889
      %v3061 = vadd.f32 %v3045, %v2958
      %v3062 = vadd.f32 %v3046, %v2960
      %v3063 = vadd.f32 %v3047, %v3029
      %v3064 = vadd.f32 %v3048, %v3031
      %3065 = vst [vmem:[%s960] sm:$0xff] %v3049
      %3066 = vst [vmem:[%s960 + $0x8] sm:$0xff] %v3050
      %3067 = vst [vmem:[%s960 + $0x10] sm:$0xff] %v3051
      %3068 = vst [vmem:[%s960 + $0x18] sm:$0xff] %v3052
      %3069 = vst [vmem:[%s960 + $0x20] sm:$0xff] %v3053
      %3070 = vst [vmem:[%s960 + $0x28] sm:$0xff] %v3054
      %3071 = vst [vmem:[%s960 + $0x30] sm:$0xff] %v3055
      %3072 = vst [vmem:[%s960 + $0x38] sm:$0xff] %v3056
      %3073 = vst [vmem:[%s960 + $0x40] sm:$0xff] %v3057
      %3074 = vst [vmem:[%s960 + $0x48] sm:$0xff] %v3058
      %3075 = vst [vmem:[%s960 + $0x50] sm:$0xff] %v3059
      %3076 = vst [vmem:[%s960 + $0x58] sm:$0xff] %v3060
      %3077 = vst [vmem:[%s960 + $0x60] sm:$0xff] %v3061
      %3078 = vst [vmem:[%s960 + $0x68] sm:$0xff] %v3062
      %3079 = vst [vmem:[%s960 + $0x70] sm:$0xff] %v3063
      %3080 = vst [vmem:[%s960 + $0x78] sm:$0xff] %v3064
      %3081 = vrot.lane.b32.xlu0 %v2352, 127
      %v3082 = vpop.permute.xlu0 %3081
      %v3083 = vsel %vm2413, %v3082, %v2380
      %v3085 = vsel %vm287, %v259, 0
      %v3087 = vsel %vm294, %v3083, 0
      %3089 = vmatprep.subr.mxu0 %v2433
      %3090 = vmatpush1.msra.mxu0 %v3087
      %3091 = vmatprep.subr.mxu0 0.0
      %3092 = vmatpush1.msra.mxu0 0.0
      %3093 = vmatprep.subr.mxu0 0.0
      %3094 = vmatpush1.msra.mxu0 0.0
      %3095 = vmatprep.subr.mxu0 0.0
      %3096 = vmatpush1.msra.mxu0 0.0
      %3097 = vmatprep.subr.mxu0 0.0
      %3098 = vmatpush1.msra.mxu0 0.0
      %3099 = vmatprep.subr.mxu0 0.0
      %3100 = vmatpush1.msra.mxu0 0.0
      %3101 = vmatprep.subr.mxu0 0.0
      %3102 = vmatpush1.msra.mxu0 0.0
      %3103 = vmatprep.subr.mxu0 0.0
      %3104 = vmatpush1.msra.mxu0 0.0
      %3105 = vmatprep.subr.mxu0 0.0
      %3106 = vmatpush1.msra.mxu0 0.0
      %3107 = vmatprep.subr.mxu0 0.0
      %3108 = vmatpush1.msra.mxu0 0.0
      %3109 = vmatprep.subr.mxu0 0.0
      %3110 = vmatpush1.msra.mxu0 0.0
      %3111 = vmatprep.subr.mxu0 0.0
      %3112 = vmatpush1.msra.mxu0 0.0
      %3113 = vmatprep.subr.mxu0 0.0
      %3114 = vmatpush1.msra.mxu0 0.0
      %3115 = vmatprep.subr.mxu0 0.0
      %3116 = vmatpush1.msra.mxu0 0.0
      %3117 = vmatprep.subr.mxu0 0.0
      %3118 = vmatpush1.msra.mxu0 0.0
      %3119 = vmatprep.subr.mxu0 0.0
      %3120 = vmatpush1.msra.mxu0 0.0
      %3121 = vmatprep.subr.mxu0 0.0
      %3122 = vmatpush1.msra.mxu0 0.0
      %3123 = vmatprep.subr.mxu0 0.0
      %3124 = vmatpush1.msra.mxu0 0.0
      %3125 = vmatprep.subr.mxu0 0.0
      %3126 = vmatpush1.msra.mxu0 0.0
      %3127 = vmatprep.subr.mxu0 0.0
      %3128 = vmatpush1.msra.mxu0 0.0
      %3129 = vmatprep.subr.mxu0 0.0
      %3130 = vmatpush1.msra.mxu0 0.0
      %3131 = vmatprep.subr.mxu0 0.0
      %3132 = vmatpush1.msra.mxu0 0.0
      %3133 = vmatprep.subr.mxu0 0.0
      %3134 = vmatpush1.msra.mxu0 0.0
      %3135 = vmatprep.subr.mxu0 0.0
      %3136 = vmatpush1.msra.mxu0 0.0
      %3137 = vmatprep.subr.mxu0 0.0
      %3138 = vmatpush1.msra.mxu0 0.0
      %3139 = vmatprep.subr.mxu0 0.0
      %3140 = vmatpush1.msra.mxu0 0.0
      %3141 = vmatprep.subr.mxu0 0.0
      %3142 = vmatpush1.msra.mxu0 0.0
      %3143 = vmatprep.subr.mxu0 0.0
      %3144 = vmatpush1.msra.mxu0 0.0
      %3145 = vmatprep.subr.mxu0 0.0
      %3146 = vmatpush1.msra.mxu0 0.0
      %3147 = vmatprep.subr.mxu0 0.0
      %3148 = vmatpush1.msra.mxu0 0.0
      %3149 = vmatprep.subr.mxu0 0.0
      %3150 = vmatpush1.msra.mxu0 0.0
      %3151 = vmatprep.subr.mxu0 0.0
      %3152 = vmatpush1.msra.mxu0 0.0
      %3153 = vmatprep.mubr.f32.mxu0 0.0
      %3154 = vmatmul.mubr.f32.gmra.mrb[0].mxu0 %v3085
      %v3155 = vpop.f32.mrb[0].mxu0
      %v3156 = vadd.f32 0.0, %v3155
      %v3157 = vpop.f32.mrb[0].mxu0
      %v3158 = vadd.f32 0.0, %v3157
      %3159 = vdwg.mxu0
      %3160 = vmatprep.subr.mxu0 %v2437
      %3161 = vmatpush1.msra.mxu0 %v2435
      %3162 = vmatprep.subr.mxu0 0.0
      %3163 = vmatpush1.msra.mxu0 0.0
      %3164 = vmatprep.subr.mxu0 0.0
      %3165 = vmatpush1.msra.mxu0 0.0
      %3166 = vmatprep.subr.mxu0 0.0
      %3167 = vmatpush1.msra.mxu0 0.0
      %3168 = vmatprep.subr.mxu0 0.0
      %3169 = vmatpush1.msra.mxu0 0.0
      %3170 = vmatprep.subr.mxu0 0.0
      %3171 = vmatpush1.msra.mxu0 0.0
      %3172 = vmatprep.subr.mxu0 0.0
      %3173 = vmatpush1.msra.mxu0 0.0
      %3174 = vmatprep.subr.mxu0 0.0
      %3175 = vmatpush1.msra.mxu0 0.0
      %3176 = vmatprep.subr.mxu0 0.0
      %3177 = vmatpush1.msra.mxu0 0.0
      %3178 = vmatprep.subr.mxu0 0.0
      %3179 = vmatpush1.msra.mxu0 0.0
      %3180 = vmatprep.subr.mxu0 0.0
      %3181 = vmatpush1.msra.mxu0 0.0
      %3182 = vmatprep.subr.mxu0 0.0
      %3183 = vmatpush1.msra.mxu0 0.0
      %3184 = vmatprep.subr.mxu0 0.0
      %3185 = vmatpush1.msra.mxu0 0.0
      %3186 = vmatprep.subr.mxu0 0.0
      %3187 = vmatpush1.msra.mxu0 0.0
      %3188 = vmatprep.subr.mxu0 0.0
      %3189 = vmatpush1.msra.mxu0 0.0
      %3190 = vmatprep.subr.mxu0 0.0
      %3191 = vmatpush1.msra.mxu0 0.0
      %3192 = vmatprep.subr.mxu0 0.0
      %3193 = vmatpush1.msra.mxu0 0.0
      %3194 = vmatprep.subr.mxu0 0.0
      %3195 = vmatpush1.msra.mxu0 0.0
      %3196 = vmatprep.subr.mxu0 0.0
      %3197 = vmatpush1.msra.mxu0 0.0
      %3198 = vmatprep.subr.mxu0 0.0
      %3199 = vmatpush1.msra.mxu0 0.0
      %3200 = vmatprep.subr.mxu0 0.0
      %3201 = vmatpush1.msra.mxu0 0.0
      %3202 = vmatprep.subr.mxu0 0.0
      %3203 = vmatpush1.msra.mxu0 0.0
      %3204 = vmatprep.subr.mxu0 0.0
      %3205 = vmatpush1.msra.mxu0 0.0
      %3206 = vmatprep.subr.mxu0 0.0
      %3207 = vmatpush1.msra.mxu0 0.0
      %3208 = vmatprep.subr.mxu0 0.0
      %3209 = vmatpush1.msra.mxu0 0.0
      %3210 = vmatprep.subr.mxu0 0.0
      %3211 = vmatpush1.msra.mxu0 0.0
      %3212 = vmatprep.subr.mxu0 0.0
      %3213 = vmatpush1.msra.mxu0 0.0
      %3214 = vmatprep.subr.mxu0 0.0
      %3215 = vmatpush1.msra.mxu0 0.0
      %3216 = vmatprep.subr.mxu0 0.0
      %3217 = vmatpush1.msra.mxu0 0.0
      %3218 = vmatprep.subr.mxu0 0.0
      %3219 = vmatpush1.msra.mxu0 0.0
      %3220 = vmatprep.subr.mxu0 0.0
      %3221 = vmatpush1.msra.mxu0 0.0
      %3222 = vmatprep.subr.mxu0 0.0
      %3223 = vmatpush1.msra.mxu0 0.0
      %3224 = vmatprep.mubr.f32.mxu0 0.0
      %3225 = vmatmul.mubr.f32.gmra.mrb[0].mxu0 %v3085
      %v3226 = vpop.f32.mrb[0].mxu0
      %v3227 = vadd.f32 0.0, %v3226
      %v3228 = vpop.f32.mrb[0].mxu0
      %v3229 = vadd.f32 0.0, %v3228
      %3230 = vdwg.mxu0
      %3231 = vmatprep.subr.mxu0 %v2441
      %3232 = vmatpush1.msra.mxu0 %v2439
      %3233 = vmatprep.subr.mxu0 0.0
      %3234 = vmatpush1.msra.mxu0 0.0
      %3235 = vmatprep.subr.mxu0 0.0
      %3236 = vmatpush1.msra.mxu0 0.0
      %3237 = vmatprep.subr.mxu0 0.0
      %3238 = vmatpush1.msra.mxu0 0.0
      %3239 = vmatprep.subr.mxu0 0.0
      %3240 = vmatpush1.msra.mxu0 0.0
      %3241 = vmatprep.subr.mxu0 0.0
      %3242 = vmatpush1.msra.mxu0 0.0
      %3243 = vmatprep.subr.mxu0 0.0
      %3244 = vmatpush1.msra.mxu0 0.0
      %3245 = vmatprep.subr.mxu0 0.0
      %3246 = vmatpush1.msra.mxu0 0.0
      %3247 = vmatprep.subr.mxu0 0.0
      %3248 = vmatpush1.msra.mxu0 0.0
      %3249 = vmatprep.subr.mxu0 0.0
      %3250 = vmatpush1.msra.mxu0 0.0
      %3251 = vmatprep.subr.mxu0 0.0
      %3252 = vmatpush1.msra.mxu0 0.0
      %3253 = vmatprep.subr.mxu0 0.0
      %3254 = vmatpush1.msra.mxu0 0.0
      %3255 = vmatprep.subr.mxu0 0.0
      %3256 = vmatpush1.msra.mxu0 0.0
      %3257 = vmatprep.subr.mxu0 0.0
      %3258 = vmatpush1.msra.mxu0 0.0
      %3259 = vmatprep.subr.mxu0 0.0
      %3260 = vmatpush1.msra.mxu0 0.0
      %3261 = vmatprep.subr.mxu0 0.0
      %3262 = vmatpush1.msra.mxu0 0.0
      %3263 = vmatprep.subr.mxu0 0.0
      %3264 = vmatpush1.msra.mxu0 0.0
      %3265 = vmatprep.subr.mxu0 0.0
      %3266 = vmatpush1.msra.mxu0 0.0
      %3267 = vmatprep.subr.mxu0 0.0
      %3268 = vmatpush1.msra.mxu0 0.0
      %3269 = vmatprep.subr.mxu0 0.0
      %3270 = vmatpush1.msra.mxu0 0.0
      %3271 = vmatprep.subr.mxu0 0.0
      %3272 = vmatpush1.msra.mxu0 0.0
      %3273 = vmatprep.subr.mxu0 0.0
      %3274 = vmatpush1.msra.mxu0 0.0
      %3275 = vmatprep.subr.mxu0 0.0
      %3276 = vmatpush1.msra.mxu0 0.0
      %3277 = vmatprep.subr.mxu0 0.0
      %3278 = vmatpush1.msra.mxu0 0.0
      %3279 = vmatprep.subr.mxu0 0.0
      %3280 = vmatpush1.msra.mxu0 0.0
      %3281 = vmatprep.subr.mxu0 0.0
      %3282 = vmatpush1.msra.mxu0 0.0
      %3283 = vmatprep.subr.mxu0 0.0
      %3284 = vmatpush1.msra.mxu0 0.0
      %3285 = vmatprep.subr.mxu0 0.0
      %3286 = vmatpush1.msra.mxu0 0.0
      %3287 = vmatprep.subr.mxu0 0.0
      %3288 = vmatpush1.msra.mxu0 0.0
      %3289 = vmatprep.subr.mxu0 0.0
      %3290 = vmatpush1.msra.mxu0 0.0
      %3291 = vmatprep.subr.mxu0 0.0
      %3292 = vmatpush1.msra.mxu0 0.0
      %3293 = vmatprep.subr.mxu0 0.0
      %3294 = vmatpush1.msra.mxu0 0.0
      %3295 = vmatprep.mubr.f32.mxu0 0.0
      %3296 = vmatmul.mubr.f32.gmra.mrb[0].mxu0 %v3085
      %v3297 = vpop.f32.mrb[0].mxu0
      %v3298 = vadd.f32 0.0, %v3297
      %v3299 = vpop.f32.mrb[0].mxu0
      %v3300 = vadd.f32 0.0, %v3299
      %3301 = vdwg.mxu0
      %3302 = vmatprep.subr.mxu0 %v2445
      %3303 = vmatpush1.msra.mxu0 %v2443
      %3304 = vmatprep.subr.mxu0 0.0
      %3305 = vmatpush1.msra.mxu0 0.0
      %3306 = vmatprep.subr.mxu0 0.0
      %3307 = vmatpush1.msra.mxu0 0.0
      %3308 = vmatprep.subr.mxu0 0.0
      %3309 = vmatpush1.msra.mxu0 0.0
      %3310 = vmatprep.subr.mxu0 0.0
      %3311 = vmatpush1.msra.mxu0 0.0
      %3312 = vmatprep.subr.mxu0 0.0
      %3313 = vmatpush1.msra.mxu0 0.0
      %3314 = vmatprep.subr.mxu0 0.0
      %3315 = vmatpush1.msra.mxu0 0.0
      %3316 = vmatprep.subr.mxu0 0.0
      %3317 = vmatpush1.msra.mxu0 0.0
      %3318 = vmatprep.subr.mxu0 0.0
      %3319 = vmatpush1.msra.mxu0 0.0
      %3320 = vmatprep.subr.mxu0 0.0
      %3321 = vmatpush1.msra.mxu0 0.0
      %3322 = vmatprep.subr.mxu0 0.0
      %3323 = vmatpush1.msra.mxu0 0.0
      %3324 = vmatprep.subr.mxu0 0.0
      %3325 = vmatpush1.msra.mxu0 0.0
      %3326 = vmatprep.subr.mxu0 0.0
      %3327 = vmatpush1.msra.mxu0 0.0
      %3328 = vmatprep.subr.mxu0 0.0
      %3329 = vmatpush1.msra.mxu0 0.0
      %3330 = vmatprep.subr.mxu0 0.0
      %3331 = vmatpush1.msra.mxu0 0.0
      %3332 = vmatprep.subr.mxu0 0.0
      %3333 = vmatpush1.msra.mxu0 0.0
      %3334 = vmatprep.subr.mxu0 0.0
      %3335 = vmatpush1.msra.mxu0 0.0
      %3336 = vmatprep.subr.mxu0 0.0
      %3337 = vmatpush1.msra.mxu0 0.0
      %3338 = vmatprep.subr.mxu0 0.0
      %3339 = vmatpush1.msra.mxu0 0.0
      %3340 = vmatprep.subr.mxu0 0.0
      %3341 = vmatpush1.msra.mxu0 0.0
      %3342 = vmatprep.subr.mxu0 0.0
      %3343 = vmatpush1.msra.mxu0 0.0
      %3344 = vmatprep.subr.mxu0 0.0
      %3345 = vmatpush1.msra.mxu0 0.0
      %3346 = vmatprep.subr.mxu0 0.0
      %3347 = vmatpush1.msra.mxu0 0.0
      %3348 = vmatprep.subr.mxu0 0.0
      %3349 = vmatpush1.msra.mxu0 0.0
      %3350 = vmatprep.subr.mxu0 0.0
      %3351 = vmatpush1.msra.mxu0 0.0
      %3352 = vmatprep.subr.mxu0 0.0
      %3353 = vmatpush1.msra.mxu0 0.0
      %3354 = vmatprep.subr.mxu0 0.0
      %3355 = vmatpush1.msra.mxu0 0.0
      %3356 = vmatprep.subr.mxu0 0.0
      %3357 = vmatpush1.msra.mxu0 0.0
      %3358 = vmatprep.subr.mxu0 0.0
      %3359 = vmatpush1.msra.mxu0 0.0
      %3360 = vmatprep.subr.mxu0 0.0
      %3361 = vmatpush1.msra.mxu0 0.0
      %3362 = vmatprep.subr.mxu0 0.0
      %3363 = vmatpush1.msra.mxu0 0.0
      %3364 = vmatprep.subr.mxu0 0.0
      %3365 = vmatpush1.msra.mxu0 0.0
      %3366 = vmatprep.mubr.f32.mxu0 0.0
      %3367 = vmatmul.mubr.f32.gmra.mrb[0].mxu0 %v3085
      %v3368 = vpop.f32.mrb[0].mxu0
      %v3369 = vadd.f32 0.0, %v3368
      %v3370 = vpop.f32.mrb[0].mxu0
      %v3371 = vadd.f32 0.0, %v3370
      %3372 = vdwg.mxu0
      %3373 = vmatprep.subr.mxu0 %v2449
      %3374 = vmatpush1.msra.mxu0 %v2447
      %3375 = vmatprep.subr.mxu0 0.0
      %3376 = vmatpush1.msra.mxu0 0.0
      %3377 = vmatprep.subr.mxu0 0.0
      %3378 = vmatpush1.msra.mxu0 0.0
      %3379 = vmatprep.subr.mxu0 0.0
      %3380 = vmatpush1.msra.mxu0 0.0
      %3381 = vmatprep.subr.mxu0 0.0
      %3382 = vmatpush1.msra.mxu0 0.0
      %3383 = vmatprep.subr.mxu0 0.0
      %3384 = vmatpush1.msra.mxu0 0.0
      %3385 = vmatprep.subr.mxu0 0.0
      %3386 = vmatpush1.msra.mxu0 0.0
      %3387 = vmatprep.subr.mxu0 0.0
      %3388 = vmatpush1.msra.mxu0 0.0
      %3389 = vmatprep.subr.mxu0 0.0
      %3390 = vmatpush1.msra.mxu0 0.0
      %3391 = vmatprep.subr.mxu0 0.0
      %3392 = vmatpush1.msra.mxu0 0.0
      %3393 = vmatprep.subr.mxu0 0.0
      %3394 = vmatpush1.msra.mxu0 0.0
      %3395 = vmatprep.subr.mxu0 0.0
      %3396 = vmatpush1.msra.mxu0 0.0
      %3397 = vmatprep.subr.mxu0 0.0
      %3398 = vmatpush1.msra.mxu0 0.0
      %3399 = vmatprep.subr.mxu0 0.0
      %3400 = vmatpush1.msra.mxu0 0.0
      %3401 = vmatprep.subr.mxu0 0.0
      %3402 = vmatpush1.msra.mxu0 0.0
      %3403 = vmatprep.subr.mxu0 0.0
      %3404 = vmatpush1.msra.mxu0 0.0
      %3405 = vmatprep.subr.mxu0 0.0
      %3406 = vmatpush1.msra.mxu0 0.0
      %3407 = vmatprep.subr.mxu0 0.0
      %3408 = vmatpush1.msra.mxu0 0.0
      %3409 = vmatprep.subr.mxu0 0.0
      %3410 = vmatpush1.msra.mxu0 0.0
      %3411 = vmatprep.subr.mxu0 0.0
      %3412 = vmatpush1.msra.mxu0 0.0
      %3413 = vmatprep.subr.mxu0 0.0
      %3414 = vmatpush1.msra.mxu0 0.0
      %3415 = vmatprep.subr.mxu0 0.0
      %3416 = vmatpush1.msra.mxu0 0.0
      %3417 = vmatprep.subr.mxu0 0.0
      %3418 = vmatpush1.msra.mxu0 0.0
      %3419 = vmatprep.subr.mxu0 0.0
      %3420 = vmatpush1.msra.mxu0 0.0
      %3421 = vmatprep.subr.mxu0 0.0
      %3422 = vmatpush1.msra.mxu0 0.0
      %3423 = vmatprep.subr.mxu0 0.0
      %3424 = vmatpush1.msra.mxu0 0.0
      %3425 = vmatprep.subr.mxu0 0.0
      %3426 = vmatpush1.msra.mxu0 0.0
      %3427 = vmatprep.subr.mxu0 0.0
      %3428 = vmatpush1.msra.mxu0 0.0
      %3429 = vmatprep.subr.mxu0 0.0
      %3430 = vmatpush1.msra.mxu0 0.0
      %3431 = vmatprep.subr.mxu0 0.0
      %3432 = vmatpush1.msra.mxu0 0.0
      %3433 = vmatprep.subr.mxu0 0.0
      %3434 = vmatpush1.msra.mxu0 0.0
      %3435 = vmatprep.subr.mxu0 0.0
      %3436 = vmatpush1.msra.mxu0 0.0
      %3437 = vmatprep.mubr.f32.mxu0 0.0
      %3438 = vmatmul.mubr.f32.gmra.mrb[0].mxu0 %v3085
      %v3439 = vpop.f32.mrb[0].mxu0
      %v3440 = vadd.f32 0.0, %v3439
      %v3441 = vpop.f32.mrb[0].mxu0
      %v3442 = vadd.f32 0.0, %v3441
      %3443 = vdwg.mxu0
      %3444 = vmatprep.subr.mxu0 %v2453
      %3445 = vmatpush1.msra.mxu0 %v2451
      %3446 = vmatprep.subr.mxu0 0.0
      %3447 = vmatpush1.msra.mxu0 0.0
      %3448 = vmatprep.subr.mxu0 0.0
      %3449 = vmatpush1.msra.mxu0 0.0
      %3450 = vmatprep.subr.mxu0 0.0
      %3451 = vmatpush1.msra.mxu0 0.0
      %3452 = vmatprep.subr.mxu0 0.0
      %3453 = vmatpush1.msra.mxu0 0.0
      %3454 = vmatprep.subr.mxu0 0.0
      %3455 = vmatpush1.msra.mxu0 0.0
      %3456 = vmatprep.subr.mxu0 0.0
      %3457 = vmatpush1.msra.mxu0 0.0
      %3458 = vmatprep.subr.mxu0 0.0
      %3459 = vmatpush1.msra.mxu0 0.0
      %3460 = vmatprep.subr.mxu0 0.0
      %3461 = vmatpush1.msra.mxu0 0.0
      %3462 = vmatprep.subr.mxu0 0.0
      %3463 = vmatpush1.msra.mxu0 0.0
      %3464 = vmatprep.subr.mxu0 0.0
      %3465 = vmatpush1.msra.mxu0 0.0
      %3466 = vmatprep.subr.mxu0 0.0
      %3467 = vmatpush1.msra.mxu0 0.0
      %3468 = vmatprep.subr.mxu0 0.0
      %3469 = vmatpush1.msra.mxu0 0.0
      %3470 = vmatprep.subr.mxu0 0.0
      %3471 = vmatpush1.msra.mxu0 0.0
      %3472 = vmatprep.subr.mxu0 0.0
      %3473 = vmatpush1.msra.mxu0 0.0
      %3474 = vmatprep.subr.mxu0 0.0
      %3475 = vmatpush1.msra.mxu0 0.0
      %3476 = vmatprep.subr.mxu0 0.0
      %3477 = vmatpush1.msra.mxu0 0.0
      %3478 = vmatprep.subr.mxu0 0.0
      %3479 = vmatpush1.msra.mxu0 0.0
      %3480 = vmatprep.subr.mxu0 0.0
      %3481 = vmatpush1.msra.mxu0 0.0
      %3482 = vmatprep.subr.mxu0 0.0
      %3483 = vmatpush1.msra.mxu0 0.0
      %3484 = vmatprep.subr.mxu0 0.0
      %3485 = vmatpush1.msra.mxu0 0.0
      %3486 = vmatprep.subr.mxu0 0.0
      %3487 = vmatpush1.msra.mxu0 0.0
      %3488 = vmatprep.subr.mxu0 0.0
      %3489 = vmatpush1.msra.mxu0 0.0
      %3490 = vmatprep.subr.mxu0 0.0
      %3491 = vmatpush1.msra.mxu0 0.0
      %3492 = vmatprep.subr.mxu0 0.0
      %3493 = vmatpush1.msra.mxu0 0.0
      %3494 = vmatprep.subr.mxu0 0.0
      %3495 = vmatpush1.msra.mxu0 0.0
      %3496 = vmatprep.subr.mxu0 0.0
      %3497 = vmatpush1.msra.mxu0 0.0
      %3498 = vmatprep.subr.mxu0 0.0
      %3499 = vmatpush1.msra.mxu0 0.0
      %3500 = vmatprep.subr.mxu0 0.0
      %3501 = vmatpush1.msra.mxu0 0.0
      %3502 = vmatprep.subr.mxu0 0.0
      %3503 = vmatpush1.msra.mxu0 0.0
      %3504 = vmatprep.subr.mxu0 0.0
      %3505 = vmatpush1.msra.mxu0 0.0
      %3506 = vmatprep.subr.mxu0 0.0
      %3507 = vmatpush1.msra.mxu0 0.0
      %3508 = vmatprep.mubr.f32.mxu0 0.0
      %3509 = vmatmul.mubr.f32.gmra.mrb[0].mxu0 %v3085
      %v3510 = vpop.f32.mrb[0].mxu0
      %v3511 = vadd.f32 0.0, %v3510
      %v3512 = vpop.f32.mrb[0].mxu0
      %v3513 = vadd.f32 0.0, %v3512
      %3514 = vdwg.mxu0
      %3515 = vmatprep.subr.mxu0 %v2457
      %3516 = vmatpush1.msra.mxu0 %v2455
      %3517 = vmatprep.subr.mxu0 0.0
      %3518 = vmatpush1.msra.mxu0 0.0
      %3519 = vmatprep.subr.mxu0 0.0
      %3520 = vmatpush1.msra.mxu0 0.0
      %3521 = vmatprep.subr.mxu0 0.0
      %3522 = vmatpush1.msra.mxu0 0.0
      %3523 = vmatprep.subr.mxu0 0.0
      %3524 = vmatpush1.msra.mxu0 0.0
      %3525 = vmatprep.subr.mxu0 0.0
      %3526 = vmatpush1.msra.mxu0 0.0
      %3527 = vmatprep.subr.mxu0 0.0
      %3528 = vmatpush1.msra.mxu0 0.0
      %3529 = vmatprep.subr.mxu0 0.0
      %3530 = vmatpush1.msra.mxu0 0.0
      %3531 = vmatprep.subr.mxu0 0.0
      %3532 = vmatpush1.msra.mxu0 0.0
      %3533 = vmatprep.subr.mxu0 0.0
      %3534 = vmatpush1.msra.mxu0 0.0
      %3535 = vmatprep.subr.mxu0 0.0
      %3536 = vmatpush1.msra.mxu0 0.0
      %3537 = vmatprep.subr.mxu0 0.0
      %3538 = vmatpush1.msra.mxu0 0.0
      %3539 = vmatprep.subr.mxu0 0.0
      %3540 = vmatpush1.msra.mxu0 0.0
      %3541 = vmatprep.subr.mxu0 0.0
      %3542 = vmatpush1.msra.mxu0 0.0
      %3543 = vmatprep.subr.mxu0 0.0
      %3544 = vmatpush1.msra.mxu0 0.0
      %3545 = vmatprep.subr.mxu0 0.0
      %3546 = vmatpush1.msra.mxu0 0.0
      %3547 = vmatprep.subr.mxu0 0.0
      %3548 = vmatpush1.msra.mxu0 0.0
      %3549 = vmatprep.subr.mxu0 0.0
      %3550 = vmatpush1.msra.mxu0 0.0
      %3551 = vmatprep.subr.mxu0 0.0
      %3552 = vmatpush1.msra.mxu0 0.0
      %3553 = vmatprep.subr.mxu0 0.0
      %3554 = vmatpush1.msra.mxu0 0.0
      %3555 = vmatprep.subr.mxu0 0.0
      %3556 = vmatpush1.msra.mxu0 0.0
      %3557 = vmatprep.subr.mxu0 0.0
      %3558 = vmatpush1.msra.mxu0 0.0
      %3559 = vmatprep.subr.mxu0 0.0
      %3560 = vmatpush1.msra.mxu0 0.0
      %3561 = vmatprep.subr.mxu0 0.0
      %3562 = vmatpush1.msra.mxu0 0.0
      %3563 = vmatprep.subr.mxu0 0.0
      %3564 = vmatpush1.msra.mxu0 0.0
      %3565 = vmatprep.subr.mxu0 0.0
      %3566 = vmatpush1.msra.mxu0 0.0
      %3567 = vmatprep.subr.mxu0 0.0
      %3568 = vmatpush1.msra.mxu0 0.0
      %3569 = vmatprep.subr.mxu0 0.0
      %3570 = vmatpush1.msra.mxu0 0.0
      %3571 = vmatprep.subr.mxu0 0.0
      %3572 = vmatpush1.msra.mxu0 0.0
      %3573 = vmatprep.subr.mxu0 0.0
      %3574 = vmatpush1.msra.mxu0 0.0
      %3575 = vmatprep.subr.mxu0 0.0
      %3576 = vmatpush1.msra.mxu0 0.0
      %3577 = vmatprep.subr.mxu0 0.0
      %3578 = vmatpush1.msra.mxu0 0.0
      %3579 = vmatprep.mubr.f32.mxu0 0.0
      %3580 = vmatmul.mubr.f32.gmra.mrb[0].mxu0 %v3085
      %v3581 = vpop.f32.mrb[0].mxu0
      %v3582 = vadd.f32 0.0, %v3581
      %v3583 = vpop.f32.mrb[0].mxu0
      %v3584 = vadd.f32 0.0, %v3583
      %3585 = vdwg.mxu0
      %3586 = vmatprep.subr.mxu0 %v2461
      %3587 = vmatpush1.msra.mxu0 %v2459
      %3588 = vmatprep.subr.mxu0 0.0
      %3589 = vmatpush1.msra.mxu0 0.0
      %3590 = vmatprep.subr.mxu0 0.0
      %3591 = vmatpush1.msra.mxu0 0.0
      %3592 = vmatprep.subr.mxu0 0.0
      %3593 = vmatpush1.msra.mxu0 0.0
      %3594 = vmatprep.subr.mxu0 0.0
      %3595 = vmatpush1.msra.mxu0 0.0
      %3596 = vmatprep.subr.mxu0 0.0
      %3597 = vmatpush1.msra.mxu0 0.0
      %3598 = vmatprep.subr.mxu0 0.0
      %3599 = vmatpush1.msra.mxu0 0.0
      %3600 = vmatprep.subr.mxu0 0.0
      %3601 = vmatpush1.msra.mxu0 0.0
      %3602 = vmatprep.subr.mxu0 0.0
      %3603 = vmatpush1.msra.mxu0 0.0
      %3604 = vmatprep.subr.mxu0 0.0
      %3605 = vmatpush1.msra.mxu0 0.0
      %3606 = vmatprep.subr.mxu0 0.0
      %3607 = vmatpush1.msra.mxu0 0.0
      %3608 = vmatprep.subr.mxu0 0.0
      %3609 = vmatpush1.msra.mxu0 0.0
      %3610 = vmatprep.subr.mxu0 0.0
      %3611 = vmatpush1.msra.mxu0 0.0
      %3612 = vmatprep.subr.mxu0 0.0
      %3613 = vmatpush1.msra.mxu0 0.0
      %3614 = vmatprep.subr.mxu0 0.0
      %3615 = vmatpush1.msra.mxu0 0.0
      %3616 = vmatprep.subr.mxu0 0.0
      %3617 = vmatpush1.msra.mxu0 0.0
      %3618 = vmatprep.subr.mxu0 0.0
      %3619 = vmatpush1.msra.mxu0 0.0
      %3620 = vmatprep.subr.mxu0 0.0
      %3621 = vmatpush1.msra.mxu0 0.0
      %3622 = vmatprep.subr.mxu0 0.0
      %3623 = vmatpush1.msra.mxu0 0.0
      %3624 = vmatprep.subr.mxu0 0.0
      %3625 = vmatpush1.msra.mxu0 0.0
      %3626 = vmatprep.subr.mxu0 0.0
      %3627 = vmatpush1.msra.mxu0 0.0
      %3628 = vmatprep.subr.mxu0 0.0
      %3629 = vmatpush1.msra.mxu0 0.0
      %3630 = vmatprep.subr.mxu0 0.0
      %3631 = vmatpush1.msra.mxu0 0.0
      %3632 = vmatprep.subr.mxu0 0.0
      %3633 = vmatpush1.msra.mxu0 0.0
      %3634 = vmatprep.subr.mxu0 0.0
      %3635 = vmatpush1.msra.mxu0 0.0
      %3636 = vmatprep.subr.mxu0 0.0
      %3637 = vmatpush1.msra.mxu0 0.0
      %3638 = vmatprep.subr.mxu0 0.0
      %3639 = vmatpush1.msra.mxu0 0.0
      %3640 = vmatprep.subr.mxu0 0.0
      %3641 = vmatpush1.msra.mxu0 0.0
      %3642 = vmatprep.subr.mxu0 0.0
      %3643 = vmatpush1.msra.mxu0 0.0
      %3644 = vmatprep.subr.mxu0 0.0
      %3645 = vmatpush1.msra.mxu0 0.0
      %3646 = vmatprep.subr.mxu0 0.0
      %3647 = vmatpush1.msra.mxu0 0.0
      %3648 = vmatprep.subr.mxu0 0.0
      %3649 = vmatpush1.msra.mxu0 0.0
      %3650 = vmatprep.mubr.f32.mxu0 0.0
      %3651 = vmatmul.mubr.f32.gmra.mrb[0].mxu0 %v3085
      %v3652 = vpop.f32.mrb[0].mxu0
      %v3653 = vadd.f32 0.0, %v3652
      %v3654 = vpop.f32.mrb[0].mxu0
      %v3655 = vadd.f32 0.0, %v3654
      %3656 = vdwg.mxu0
      %v3657 = vld [vmem:[%s1617] sm:$0xff]
      %v3658 = vld [vmem:[%s1617 + $0x8] sm:$0xff]
      %v3659 = vld [vmem:[%s1617 + $0x10] sm:$0xff]
      %v3660 = vld [vmem:[%s1617 + $0x18] sm:$0xff]
      %v3661 = vld [vmem:[%s1617 + $0x20] sm:$0xff]
      %v3662 = vld [vmem:[%s1617 + $0x28] sm:$0xff]
      %v3663 = vld [vmem:[%s1617 + $0x30] sm:$0xff]
      %v3664 = vld [vmem:[%s1617 + $0x38] sm:$0xff]
      %v3665 = vld [vmem:[%s1617 + $0x40] sm:$0xff]
      %v3666 = vld [vmem:[%s1617 + $0x48] sm:$0xff]
      %v3667 = vld [vmem:[%s1617 + $0x50] sm:$0xff]
      %v3668 = vld [vmem:[%s1617 + $0x58] sm:$0xff]
      %v3669 = vld [vmem:[%s1617 + $0x60] sm:$0xff]
      %v3670 = vld [vmem:[%s1617 + $0x68] sm:$0xff]
      %v3671 = vld [vmem:[%s1617 + $0x70] sm:$0xff]
      %v3672 = vld [vmem:[%s1617 + $0x78] sm:$0xff]
      %v3673 = vadd.f32 %v3657, %v3156
      %v3674 = vadd.f32 %v3658, %v3158
      %v3675 = vadd.f32 %v3659, %v3227
      %v3676 = vadd.f32 %v3660, %v3229
      %v3677 = vadd.f32 %v3661, %v3298
      %v3678 = vadd.f32 %v3662, %v3300
      %v3679 = vadd.f32 %v3663, %v3369
      %v3680 = vadd.f32 %v3664, %v3371
      %v3681 = vadd.f32 %v3665, %v3440
      %v3682 = vadd.f32 %v3666, %v3442
      %v3683 = vadd.f32 %v3667, %v3511
      %v3684 = vadd.f32 %v3668, %v3513
      %v3685 = vadd.f32 %v3669, %v3582
      %v3686 = vadd.f32 %v3670, %v3584
      %v3687 = vadd.f32 %v3671, %v3653
      %v3688 = vadd.f32 %v3672, %v3655
      %3689 = vst [vmem:[%s1617] sm:$0xff] %v3673
      %3690 = vst [vmem:[%s1617 + $0x8] sm:$0xff] %v3674
      %3691 = vst [vmem:[%s1617 + $0x10] sm:$0xff] %v3675
      %3692 = vst [vmem:[%s1617 + $0x18] sm:$0xff] %v3676
      %3693 = vst [vmem:[%s1617 + $0x20] sm:$0xff] %v3677
      %3694 = vst [vmem:[%s1617 + $0x28] sm:$0xff] %v3678
      %3695 = vst [vmem:[%s1617 + $0x30] sm:$0xff] %v3679
      %3696 = vst [vmem:[%s1617 + $0x38] sm:$0xff] %v3680
      %3697 = vst [vmem:[%s1617 + $0x40] sm:$0xff] %v3681
      %3698 = vst [vmem:[%s1617 + $0x48] sm:$0xff] %v3682
      %3699 = vst [vmem:[%s1617 + $0x50] sm:$0xff] %v3683
      %3700 = vst [vmem:[%s1617 + $0x58] sm:$0xff] %v3684
      %3701 = vst [vmem:[%s1617 + $0x60] sm:$0xff] %v3685
      %3702 = vst [vmem:[%s1617 + $0x68] sm:$0xff] %v3686
      %3703 = vst [vmem:[%s1617 + $0x70] sm:$0xff] %v3687
      %3704 = vst [vmem:[%s1617 + $0x78] sm:$0xff] %v3688
      %v3706 = vsel %vm287, %v260, 0
      %3708 = vmatprep.subr.mxu0 %v2433
      %3709 = vmatpush1.msra.mxu0 %v3087
      %3710 = vmatprep.subr.mxu0 0.0
      %3711 = vmatpush1.msra.mxu0 0.0
      %3712 = vmatprep.subr.mxu0 0.0
      %3713 = vmatpush1.msra.mxu0 0.0
      %3714 = vmatprep.subr.mxu0 0.0
      %3715 = vmatpush1.msra.mxu0 0.0
      %3716 = vmatprep.subr.mxu0 0.0
      %3717 = vmatpush1.msra.mxu0 0.0
      %3718 = vmatprep.subr.mxu0 0.0
      %3719 = vmatpush1.msra.mxu0 0.0
      %3720 = vmatprep.subr.mxu0 0.0
      %3721 = vmatpush1.msra.mxu0 0.0
      %3722 = vmatprep.subr.mxu0 0.0
      %3723 = vmatpush1.msra.mxu0 0.0
      %3724 = vmatprep.subr.mxu0 0.0
      %3725 = vmatpush1.msra.mxu0 0.0
      %3726 = vmatprep.subr.mxu0 0.0
      %3727 = vmatpush1.msra.mxu0 0.0
      %3728 = vmatprep.subr.mxu0 0.0
      %3729 = vmatpush1.msra.mxu0 0.0
      %3730 = vmatprep.subr.mxu0 0.0
      %3731 = vmatpush1.msra.mxu0 0.0
      %3732 = vmatprep.subr.mxu0 0.0
      %3733 = vmatpush1.msra.mxu0 0.0
      %3734 = vmatprep.subr.mxu0 0.0
      %3735 = vmatpush1.msra.mxu0 0.0
      %3736 = vmatprep.subr.mxu0 0.0
      %3737 = vmatpush1.msra.mxu0 0.0
      %3738 = vmatprep.subr.mxu0 0.0
      %3739 = vmatpush1.msra.mxu0 0.0
      %3740 = vmatprep.subr.mxu0 0.0
      %3741 = vmatpush1.msra.mxu0 0.0
      %3742 = vmatprep.subr.mxu0 0.0
      %3743 = vmatpush1.msra.mxu0 0.0
      %3744 = vmatprep.subr.mxu0 0.0
      %3745 = vmatpush1.msra.mxu0 0.0
      %3746 = vmatprep.subr.mxu0 0.0
      %3747 = vmatpush1.msra.mxu0 0.0
      %3748 = vmatprep.subr.mxu0 0.0
      %3749 = vmatpush1.msra.mxu0 0.0
      %3750 = vmatprep.subr.mxu0 0.0
      %3751 = vmatpush1.msra.mxu0 0.0
      %3752 = vmatprep.subr.mxu0 0.0
      %3753 = vmatpush1.msra.mxu0 0.0
      %3754 = vmatprep.subr.mxu0 0.0
      %3755 = vmatpush1.msra.mxu0 0.0
      %3756 = vmatprep.subr.mxu0 0.0
      %3757 = vmatpush1.msra.mxu0 0.0
      %3758 = vmatprep.subr.mxu0 0.0
      %3759 = vmatpush1.msra.mxu0 0.0
      %3760 = vmatprep.subr.mxu0 0.0
      %3761 = vmatpush1.msra.mxu0 0.0
      %3762 = vmatprep.subr.mxu0 0.0
      %3763 = vmatpush1.msra.mxu0 0.0
      %3764 = vmatprep.subr.mxu0 0.0
      %3765 = vmatpush1.msra.mxu0 0.0
      %3766 = vmatprep.subr.mxu0 0.0
      %3767 = vmatpush1.msra.mxu0 0.0
      %3768 = vmatprep.subr.mxu0 0.0
      %3769 = vmatpush1.msra.mxu0 0.0
      %3770 = vmatprep.subr.mxu0 0.0
      %3771 = vmatpush1.msra.mxu0 0.0
      %3772 = vmatprep.mubr.f32.mxu0 0.0
      %3773 = vmatmul.mubr.f32.gmra.mrb[0].mxu0 %v3706
      %v3774 = vpop.f32.mrb[0].mxu0
      %v3775 = vadd.f32 0.0, %v3774
      %v3776 = vpop.f32.mrb[0].mxu0
      %v3777 = vadd.f32 0.0, %v3776
      %3778 = vdwg.mxu0
      %3779 = vmatprep.subr.mxu0 %v2437
      %3780 = vmatpush1.msra.mxu0 %v2435
      %3781 = vmatprep.subr.mxu0 0.0
      %3782 = vmatpush1.msra.mxu0 0.0
      %3783 = vmatprep.subr.mxu0 0.0
      %3784 = vmatpush1.msra.mxu0 0.0
      %3785 = vmatprep.subr.mxu0 0.0
      %3786 = vmatpush1.msra.mxu0 0.0
      %3787 = vmatprep.subr.mxu0 0.0
      %3788 = vmatpush1.msra.mxu0 0.0
      %3789 = vmatprep.subr.mxu0 0.0
      %3790 = vmatpush1.msra.mxu0 0.0
      %3791 = vmatprep.subr.mxu0 0.0
      %3792 = vmatpush1.msra.mxu0 0.0
      %3793 = vmatprep.subr.mxu0 0.0
      %3794 = vmatpush1.msra.mxu0 0.0
      %3795 = vmatprep.subr.mxu0 0.0
      %3796 = vmatpush1.msra.mxu0 0.0
      %3797 = vmatprep.subr.mxu0 0.0
      %3798 = vmatpush1.msra.mxu0 0.0
      %3799 = vmatprep.subr.mxu0 0.0
      %3800 = vmatpush1.msra.mxu0 0.0
      %3801 = vmatprep.subr.mxu0 0.0
      %3802 = vmatpush1.msra.mxu0 0.0
      %3803 = vmatprep.subr.mxu0 0.0
      %3804 = vmatpush1.msra.mxu0 0.0
      %3805 = vmatprep.subr.mxu0 0.0
      %3806 = vmatpush1.msra.mxu0 0.0
      %3807 = vmatprep.subr.mxu0 0.0
      %3808 = vmatpush1.msra.mxu0 0.0
      %3809 = vmatprep.subr.mxu0 0.0
      %3810 = vmatpush1.msra.mxu0 0.0
      %3811 = vmatprep.subr.mxu0 0.0
      %3812 = vmatpush1.msra.mxu0 0.0
      %3813 = vmatprep.subr.mxu0 0.0
      %3814 = vmatpush1.msra.mxu0 0.0
      %3815 = vmatprep.subr.mxu0 0.0
      %3816 = vmatpush1.msra.mxu0 0.0
      %3817 = vmatprep.subr.mxu0 0.0
      %3818 = vmatpush1.msra.mxu0 0.0
      %3819 = vmatprep.subr.mxu0 0.0
      %3820 = vmatpush1.msra.mxu0 0.0
      %3821 = vmatprep.subr.mxu0 0.0
      %3822 = vmatpush1.msra.mxu0 0.0
      %3823 = vmatprep.subr.mxu0 0.0
      %3824 = vmatpush1.msra.mxu0 0.0
      %3825 = vmatprep.subr.mxu0 0.0
      %3826 = vmatpush1.msra.mxu0 0.0
      %3827 = vmatprep.subr.mxu0 0.0
      %3828 = vmatpush1.msra.mxu0 0.0
      %3829 = vmatprep.subr.mxu0 0.0
      %3830 = vmatpush1.msra.mxu0 0.0
      %3831 = vmatprep.subr.mxu0 0.0
      %3832 = vmatpush1.msra.mxu0 0.0
      %3833 = vmatprep.subr.mxu0 0.0
      %3834 = vmatpush1.msra.mxu0 0.0
      %3835 = vmatprep.subr.mxu0 0.0
      %3836 = vmatpush1.msra.mxu0 0.0
      %3837 = vmatprep.subr.mxu0 0.0
      %3838 = vmatpush1.msra.mxu0 0.0
      %3839 = vmatprep.subr.mxu0 0.0
      %3840 = vmatpush1.msra.mxu0 0.0
      %3841 = vmatprep.subr.mxu0 0.0
      %3842 = vmatpush1.msra.mxu0 0.0
      %3843 = vmatprep.mubr.f32.mxu0 0.0
      %3844 = vmatmul.mubr.f32.gmra.mrb[0].mxu0 %v3706
      %v3845 = vpop.f32.mrb[0].mxu0
      %v3846 = vadd.f32 0.0, %v3845
      %v3847 = vpop.f32.mrb[0].mxu0
      %v3848 = vadd.f32 0.0, %v3847
      %3849 = vdwg.mxu0
      %3850 = vmatprep.subr.mxu0 %v2441
      %3851 = vmatpush1.msra.mxu0 %v2439
      %3852 = vmatprep.subr.mxu0 0.0
      %3853 = vmatpush1.msra.mxu0 0.0
      %3854 = vmatprep.subr.mxu0 0.0
      %3855 = vmatpush1.msra.mxu0 0.0
      %3856 = vmatprep.subr.mxu0 0.0
      %3857 = vmatpush1.msra.mxu0 0.0
      %3858 = vmatprep.subr.mxu0 0.0
      %3859 = vmatpush1.msra.mxu0 0.0
      %3860 = vmatprep.subr.mxu0 0.0
      %3861 = vmatpush1.msra.mxu0 0.0
      %3862 = vmatprep.subr.mxu0 0.0
      %3863 = vmatpush1.msra.mxu0 0.0
      %3864 = vmatprep.subr.mxu0 0.0
      %3865 = vmatpush1.msra.mxu0 0.0
      %3866 = vmatprep.subr.mxu0 0.0
      %3867 = vmatpush1.msra.mxu0 0.0
      %3868 = vmatprep.subr.mxu0 0.0
      %3869 = vmatpush1.msra.mxu0 0.0
      %3870 = vmatprep.subr.mxu0 0.0
      %3871 = vmatpush1.msra.mxu0 0.0
      %3872 = vmatprep.subr.mxu0 0.0
      %3873 = vmatpush1.msra.mxu0 0.0
      %3874 = vmatprep.subr.mxu0 0.0
      %3875 = vmatpush1.msra.mxu0 0.0
      %3876 = vmatprep.subr.mxu0 0.0
      %3877 = vmatpush1.msra.mxu0 0.0
      %3878 = vmatprep.subr.mxu0 0.0
      %3879 = vmatpush1.msra.mxu0 0.0
      %3880 = vmatprep.subr.mxu0 0.0
      %3881 = vmatpush1.msra.mxu0 0.0
      %3882 = vmatprep.subr.mxu0 0.0
      %3883 = vmatpush1.msra.mxu0 0.0
      %3884 = vmatprep.subr.mxu0 0.0
      %3885 = vmatpush1.msra.mxu0 0.0
      %3886 = vmatprep.subr.mxu0 0.0
      %3887 = vmatpush1.msra.mxu0 0.0
      %3888 = vmatprep.subr.mxu0 0.0
      %3889 = vmatpush1.msra.mxu0 0.0
      %3890 = vmatprep.subr.mxu0 0.0
      %3891 = vmatpush1.msra.mxu0 0.0
      %3892 = vmatprep.subr.mxu0 0.0
      %3893 = vmatpush1.msra.mxu0 0.0
      %3894 = vmatprep.subr.mxu0 0.0
      %3895 = vmatpush1.msra.mxu0 0.0
      %3896 = vmatprep.subr.mxu0 0.0
      %3897 = vmatpush1.msra.mxu0 0.0
      %3898 = vmatprep.subr.mxu0 0.0
      %3899 = vmatpush1.msra.mxu0 0.0
      %3900 = vmatprep.subr.mxu0 0.0
      %3901 = vmatpush1.msra.mxu0 0.0
      %3902 = vmatprep.subr.mxu0 0.0
      %3903 = vmatpush1.msra.mxu0 0.0
      %3904 = vmatprep.subr.mxu0 0.0
      %3905 = vmatpush1.msra.mxu0 0.0
      %3906 = vmatprep.subr.mxu0 0.0
      %3907 = vmatpush1.msra.mxu0 0.0
      %3908 = vmatprep.subr.mxu0 0.0
      %3909 = vmatpush1.msra.mxu0 0.0
      %3910 = vmatprep.subr.mxu0 0.0
      %3911 = vmatpush1.msra.mxu0 0.0
      %3912 = vmatprep.subr.mxu0 0.0
      %3913 = vmatpush1.msra.mxu0 0.0
      %3914 = vmatprep.mubr.f32.mxu0 0.0
      %3915 = vmatmul.mubr.f32.gmra.mrb[0].mxu0 %v3706
      %v3916 = vpop.f32.mrb[0].mxu0
      %v3917 = vadd.f32 0.0, %v3916
      %v3918 = vpop.f32.mrb[0].mxu0
      %v3919 = vadd.f32 0.0, %v3918
      %3920 = vdwg.mxu0
      %3921 = vmatprep.subr.mxu0 %v2445
      %3922 = vmatpush1.msra.mxu0 %v2443
      %3923 = vmatprep.subr.mxu0 0.0
      %3924 = vmatpush1.msra.mxu0 0.0
      %3925 = vmatprep.subr.mxu0 0.0
      %3926 = vmatpush1.msra.mxu0 0.0
      %3927 = vmatprep.subr.mxu0 0.0
      %3928 = vmatpush1.msra.mxu0 0.0
      %3929 = vmatprep.subr.mxu0 0.0
      %3930 = vmatpush1.msra.mxu0 0.0
      %3931 = vmatprep.subr.mxu0 0.0
      %3932 = vmatpush1.msra.mxu0 0.0
      %3933 = vmatprep.subr.mxu0 0.0
      %3934 = vmatpush1.msra.mxu0 0.0
      %3935 = vmatprep.subr.mxu0 0.0
      %3936 = vmatpush1.msra.mxu0 0.0
      %3937 = vmatprep.subr.mxu0 0.0
      %3938 = vmatpush1.msra.mxu0 0.0
      %3939 = vmatprep.subr.mxu0 0.0
      %3940 = vmatpush1.msra.mxu0 0.0
      %3941 = vmatprep.subr.mxu0 0.0
      %3942 = vmatpush1.msra.mxu0 0.0
      %3943 = vmatprep.subr.mxu0 0.0
      %3944 = vmatpush1.msra.mxu0 0.0
      %3945 = vmatprep.subr.mxu0 0.0
      %3946 = vmatpush1.msra.mxu0 0.0
      %3947 = vmatprep.subr.mxu0 0.0
      %3948 = vmatpush1.msra.mxu0 0.0
      %3949 = vmatprep.subr.mxu0 0.0
      %3950 = vmatpush1.msra.mxu0 0.0
      %3951 = vmatprep.subr.mxu0 0.0
      %3952 = vmatpush1.msra.mxu0 0.0
      %3953 = vmatprep.subr.mxu0 0.0
      %3954 = vmatpush1.msra.mxu0 0.0
      %3955 = vmatprep.subr.mxu0 0.0
      %3956 = vmatpush1.msra.mxu0 0.0
      %3957 = vmatprep.subr.mxu0 0.0
      %3958 = vmatpush1.msra.mxu0 0.0
      %3959 = vmatprep.subr.mxu0 0.0
      %3960 = vmatpush1.msra.mxu0 0.0
      %3961 = vmatprep.subr.mxu0 0.0
      %3962 = vmatpush1.msra.mxu0 0.0
      %3963 = vmatprep.subr.mxu0 0.0
      %3964 = vmatpush1.msra.mxu0 0.0
      %3965 = vmatprep.subr.mxu0 0.0
      %3966 = vmatpush1.msra.mxu0 0.0
      %3967 = vmatprep.subr.mxu0 0.0
      %3968 = vmatpush1.msra.mxu0 0.0
      %3969 = vmatprep.subr.mxu0 0.0
      %3970 = vmatpush1.msra.mxu0 0.0
      %3971 = vmatprep.subr.mxu0 0.0
      %3972 = vmatpush1.msra.mxu0 0.0
      %3973 = vmatprep.subr.mxu0 0.0
      %3974 = vmatpush1.msra.mxu0 0.0
      %3975 = vmatprep.subr.mxu0 0.0
      %3976 = vmatpush1.msra.mxu0 0.0
      %3977 = vmatprep.subr.mxu0 0.0
      %3978 = vmatpush1.msra.mxu0 0.0
      %3979 = vmatprep.subr.mxu0 0.0
      %3980 = vmatpush1.msra.mxu0 0.0
      %3981 = vmatprep.subr.mxu0 0.0
      %3982 = vmatpush1.msra.mxu0 0.0
      %3983 = vmatprep.subr.mxu0 0.0
      %3984 = vmatpush1.msra.mxu0 0.0
      %3985 = vmatprep.mubr.f32.mxu0 0.0
      %3986 = vmatmul.mubr.f32.gmra.mrb[0].mxu0 %v3706
      %v3987 = vpop.f32.mrb[0].mxu0
      %v3988 = vadd.f32 0.0, %v3987
      %v3989 = vpop.f32.mrb[0].mxu0
      %v3990 = vadd.f32 0.0, %v3989
      %3991 = vdwg.mxu0
      %3992 = vmatprep.subr.mxu0 %v2449
      %3993 = vmatpush1.msra.mxu0 %v2447
      %3994 = vmatprep.subr.mxu0 0.0
      %3995 = vmatpush1.msra.mxu0 0.0
      %3996 = vmatprep.subr.mxu0 0.0
      %3997 = vmatpush1.msra.mxu0 0.0
      %3998 = vmatprep.subr.mxu0 0.0
      %3999 = vmatpush1.msra.mxu0 0.0
      %4000 = vmatprep.subr.mxu0 0.0
      %4001 = vmatpush1.msra.mxu0 0.0
      %4002 = vmatprep.subr.mxu0 0.0
      %4003 = vmatpush1.msra.mxu0 0.0
      %4004 = vmatprep.subr.mxu0 0.0
      %4005 = vmatpush1.msra.mxu0 0.0
      %4006 = vmatprep.subr.mxu0 0.0
      %4007 = vmatpush1.msra.mxu0 0.0
      %4008 = vmatprep.subr.mxu0 0.0
      %4009 = vmatpush1.msra.mxu0 0.0
      %4010 = vmatprep.subr.mxu0 0.0
      %4011 = vmatpush1.msra.mxu0 0.0
      %4012 = vmatprep.subr.mxu0 0.0
      %4013 = vmatpush1.msra.mxu0 0.0
      %4014 = vmatprep.subr.mxu0 0.0
      %4015 = vmatpush1.msra.mxu0 0.0
      %4016 = vmatprep.subr.mxu0 0.0
      %4017 = vmatpush1.msra.mxu0 0.0
      %4018 = vmatprep.subr.mxu0 0.0
      %4019 = vmatpush1.msra.mxu0 0.0
      %4020 = vmatprep.subr.mxu0 0.0
      %4021 = vmatpush1.msra.mxu0 0.0
      %4022 = vmatprep.subr.mxu0 0.0
      %4023 = vmatpush1.msra.mxu0 0.0
      %4024 = vmatprep.subr.mxu0 0.0
      %4025 = vmatpush1.msra.mxu0 0.0
      %4026 = vmatprep.subr.mxu0 0.0
      %4027 = vmatpush1.msra.mxu0 0.0
      %4028 = vmatprep.subr.mxu0 0.0
      %4029 = vmatpush1.msra.mxu0 0.0
      %4030 = vmatprep.subr.mxu0 0.0
      %4031 = vmatpush1.msra.mxu0 0.0
      %4032 = vmatprep.subr.mxu0 0.0
      %4033 = vmatpush1.msra.mxu0 0.0
      %4034 = vmatprep.subr.mxu0 0.0
      %4035 = vmatpush1.msra.mxu0 0.0
      %4036 = vmatprep.subr.mxu0 0.0
      %4037 = vmatpush1.msra.mxu0 0.0
      %4038 = vmatprep.subr.mxu0 0.0
      %4039 = vmatpush1.msra.mxu0 0.0
      %4040 = vmatprep.subr.mxu0 0.0
      %4041 = vmatpush1.msra.mxu0 0.0
      %4042 = vmatprep.subr.mxu0 0.0
      %4043 = vmatpush1.msra.mxu0 0.0
      %4044 = vmatprep.subr.mxu0 0.0
      %4045 = vmatpush1.msra.mxu0 0.0
      %4046 = vmatprep.subr.mxu0 0.0
      %4047 = vmatpush1.msra.mxu0 0.0
      %4048 = vmatprep.subr.mxu0 0.0
      %4049 = vmatpush1.msra.mxu0 0.0
      %4050 = vmatprep.subr.mxu0 0.0
      %4051 = vmatpush1.msra.mxu0 0.0
      %4052 = vmatprep.subr.mxu0 0.0
      %4053 = vmatpush1.msra.mxu0 0.0
      %4054 = vmatprep.subr.mxu0 0.0
      %4055 = vmatpush1.msra.mxu0 0.0
      %4056 = vmatprep.mubr.f32.mxu0 0.0
      %4057 = vmatmul.mubr.f32.gmra.mrb[0].mxu0 %v3706
      %v4058 = vpop.f32.mrb[0].mxu0
      %v4059 = vadd.f32 0.0, %v4058
      %v4060 = vpop.f32.mrb[0].mxu0
      %v4061 = vadd.f32 0.0, %v4060
      %4062 = vdwg.mxu0
      %4063 = vmatprep.subr.mxu0 %v2453
      %4064 = vmatpush1.msra.mxu0 %v2451
      %4065 = vmatprep.subr.mxu0 0.0
      %4066 = vmatpush1.msra.mxu0 0.0
      %4067 = vmatprep.subr.mxu0 0.0
      %4068 = vmatpush1.msra.mxu0 0.0
      %4069 = vmatprep.subr.mxu0 0.0
      %4070 = vmatpush1.msra.mxu0 0.0
      %4071 = vmatprep.subr.mxu0 0.0
      %4072 = vmatpush1.msra.mxu0 0.0
      %4073 = vmatprep.subr.mxu0 0.0
      %4074 = vmatpush1.msra.mxu0 0.0
      %4075 = vmatprep.subr.mxu0 0.0
      %4076 = vmatpush1.msra.mxu0 0.0
      %4077 = vmatprep.subr.mxu0 0.0
      %4078 = vmatpush1.msra.mxu0 0.0
      %4079 = vmatprep.subr.mxu0 0.0
      %4080 = vmatpush1.msra.mxu0 0.0
      %4081 = vmatprep.subr.mxu0 0.0
      %4082 = vmatpush1.msra.mxu0 0.0
      %4083 = vmatprep.subr.mxu0 0.0
      %4084 = vmatpush1.msra.mxu0 0.0
      %4085 = vmatprep.subr.mxu0 0.0
      %4086 = vmatpush1.msra.mxu0 0.0
      %4087 = vmatprep.subr.mxu0 0.0
      %4088 = vmatpush1.msra.mxu0 0.0
      %4089 = vmatprep.subr.mxu0 0.0
      %4090 = vmatpush1.msra.mxu0 0.0
      %4091 = vmatprep.subr.mxu0 0.0
      %4092 = vmatpush1.msra.mxu0 0.0
      %4093 = vmatprep.subr.mxu0 0.0
      %4094 = vmatpush1.msra.mxu0 0.0
      %4095 = vmatprep.subr.mxu0 0.0
      %4096 = vmatpush1.msra.mxu0 0.0
      %4097 = vmatprep.subr.mxu0 0.0
      %4098 = vmatpush1.msra.mxu0 0.0
      %4099 = vmatprep.subr.mxu0 0.0
      %4100 = vmatpush1.msra.mxu0 0.0
      %4101 = vmatprep.subr.mxu0 0.0
      %4102 = vmatpush1.msra.mxu0 0.0
      %4103 = vmatprep.subr.mxu0 0.0
      %4104 = vmatpush1.msra.mxu0 0.0
      %4105 = vmatprep.subr.mxu0 0.0
      %4106 = vmatpush1.msra.mxu0 0.0
      %4107 = vmatprep.subr.mxu0 0.0
      %4108 = vmatpush1.msra.mxu0 0.0
      %4109 = vmatprep.subr.mxu0 0.0
      %4110 = vmatpush1.msra.mxu0 0.0
      %4111 = vmatprep.subr.mxu0 0.0
      %4112 = vmatpush1.msra.mxu0 0.0
      %4113 = vmatprep.subr.mxu0 0.0
      %4114 = vmatpush1.msra.mxu0 0.0
      %4115 = vmatprep.subr.mxu0 0.0
      %4116 = vmatpush1.msra.mxu0 0.0
      %4117 = vmatprep.subr.mxu0 0.0
      %4118 = vmatpush1.msra.mxu0 0.0
      %4119 = vmatprep.subr.mxu0 0.0
      %4120 = vmatpush1.msra.mxu0 0.0
      %4121 = vmatprep.subr.mxu0 0.0
      %4122 = vmatpush1.msra.mxu0 0.0
      %4123 = vmatprep.subr.mxu0 0.0
      %4124 = vmatpush1.msra.mxu0 0.0
      %4125 = vmatprep.subr.mxu0 0.0
      %4126 = vmatpush1.msra.mxu0 0.0
      %4127 = vmatprep.mubr.f32.mxu0 0.0
      %4128 = vmatmul.mubr.f32.gmra.mrb[0].mxu0 %v3706
      %v4129 = vpop.f32.mrb[0].mxu0
      %v4130 = vadd.f32 0.0, %v4129
      %v4131 = vpop.f32.mrb[0].mxu0
      %v4132 = vadd.f32 0.0, %v4131
      %4133 = vdwg.mxu0
      %4134 = vmatprep.subr.mxu0 %v2457
      %4135 = vmatpush1.msra.mxu0 %v2455
      %4136 = vmatprep.subr.mxu0 0.0
      %4137 = vmatpush1.msra.mxu0 0.0
      %4138 = vmatprep.subr.mxu0 0.0
      %4139 = vmatpush1.msra.mxu0 0.0
      %4140 = vmatprep.subr.mxu0 0.0
      %4141 = vmatpush1.msra.mxu0 0.0
      %4142 = vmatprep.subr.mxu0 0.0
      %4143 = vmatpush1.msra.mxu0 0.0
      %4144 = vmatprep.subr.mxu0 0.0
      %4145 = vmatpush1.msra.mxu0 0.0
      %4146 = vmatprep.subr.mxu0 0.0
      %4147 = vmatpush1.msra.mxu0 0.0
      %4148 = vmatprep.subr.mxu0 0.0
      %4149 = vmatpush1.msra.mxu0 0.0
      %4150 = vmatprep.subr.mxu0 0.0
      %4151 = vmatpush1.msra.mxu0 0.0
      %4152 = vmatprep.subr.mxu0 0.0
      %4153 = vmatpush1.msra.mxu0 0.0
      %4154 = vmatprep.subr.mxu0 0.0
      %4155 = vmatpush1.msra.mxu0 0.0
      %4156 = vmatprep.subr.mxu0 0.0
      %4157 = vmatpush1.msra.mxu0 0.0
      %4158 = vmatprep.subr.mxu0 0.0
      %4159 = vmatpush1.msra.mxu0 0.0
      %4160 = vmatprep.subr.mxu0 0.0
      %4161 = vmatpush1.msra.mxu0 0.0
      %4162 = vmatprep.subr.mxu0 0.0
      %4163 = vmatpush1.msra.mxu0 0.0
      %4164 = vmatprep.subr.mxu0 0.0
      %4165 = vmatpush1.msra.mxu0 0.0
      %4166 = vmatprep.subr.mxu0 0.0
      %4167 = vmatpush1.msra.mxu0 0.0
      %4168 = vmatprep.subr.mxu0 0.0
      %4169 = vmatpush1.msra.mxu0 0.0
      %4170 = vmatprep.subr.mxu0 0.0
      %4171 = vmatpush1.msra.mxu0 0.0
      %4172 = vmatprep.subr.mxu0 0.0
      %4173 = vmatpush1.msra.mxu0 0.0
      %4174 = vmatprep.subr.mxu0 0.0
      %4175 = vmatpush1.msra.mxu0 0.0
      %4176 = vmatprep.subr.mxu0 0.0
      %4177 = vmatpush1.msra.mxu0 0.0
      %4178 = vmatprep.subr.mxu0 0.0
      %4179 = vmatpush1.msra.mxu0 0.0
      %4180 = vmatprep.subr.mxu0 0.0
      %4181 = vmatpush1.msra.mxu0 0.0
      %4182 = vmatprep.subr.mxu0 0.0
      %4183 = vmatpush1.msra.mxu0 0.0
      %4184 = vmatprep.subr.mxu0 0.0
      %4185 = vmatpush1.msra.mxu0 0.0
      %4186 = vmatprep.subr.mxu0 0.0
      %4187 = vmatpush1.msra.mxu0 0.0
      %4188 = vmatprep.subr.mxu0 0.0
      %4189 = vmatpush1.msra.mxu0 0.0
      %4190 = vmatprep.subr.mxu0 0.0
      %4191 = vmatpush1.msra.mxu0 0.0
      %4192 = vmatprep.subr.mxu0 0.0
      %4193 = vmatpush1.msra.mxu0 0.0
      %4194 = vmatprep.subr.mxu0 0.0
      %4195 = vmatpush1.msra.mxu0 0.0
      %4196 = vmatprep.subr.mxu0 0.0
      %4197 = vmatpush1.msra.mxu0 0.0
      %4198 = vmatprep.mubr.f32.mxu0 0.0
      %4199 = vmatmul.mubr.f32.gmra.mrb[0].mxu0 %v3706
      %v4200 = vpop.f32.mrb[0].mxu0
      %v4201 = vadd.f32 0.0, %v4200
      %v4202 = vpop.f32.mrb[0].mxu0
      %v4203 = vadd.f32 0.0, %v4202
      %4204 = vdwg.mxu0
      %4205 = vmatprep.subr.mxu0 %v2461
      %4206 = vmatpush1.msra.mxu0 %v2459
      %4207 = vmatprep.subr.mxu0 0.0
      %4208 = vmatpush1.msra.mxu0 0.0
      %4209 = vmatprep.subr.mxu0 0.0
      %4210 = vmatpush1.msra.mxu0 0.0
      %4211 = vmatprep.subr.mxu0 0.0
      %4212 = vmatpush1.msra.mxu0 0.0
      %4213 = vmatprep.subr.mxu0 0.0
      %4214 = vmatpush1.msra.mxu0 0.0
      %4215 = vmatprep.subr.mxu0 0.0
      %4216 = vmatpush1.msra.mxu0 0.0
      %4217 = vmatprep.subr.mxu0 0.0
      %4218 = vmatpush1.msra.mxu0 0.0
      %4219 = vmatprep.subr.mxu0 0.0
      %4220 = vmatpush1.msra.mxu0 0.0
      %4221 = vmatprep.subr.mxu0 0.0
      %4222 = vmatpush1.msra.mxu0 0.0
      %4223 = vmatprep.subr.mxu0 0.0
      %4224 = vmatpush1.msra.mxu0 0.0
      %4225 = vmatprep.subr.mxu0 0.0
      %4226 = vmatpush1.msra.mxu0 0.0
      %4227 = vmatprep.subr.mxu0 0.0
      %4228 = vmatpush1.msra.mxu0 0.0
      %4229 = vmatprep.subr.mxu0 0.0
      %4230 = vmatpush1.msra.mxu0 0.0
      %4231 = vmatprep.subr.mxu0 0.0
      %4232 = vmatpush1.msra.mxu0 0.0
      %4233 = vmatprep.subr.mxu0 0.0
      %4234 = vmatpush1.msra.mxu0 0.0
      %4235 = vmatprep.subr.mxu0 0.0
      %4236 = vmatpush1.msra.mxu0 0.0
      %4237 = vmatprep.subr.mxu0 0.0
      %4238 = vmatpush1.msra.mxu0 0.0
      %4239 = vmatprep.subr.mxu0 0.0
      %4240 = vmatpush1.msra.mxu0 0.0
      %4241 = vmatprep.subr.mxu0 0.0
      %4242 = vmatpush1.msra.mxu0 0.0
      %4243 = vmatprep.subr.mxu0 0.0
      %4244 = vmatpush1.msra.mxu0 0.0
      %4245 = vmatprep.subr.mxu0 0.0
      %4246 = vmatpush1.msra.mxu0 0.0
      %4247 = vmatprep.subr.mxu0 0.0
      %4248 = vmatpush1.msra.mxu0 0.0
      %4249 = vmatprep.subr.mxu0 0.0
      %4250 = vmatpush1.msra.mxu0 0.0
      %4251 = vmatprep.subr.mxu0 0.0
      %4252 = vmatpush1.msra.mxu0 0.0
      %4253 = vmatprep.subr.mxu0 0.0
      %4254 = vmatpush1.msra.mxu0 0.0
      %4255 = vmatprep.subr.mxu0 0.0
      %4256 = vmatpush1.msra.mxu0 0.0
      %4257 = vmatprep.subr.mxu0 0.0
      %4258 = vmatpush1.msra.mxu0 0.0
      %4259 = vmatprep.subr.mxu0 0.0
      %4260 = vmatpush1.msra.mxu0 0.0
      %4261 = vmatprep.subr.mxu0 0.0
      %4262 = vmatpush1.msra.mxu0 0.0
      %4263 = vmatprep.subr.mxu0 0.0
      %4264 = vmatpush1.msra.mxu0 0.0
      %4265 = vmatprep.subr.mxu0 0.0
      %4266 = vmatpush1.msra.mxu0 0.0
      %4267 = vmatprep.subr.mxu0 0.0
      %4268 = vmatpush1.msra.mxu0 0.0
      %4269 = vmatprep.mubr.f32.mxu0 0.0
      %4270 = vmatmul.mubr.f32.gmra.mrb[0].mxu0 %v3706
      %v4271 = vpop.f32.mrb[0].mxu0
      %v4272 = vadd.f32 0.0, %v4271
      %v4273 = vpop.f32.mrb[0].mxu0
      %v4274 = vadd.f32 0.0, %v4273
      %4275 = vdwg.mxu0
      %v4276 = vld [vmem:[%s960] sm:$0xff]
      %v4277 = vld [vmem:[%s960 + $0x8] sm:$0xff]
      %v4278 = vld [vmem:[%s960 + $0x10] sm:$0xff]
      %v4279 = vld [vmem:[%s960 + $0x18] sm:$0xff]
      %v4280 = vld [vmem:[%s960 + $0x20] sm:$0xff]
      %v4281 = vld [vmem:[%s960 + $0x28] sm:$0xff]
      %v4282 = vld [vmem:[%s960 + $0x30] sm:$0xff]
      %v4283 = vld [vmem:[%s960 + $0x38] sm:$0xff]
      %v4284 = vld [vmem:[%s960 + $0x40] sm:$0xff]
      %v4285 = vld [vmem:[%s960 + $0x48] sm:$0xff]
      %v4286 = vld [vmem:[%s960 + $0x50] sm:$0xff]
      %v4287 = vld [vmem:[%s960 + $0x58] sm:$0xff]
      %v4288 = vld [vmem:[%s960 + $0x60] sm:$0xff]
      %v4289 = vld [vmem:[%s960 + $0x68] sm:$0xff]
      %v4290 = vld [vmem:[%s960 + $0x70] sm:$0xff]
      %v4291 = vld [vmem:[%s960 + $0x78] sm:$0xff]
      %v4292 = vadd.f32 %v4276, %v3775
      %v4293 = vadd.f32 %v4277, %v3777
      %v4294 = vadd.f32 %v4278, %v3846
      %v4295 = vadd.f32 %v4279, %v3848
      %v4296 = vadd.f32 %v4280, %v3917
      %v4297 = vadd.f32 %v4281, %v3919
      %v4298 = vadd.f32 %v4282, %v3988
      %v4299 = vadd.f32 %v4283, %v3990
      %v4300 = vadd.f32 %v4284, %v4059
      %v4301 = vadd.f32 %v4285, %v4061
      %v4302 = vadd.f32 %v4286, %v4130
      %v4303 = vadd.f32 %v4287, %v4132
      %v4304 = vadd.f32 %v4288, %v4201
      %v4305 = vadd.f32 %v4289, %v4203
      %v4306 = vadd.f32 %v4290, %v4272
      %v4307 = vadd.f32 %v4291, %v4274
      %4308 = vst [vmem:[%s960] sm:$0xff] %v4292
      %4309 = vst [vmem:[%s960 + $0x8] sm:$0xff] %v4293
      %4310 = vst [vmem:[%s960 + $0x10] sm:$0xff] %v4294
      %4311 = vst [vmem:[%s960 + $0x18] sm:$0xff] %v4295
      %4312 = vst [vmem:[%s960 + $0x20] sm:$0xff] %v4296
      %4313 = vst [vmem:[%s960 + $0x28] sm:$0xff] %v4297
      %4314 = vst [vmem:[%s960 + $0x30] sm:$0xff] %v4298
      %4315 = vst [vmem:[%s960 + $0x38] sm:$0xff] %v4299
      %4316 = vst [vmem:[%s960 + $0x40] sm:$0xff] %v4300
      %4317 = vst [vmem:[%s960 + $0x48] sm:$0xff] %v4301
      %4318 = vst [vmem:[%s960 + $0x50] sm:$0xff] %v4302
      %4319 = vst [vmem:[%s960 + $0x58] sm:$0xff] %v4303
      %4320 = vst [vmem:[%s960 + $0x60] sm:$0xff] %v4304
      %4321 = vst [vmem:[%s960 + $0x68] sm:$0xff] %v4305
      %4322 = vst [vmem:[%s960 + $0x70] sm:$0xff] %v4306
      %4323 = vst [vmem:[%s960 + $0x78] sm:$0xff] %v4307
      %v4324 = vld [vmem:[%s2] sm:$0xff]
      %v4325 = vld [vmem:[%s2 + $0x8] sm:$0xff]
      %v4326 = vld [vmem:[%s2 + $0x10] sm:$0xff]
      %v4327 = vld [vmem:[%s2 + $0x18] sm:$0xff]
      %v4328 = vld [vmem:[%s2 + $0x20] sm:$0xff]
      %v4329 = vld [vmem:[%s2 + $0x28] sm:$0xff]
      %v4330 = vld [vmem:[%s2 + $0x30] sm:$0xff]
      %v4331 = vld [vmem:[%s2 + $0x38] sm:$0xff]
      %v4332 = vld [vmem:[#allocation2] sm:$0xff]
      %v4333 = vld [vmem:[#allocation2 + $0x8] sm:$0xff]
      %v4334 = vld [vmem:[#allocation2 + $0x10] sm:$0xff]
      %v4335 = vld [vmem:[#allocation2 + $0x18] sm:$0xff]
      %v4336 = vld [vmem:[#allocation2 + $0x20] sm:$0xff]
      %v4337 = vld [vmem:[#allocation2 + $0x28] sm:$0xff]
      %v4338 = vld [vmem:[#allocation2 + $0x30] sm:$0xff]
      %v4339 = vld [vmem:[#allocation2 + $0x38] sm:$0xff]
      %v4340 = vld [vmem:[#allocation2 + $0x40] sm:$0xff]
      %v4341 = vld [vmem:[#allocation2 + $0x48] sm:$0xff]
      %v4342 = vld [vmem:[#allocation2 + $0x50] sm:$0xff]
      %v4343 = vld [vmem:[#allocation2 + $0x58] sm:$0xff]
      %v4344 = vld [vmem:[#allocation2 + $0x60] sm:$0xff]
      %v4345 = vld [vmem:[#allocation2 + $0x68] sm:$0xff]
      %v4346 = vld [vmem:[#allocation2 + $0x70] sm:$0xff]
      %v4347 = vld [vmem:[#allocation2 + $0x78] sm:$0xff]
      %v4356 = vlaneseq
      %v4357 = vshrl.u32 %v4356, 7
      %v4358 = vsub.s32 0, %v4357
      %v4359 = vrot.slane %v4324, %v4358
      %v4360 = vlaneseq
      %v4361 = vshrl.u32 %v4360, 7
      %v4362 = vsub.s32 4, %v4361
      %v4363 = vrot.slane %v4324, %v4362
      %v4364 = vlaneseq
      %v4365 = vshrl.u32 %v4364, 7
      %v4366 = vsub.s32 0, %v4365
      %v4367 = vrot.slane %v4325, %v4366
      %v4368 = vlaneseq
      %v4369 = vshrl.u32 %v4368, 7
      %v4370 = vsub.s32 4, %v4369
      %v4371 = vrot.slane %v4325, %v4370
      %v4372 = vlaneseq
      %v4373 = vshrl.u32 %v4372, 7
      %v4374 = vsub.s32 0, %v4373
      %v4375 = vrot.slane %v4326, %v4374
      %v4376 = vlaneseq
      %v4377 = vshrl.u32 %v4376, 7
      %v4378 = vsub.s32 4, %v4377
      %v4379 = vrot.slane %v4326, %v4378
      %v4380 = vlaneseq
      %v4381 = vshrl.u32 %v4380, 7
      %v4382 = vsub.s32 0, %v4381
      %v4383 = vrot.slane %v4327, %v4382
      %v4384 = vlaneseq
      %v4385 = vshrl.u32 %v4384, 7
      %v4386 = vsub.s32 4, %v4385
      %v4387 = vrot.slane %v4327, %v4386
      %v4388 = vlaneseq
      %v4389 = vshrl.u32 %v4388, 7
      %v4390 = vsub.s32 0, %v4389
      %v4391 = vrot.slane %v4328, %v4390
      %v4392 = vlaneseq
      %v4393 = vshrl.u32 %v4392, 7
      %v4394 = vsub.s32 4, %v4393
      %v4395 = vrot.slane %v4328, %v4394
      %v4396 = vlaneseq
      %v4397 = vshrl.u32 %v4396, 7
      %v4398 = vsub.s32 0, %v4397
      %v4399 = vrot.slane %v4329, %v4398
      %v4400 = vlaneseq
      %v4401 = vshrl.u32 %v4400, 7
      %v4402 = vsub.s32 4, %v4401
      %v4403 = vrot.slane %v4329, %v4402
      %v4404 = vlaneseq
      %v4405 = vshrl.u32 %v4404, 7
      %v4406 = vsub.s32 0, %v4405
      %v4407 = vrot.slane %v4330, %v4406
      %v4408 = vlaneseq
      %v4409 = vshrl.u32 %v4408, 7
      %v4410 = vsub.s32 4, %v4409
      %v4411 = vrot.slane %v4330, %v4410
      %v4412 = vlaneseq
      %v4413 = vshrl.u32 %v4412, 7
      %v4414 = vsub.s32 0, %v4413
      %v4415 = vrot.slane %v4331, %v4414
      %v4416 = vlaneseq
      %v4417 = vshrl.u32 %v4416, 7
      %v4418 = vsub.s32 4, %v4417
      %v4419 = vrot.slane %v4331, %v4418
      %v4436 = vlaneseq
      %v4437 = vshrl.u32 %v4436, 7
      %v4438 = vsub.s32 0, %v4437
      %v4439 = vrot.slane %v4359, %v4438
      %v4440 = vlaneseq
      %v4441 = vshrl.u32 %v4440, 7
      %v4442 = vsub.s32 0, %v4441
      %v4443 = vrot.slane %v4363, %v4442
      %v4444 = vlaneseq
      %v4445 = vshrl.u32 %v4444, 7
      %v4446 = vsub.s32 0, %v4445
      %v4447 = vrot.slane %v4367, %v4446
      %v4448 = vlaneseq
      %v4449 = vshrl.u32 %v4448, 7
      %v4450 = vsub.s32 0, %v4449
      %v4451 = vrot.slane %v4371, %v4450
      %v4452 = vlaneseq
      %v4453 = vshrl.u32 %v4452, 7
      %v4454 = vsub.s32 0, %v4453
      %v4455 = vrot.slane %v4375, %v4454
      %v4456 = vlaneseq
      %v4457 = vshrl.u32 %v4456, 7
      %v4458 = vsub.s32 0, %v4457
      %v4459 = vrot.slane %v4379, %v4458
      %v4460 = vlaneseq
      %v4461 = vshrl.u32 %v4460, 7
      %v4462 = vsub.s32 0, %v4461
      %v4463 = vrot.slane %v4383, %v4462
      %v4464 = vlaneseq
      %v4465 = vshrl.u32 %v4464, 7
      %v4466 = vsub.s32 0, %v4465
      %v4467 = vrot.slane %v4387, %v4466
      %v4468 = vlaneseq
      %v4469 = vshrl.u32 %v4468, 7
      %v4470 = vsub.s32 0, %v4469
      %v4471 = vrot.slane %v4391, %v4470
      %v4472 = vlaneseq
      %v4473 = vshrl.u32 %v4472, 7
      %v4474 = vsub.s32 0, %v4473
      %v4475 = vrot.slane %v4395, %v4474
      %v4476 = vlaneseq
      %v4477 = vshrl.u32 %v4476, 7
      %v4478 = vsub.s32 0, %v4477
      %v4479 = vrot.slane %v4399, %v4478
      %v4480 = vlaneseq
      %v4481 = vshrl.u32 %v4480, 7
      %v4482 = vsub.s32 0, %v4481
      %v4483 = vrot.slane %v4403, %v4482
      %v4484 = vlaneseq
      %v4485 = vshrl.u32 %v4484, 7
      %v4486 = vsub.s32 0, %v4485
      %v4487 = vrot.slane %v4407, %v4486
      %v4488 = vlaneseq
      %v4489 = vshrl.u32 %v4488, 7
      %v4490 = vsub.s32 0, %v4489
      %v4491 = vrot.slane %v4411, %v4490
      %v4492 = vlaneseq
      %v4493 = vshrl.u32 %v4492, 7
      %v4494 = vsub.s32 0, %v4493
      %v4495 = vrot.slane %v4415, %v4494
      %v4496 = vlaneseq
      %v4497 = vshrl.u32 %v4496, 7
      %v4498 = vsub.s32 0, %v4497
      %v4499 = vrot.slane %v4419, %v4498
      %v4500 = vmul.f32 %v4332, %v4439
      %v4501 = vmul.f32 %v4333, %v4443
      %v4502 = vmul.f32 %v4334, %v4447
      %v4503 = vmul.f32 %v4335, %v4451
      %v4504 = vmul.f32 %v4336, %v4455
      %v4505 = vmul.f32 %v4337, %v4459
      %v4506 = vmul.f32 %v4338, %v4463
      %v4507 = vmul.f32 %v4339, %v4467
      %v4508 = vmul.f32 %v4340, %v4471
      %v4509 = vmul.f32 %v4341, %v4475
      %v4510 = vmul.f32 %v4342, %v4479
      %v4511 = vmul.f32 %v4343, %v4483
      %v4512 = vmul.f32 %v4344, %v4487
      %v4513 = vmul.f32 %v4345, %v4491
      %v4514 = vmul.f32 %v4346, %v4495
      %v4515 = vmul.f32 %v4347, %v4499
      %v4516 = vadd.f32 %v4500, %v4501
      %v4517 = vadd.f32 %v4516, %v4502
      %v4518 = vadd.f32 %v4517, %v4503
      %v4519 = vadd.f32 %v4518, %v4504
      %v4520 = vadd.f32 %v4519, %v4505
      %v4521 = vadd.f32 %v4520, %v4506
      %v4522 = vadd.f32 %v4521, %v4507
      %v4523 = vadd.f32 %v4522, %v4508
      %v4524 = vadd.f32 %v4523, %v4509
      %v4525 = vadd.f32 %v4524, %v4510
      %v4526 = vadd.f32 %v4525, %v4511
      %v4527 = vadd.f32 %v4526, %v4512
      %v4528 = vadd.f32 %v4527, %v4513
      %v4529 = vadd.f32 %v4528, %v4514
      %v4530 = vadd.f32 %v4529, %v4515
      %4531 = vadd.xlane.f32.xlu0 %v4530
      %v4532 = vpop.xlane.xlu0 %4531
      %v4533 = vadd.f32 %v4532, 0.0
      %v4534 = vmul.f32 %v4500, %v4332
      %v4535 = vmul.f32 %v4501, %v4333
      %v4536 = vmul.f32 %v4502, %v4334
      %v4537 = vmul.f32 %v4503, %v4335
      %v4538 = vmul.f32 %v4504, %v4336
      %v4539 = vmul.f32 %v4505, %v4337
      %v4540 = vmul.f32 %v4506, %v4338
      %v4541 = vmul.f32 %v4507, %v4339
      %v4542 = vmul.f32 %v4508, %v4340
      %v4543 = vmul.f32 %v4509, %v4341
      %v4544 = vmul.f32 %v4510, %v4342
      %v4545 = vmul.f32 %v4511, %v4343
      %v4546 = vmul.f32 %v4512, %v4344
      %v4547 = vmul.f32 %v4513, %v4345
      %v4548 = vmul.f32 %v4514, %v4346
      %v4549 = vmul.f32 %v4515, %v4347
      %v4550 = vadd.f32 %v4534, %v4535
      %v4551 = vadd.f32 %v4550, %v4536
      %v4552 = vadd.f32 %v4551, %v4537
      %v4553 = vadd.f32 %v4552, %v4538
      %v4554 = vadd.f32 %v4553, %v4539
      %v4555 = vadd.f32 %v4554, %v4540
      %v4556 = vadd.f32 %v4555, %v4541
      %v4557 = vadd.f32 %v4556, %v4542
      %v4558 = vadd.f32 %v4557, %v4543
      %v4559 = vadd.f32 %v4558, %v4544
      %v4560 = vadd.f32 %v4559, %v4545
      %v4561 = vadd.f32 %v4560, %v4546
      %v4562 = vadd.f32 %v4561, %v4547
      %v4563 = vadd.f32 %v4562, %v4548
      %v4564 = vadd.f32 %v4563, %v4549
      %4565 = vadd.xlane.f32.xlu0 %v4564
      %v4566 = vpop.xlane.xlu0 %4565
      %v4567 = vadd.f32 %v4566, 0.0
      %v4568 = vld [vmem:[%s1617] sm:$0xff]
      %v4569 = vld [vmem:[%s1617 + $0x8] sm:$0xff]
      %v4570 = vld [vmem:[%s1617 + $0x10] sm:$0xff]
      %v4571 = vld [vmem:[%s1617 + $0x18] sm:$0xff]
      %v4572 = vld [vmem:[%s1617 + $0x20] sm:$0xff]
      %v4573 = vld [vmem:[%s1617 + $0x28] sm:$0xff]
      %v4574 = vld [vmem:[%s1617 + $0x30] sm:$0xff]
      %v4575 = vld [vmem:[%s1617 + $0x38] sm:$0xff]
      %v4576 = vld [vmem:[%s1617 + $0x40] sm:$0xff]
      %v4577 = vld [vmem:[%s1617 + $0x48] sm:$0xff]
      %v4578 = vld [vmem:[%s1617 + $0x50] sm:$0xff]
      %v4579 = vld [vmem:[%s1617 + $0x58] sm:$0xff]
      %v4580 = vld [vmem:[%s1617 + $0x60] sm:$0xff]
      %v4581 = vld [vmem:[%s1617 + $0x68] sm:$0xff]
      %v4582 = vld [vmem:[%s1617 + $0x70] sm:$0xff]
      %v4583 = vld [vmem:[%s1617 + $0x78] sm:$0xff]
      %v4584 = vlaneseq
      %v4585 = vshrl.u32 %v4584, 7
      %v4586 = vsub.s32 1, %v4585
      %v4587 = vrot.slane %v4324, %v4586
      %v4588 = vlaneseq
      %v4589 = vshrl.u32 %v4588, 7
      %v4590 = vsub.s32 5, %v4589
      %v4591 = vrot.slane %v4324, %v4590
      %v4592 = vlaneseq
      %v4593 = vshrl.u32 %v4592, 7
      %v4594 = vsub.s32 1, %v4593
      %v4595 = vrot.slane %v4325, %v4594
      %v4596 = vlaneseq
      %v4597 = vshrl.u32 %v4596, 7
      %v4598 = vsub.s32 5, %v4597
      %v4599 = vrot.slane %v4325, %v4598
      %v4600 = vlaneseq
      %v4601 = vshrl.u32 %v4600, 7
      %v4602 = vsub.s32 1, %v4601
      %v4603 = vrot.slane %v4326, %v4602
      %v4604 = vlaneseq
      %v4605 = vshrl.u32 %v4604, 7
      %v4606 = vsub.s32 5, %v4605
      %v4607 = vrot.slane %v4326, %v4606
      %v4608 = vlaneseq
      %v4609 = vshrl.u32 %v4608, 7
      %v4610 = vsub.s32 1, %v4609
      %v4611 = vrot.slane %v4327, %v4610
      %v4612 = vlaneseq
      %v4613 = vshrl.u32 %v4612, 7
      %v4614 = vsub.s32 5, %v4613
      %v4615 = vrot.slane %v4327, %v4614
      %v4616 = vlaneseq
      %v4617 = vshrl.u32 %v4616, 7
      %v4618 = vsub.s32 1, %v4617
      %v4619 = vrot.slane %v4328, %v4618
      %v4620 = vlaneseq
      %v4621 = vshrl.u32 %v4620, 7
      %v4622 = vsub.s32 5, %v4621
      %v4623 = vrot.slane %v4328, %v4622
      %v4624 = vlaneseq
      %v4625 = vshrl.u32 %v4624, 7
      %v4626 = vsub.s32 1, %v4625
      %v4627 = vrot.slane %v4329, %v4626
      %v4628 = vlaneseq
      %v4629 = vshrl.u32 %v4628, 7
      %v4630 = vsub.s32 5, %v4629
      %v4631 = vrot.slane %v4329, %v4630
      %v4632 = vlaneseq
      %v4633 = vshrl.u32 %v4632, 7
      %v4634 = vsub.s32 1, %v4633
      %v4635 = vrot.slane %v4330, %v4634
      %v4636 = vlaneseq
      %v4637 = vshrl.u32 %v4636, 7
      %v4638 = vsub.s32 5, %v4637
      %v4639 = vrot.slane %v4330, %v4638
      %v4640 = vlaneseq
      %v4641 = vshrl.u32 %v4640, 7
      %v4642 = vsub.s32 1, %v4641
      %v4643 = vrot.slane %v4331, %v4642
      %v4644 = vlaneseq
      %v4645 = vshrl.u32 %v4644, 7
      %v4646 = vsub.s32 5, %v4645
      %v4647 = vrot.slane %v4331, %v4646
      %v4664 = vlaneseq
      %v4665 = vshrl.u32 %v4664, 7
      %v4666 = vsub.s32 1, %v4665
      %v4667 = vrot.slane %v4587, %v4666
      %v4668 = vlaneseq
      %v4669 = vshrl.u32 %v4668, 7
      %v4670 = vsub.s32 1, %v4669
      %v4671 = vrot.slane %v4591, %v4670
      %v4672 = vlaneseq
      %v4673 = vshrl.u32 %v4672, 7
      %v4674 = vsub.s32 1, %v4673
      %v4675 = vrot.slane %v4595, %v4674
      %v4676 = vlaneseq
      %v4677 = vshrl.u32 %v4676, 7
      %v4678 = vsub.s32 1, %v4677
      %v4679 = vrot.slane %v4599, %v4678
      %v4680 = vlaneseq
      %v4681 = vshrl.u32 %v4680, 7
      %v4682 = vsub.s32 1, %v4681
      %v4683 = vrot.slane %v4603, %v4682
      %v4684 = vlaneseq
      %v4685 = vshrl.u32 %v4684, 7
      %v4686 = vsub.s32 1, %v4685
      %v4687 = vrot.slane %v4607, %v4686
      %v4688 = vlaneseq
      %v4689 = vshrl.u32 %v4688, 7
      %v4690 = vsub.s32 1, %v4689
      %v4691 = vrot.slane %v4611, %v4690
      %v4692 = vlaneseq
      %v4693 = vshrl.u32 %v4692, 7
      %v4694 = vsub.s32 1, %v4693
      %v4695 = vrot.slane %v4615, %v4694
      %v4696 = vlaneseq
      %v4697 = vshrl.u32 %v4696, 7
      %v4698 = vsub.s32 1, %v4697
      %v4699 = vrot.slane %v4619, %v4698
      %v4700 = vlaneseq
      %v4701 = vshrl.u32 %v4700, 7
      %v4702 = vsub.s32 1, %v4701
      %v4703 = vrot.slane %v4623, %v4702
      %v4704 = vlaneseq
      %v4705 = vshrl.u32 %v4704, 7
      %v4706 = vsub.s32 1, %v4705
      %v4707 = vrot.slane %v4627, %v4706
      %v4708 = vlaneseq
      %v4709 = vshrl.u32 %v4708, 7
      %v4710 = vsub.s32 1, %v4709
      %v4711 = vrot.slane %v4631, %v4710
      %v4712 = vlaneseq
      %v4713 = vshrl.u32 %v4712, 7
      %v4714 = vsub.s32 1, %v4713
      %v4715 = vrot.slane %v4635, %v4714
      %v4716 = vlaneseq
      %v4717 = vshrl.u32 %v4716, 7
      %v4718 = vsub.s32 1, %v4717
      %v4719 = vrot.slane %v4639, %v4718
      %v4720 = vlaneseq
      %v4721 = vshrl.u32 %v4720, 7
      %v4722 = vsub.s32 1, %v4721
      %v4723 = vrot.slane %v4643, %v4722
      %v4724 = vlaneseq
      %v4725 = vshrl.u32 %v4724, 7
      %v4726 = vsub.s32 1, %v4725
      %v4727 = vrot.slane %v4647, %v4726
      %v4728 = vmul.f32 %v4568, %v4667
      %v4729 = vmul.f32 %v4569, %v4671
      %v4730 = vmul.f32 %v4570, %v4675
      %v4731 = vmul.f32 %v4571, %v4679
      %v4732 = vmul.f32 %v4572, %v4683
      %v4733 = vmul.f32 %v4573, %v4687
      %v4734 = vmul.f32 %v4574, %v4691
      %v4735 = vmul.f32 %v4575, %v4695
      %v4736 = vmul.f32 %v4576, %v4699
      %v4737 = vmul.f32 %v4577, %v4703
      %v4738 = vmul.f32 %v4578, %v4707
      %v4739 = vmul.f32 %v4579, %v4711
      %v4740 = vmul.f32 %v4580, %v4715
      %v4741 = vmul.f32 %v4581, %v4719
      %v4742 = vmul.f32 %v4582, %v4723
      %v4743 = vmul.f32 %v4583, %v4727
      %v4744 = vadd.f32 %v4728, %v4729
      %v4745 = vadd.f32 %v4744, %v4730
      %v4746 = vadd.f32 %v4745, %v4731
      %v4747 = vadd.f32 %v4746, %v4732
      %v4748 = vadd.f32 %v4747, %v4733
      %v4749 = vadd.f32 %v4748, %v4734
      %v4750 = vadd.f32 %v4749, %v4735
      %v4751 = vadd.f32 %v4750, %v4736
      %v4752 = vadd.f32 %v4751, %v4737
      %v4753 = vadd.f32 %v4752, %v4738
      %v4754 = vadd.f32 %v4753, %v4739
      %v4755 = vadd.f32 %v4754, %v4740
      %v4756 = vadd.f32 %v4755, %v4741
      %v4757 = vadd.f32 %v4756, %v4742
      %v4758 = vadd.f32 %v4757, %v4743
      %4759 = vadd.xlane.f32.xlu0 %v4758
      %v4760 = vpop.xlane.xlu0 %4759
      %v4761 = vadd.f32 %v4533, %v4760
      %v4762 = vmul.f32 %v4728, %v4568
      %v4763 = vmul.f32 %v4729, %v4569
      %v4764 = vmul.f32 %v4730, %v4570
      %v4765 = vmul.f32 %v4731, %v4571
      %v4766 = vmul.f32 %v4732, %v4572
      %v4767 = vmul.f32 %v4733, %v4573
      %v4768 = vmul.f32 %v4734, %v4574
      %v4769 = vmul.f32 %v4735, %v4575
      %v4770 = vmul.f32 %v4736, %v4576
      %v4771 = vmul.f32 %v4737, %v4577
      %v4772 = vmul.f32 %v4738, %v4578
      %v4773 = vmul.f32 %v4739, %v4579
      %v4774 = vmul.f32 %v4740, %v4580
      %v4775 = vmul.f32 %v4741, %v4581
      %v4776 = vmul.f32 %v4742, %v4582
      %v4777 = vmul.f32 %v4743, %v4583
      %v4778 = vadd.f32 %v4762, %v4763
      %v4779 = vadd.f32 %v4778, %v4764
      %v4780 = vadd.f32 %v4779, %v4765
      %v4781 = vadd.f32 %v4780, %v4766
      %v4782 = vadd.f32 %v4781, %v4767
      %v4783 = vadd.f32 %v4782, %v4768
      %v4784 = vadd.f32 %v4783, %v4769
      %v4785 = vadd.f32 %v4784, %v4770
      %v4786 = vadd.f32 %v4785, %v4771
      %v4787 = vadd.f32 %v4786, %v4772
      %v4788 = vadd.f32 %v4787, %v4773
      %v4789 = vadd.f32 %v4788, %v4774
      %v4790 = vadd.f32 %v4789, %v4775
      %v4791 = vadd.f32 %v4790, %v4776
      %v4792 = vadd.f32 %v4791, %v4777
      %4793 = vadd.xlane.f32.xlu0 %v4792
      %v4794 = vpop.xlane.xlu0 %4793
      %v4795 = vadd.f32 %v4567, %v4794
      %v4796 = vld [vmem:[%s943] sm:$0xff]
      %v4797 = vld [vmem:[%s943 + $0x8] sm:$0xff]
      %v4798 = vld [vmem:[%s943 + $0x10] sm:$0xff]
      %v4799 = vld [vmem:[%s943 + $0x18] sm:$0xff]
      %v4800 = vld [vmem:[%s943 + $0x20] sm:$0xff]
      %v4801 = vld [vmem:[%s943 + $0x28] sm:$0xff]
      %v4802 = vld [vmem:[%s943 + $0x30] sm:$0xff]
      %v4803 = vld [vmem:[%s943 + $0x38] sm:$0xff]
      %v4804 = vld [vmem:[%s943 + $0x40] sm:$0xff]
      %v4805 = vld [vmem:[%s943 + $0x48] sm:$0xff]
      %v4806 = vld [vmem:[%s943 + $0x50] sm:$0xff]
      %v4807 = vld [vmem:[%s943 + $0x58] sm:$0xff]
      %v4808 = vld [vmem:[%s943 + $0x60] sm:$0xff]
      %v4809 = vld [vmem:[%s943 + $0x68] sm:$0xff]
      %v4810 = vld [vmem:[%s943 + $0x70] sm:$0xff]
      %v4811 = vld [vmem:[%s943 + $0x78] sm:$0xff]
      %v4812 = vlaneseq
      %v4813 = vshrl.u32 %v4812, 7
      %v4814 = vsub.s32 2, %v4813
      %v4815 = vrot.slane %v4324, %v4814
      %v4816 = vlaneseq
      %v4817 = vshrl.u32 %v4816, 7
      %v4818 = vsub.s32 6, %v4817
      %v4819 = vrot.slane %v4324, %v4818
      %v4820 = vlaneseq
      %v4821 = vshrl.u32 %v4820, 7
      %v4822 = vsub.s32 2, %v4821
      %v4823 = vrot.slane %v4325, %v4822
      %v4824 = vlaneseq
      %v4825 = vshrl.u32 %v4824, 7
      %v4826 = vsub.s32 6, %v4825
      %v4827 = vrot.slane %v4325, %v4826
      %v4828 = vlaneseq
      %v4829 = vshrl.u32 %v4828, 7
      %v4830 = vsub.s32 2, %v4829
      %v4831 = vrot.slane %v4326, %v4830
      %v4832 = vlaneseq
      %v4833 = vshrl.u32 %v4832, 7
      %v4834 = vsub.s32 6, %v4833
      %v4835 = vrot.slane %v4326, %v4834
      %v4836 = vlaneseq
      %v4837 = vshrl.u32 %v4836, 7
      %v4838 = vsub.s32 2, %v4837
      %v4839 = vrot.slane %v4327, %v4838
      %v4840 = vlaneseq
      %v4841 = vshrl.u32 %v4840, 7
      %v4842 = vsub.s32 6, %v4841
      %v4843 = vrot.slane %v4327, %v4842
      %v4844 = vlaneseq
      %v4845 = vshrl.u32 %v4844, 7
      %v4846 = vsub.s32 2, %v4845
      %v4847 = vrot.slane %v4328, %v4846
      %v4848 = vlaneseq
      %v4849 = vshrl.u32 %v4848, 7
      %v4850 = vsub.s32 6, %v4849
      %v4851 = vrot.slane %v4328, %v4850
      %v4852 = vlaneseq
      %v4853 = vshrl.u32 %v4852, 7
      %v4854 = vsub.s32 2, %v4853
      %v4855 = vrot.slane %v4329, %v4854
      %v4856 = vlaneseq
      %v4857 = vshrl.u32 %v4856, 7
      %v4858 = vsub.s32 6, %v4857
      %v4859 = vrot.slane %v4329, %v4858
      %v4860 = vlaneseq
      %v4861 = vshrl.u32 %v4860, 7
      %v4862 = vsub.s32 2, %v4861
      %v4863 = vrot.slane %v4330, %v4862
      %v4864 = vlaneseq
      %v4865 = vshrl.u32 %v4864, 7
      %v4866 = vsub.s32 6, %v4865
      %v4867 = vrot.slane %v4330, %v4866
      %v4868 = vlaneseq
      %v4869 = vshrl.u32 %v4868, 7
      %v4870 = vsub.s32 2, %v4869
      %v4871 = vrot.slane %v4331, %v4870
      %v4872 = vlaneseq
      %v4873 = vshrl.u32 %v4872, 7
      %v4874 = vsub.s32 6, %v4873
      %v4875 = vrot.slane %v4331, %v4874
      %v4892 = vlaneseq
      %v4893 = vshrl.u32 %v4892, 7
      %v4894 = vsub.s32 2, %v4893
      %v4895 = vrot.slane %v4815, %v4894
      %v4896 = vlaneseq
      %v4897 = vshrl.u32 %v4896, 7
      %v4898 = vsub.s32 2, %v4897
      %v4899 = vrot.slane %v4819, %v4898
      %v4900 = vlaneseq
      %v4901 = vshrl.u32 %v4900, 7
      %v4902 = vsub.s32 2, %v4901
      %v4903 = vrot.slane %v4823, %v4902
      %v4904 = vlaneseq
      %v4905 = vshrl.u32 %v4904, 7
      %v4906 = vsub.s32 2, %v4905
      %v4907 = vrot.slane %v4827, %v4906
      %v4908 = vlaneseq
      %v4909 = vshrl.u32 %v4908, 7
      %v4910 = vsub.s32 2, %v4909
      %v4911 = vrot.slane %v4831, %v4910
      %v4912 = vlaneseq
      %v4913 = vshrl.u32 %v4912, 7
      %v4914 = vsub.s32 2, %v4913
      %v4915 = vrot.slane %v4835, %v4914
      %v4916 = vlaneseq
      %v4917 = vshrl.u32 %v4916, 7
      %v4918 = vsub.s32 2, %v4917
      %v4919 = vrot.slane %v4839, %v4918
      %v4920 = vlaneseq
      %v4921 = vshrl.u32 %v4920, 7
      %v4922 = vsub.s32 2, %v4921
      %v4923 = vrot.slane %v4843, %v4922
      %v4924 = vlaneseq
      %v4925 = vshrl.u32 %v4924, 7
      %v4926 = vsub.s32 2, %v4925
      %v4927 = vrot.slane %v4847, %v4926
      %v4928 = vlaneseq
      %v4929 = vshrl.u32 %v4928, 7
      %v4930 = vsub.s32 2, %v4929
      %v4931 = vrot.slane %v4851, %v4930
      %v4932 = vlaneseq
      %v4933 = vshrl.u32 %v4932, 7
      %v4934 = vsub.s32 2, %v4933
      %v4935 = vrot.slane %v4855, %v4934
      %v4936 = vlaneseq
      %v4937 = vshrl.u32 %v4936, 7
      %v4938 = vsub.s32 2, %v4937
      %v4939 = vrot.slane %v4859, %v4938
      %v4940 = vlaneseq
      %v4941 = vshrl.u32 %v4940, 7
      %v4942 = vsub.s32 2, %v4941
      %v4943 = vrot.slane %v4863, %v4942
      %v4944 = vlaneseq
      %v4945 = vshrl.u32 %v4944, 7
      %v4946 = vsub.s32 2, %v4945
      %v4947 = vrot.slane %v4867, %v4946
      %v4948 = vlaneseq
      %v4949 = vshrl.u32 %v4948, 7
      %v4950 = vsub.s32 2, %v4949
      %v4951 = vrot.slane %v4871, %v4950
      %v4952 = vlaneseq
      %v4953 = vshrl.u32 %v4952, 7
      %v4954 = vsub.s32 2, %v4953
      %v4955 = vrot.slane %v4875, %v4954
      %v4956 = vmul.f32 %v4796, %v4895
      %v4957 = vmul.f32 %v4797, %v4899
      %v4958 = vmul.f32 %v4798, %v4903
      %v4959 = vmul.f32 %v4799, %v4907
      %v4960 = vmul.f32 %v4800, %v4911
      %v4961 = vmul.f32 %v4801, %v4915
      %v4962 = vmul.f32 %v4802, %v4919
      %v4963 = vmul.f32 %v4803, %v4923
      %v4964 = vmul.f32 %v4804, %v4927
      %v4965 = vmul.f32 %v4805, %v4931
      %v4966 = vmul.f32 %v4806, %v4935
      %v4967 = vmul.f32 %v4807, %v4939
      %v4968 = vmul.f32 %v4808, %v4943
      %v4969 = vmul.f32 %v4809, %v4947
      %v4970 = vmul.f32 %v4810, %v4951
      %v4971 = vmul.f32 %v4811, %v4955
      %v4972 = vadd.f32 %v4956, %v4957
      %v4973 = vadd.f32 %v4972, %v4958
      %v4974 = vadd.f32 %v4973, %v4959
      %v4975 = vadd.f32 %v4974, %v4960
      %v4976 = vadd.f32 %v4975, %v4961
      %v4977 = vadd.f32 %v4976, %v4962
      %v4978 = vadd.f32 %v4977, %v4963
      %v4979 = vadd.f32 %v4978, %v4964
      %v4980 = vadd.f32 %v4979, %v4965
      %v4981 = vadd.f32 %v4980, %v4966
      %v4982 = vadd.f32 %v4981, %v4967
      %v4983 = vadd.f32 %v4982, %v4968
      %v4984 = vadd.f32 %v4983, %v4969
      %v4985 = vadd.f32 %v4984, %v4970
      %v4986 = vadd.f32 %v4985, %v4971
      %4987 = vadd.xlane.f32.xlu0 %v4986
      %v4988 = vpop.xlane.xlu0 %4987
      %v4989 = vadd.f32 %v4761, %v4988
      %v4990 = vmul.f32 %v4956, %v4796
      %v4991 = vmul.f32 %v4957, %v4797
      %v4992 = vmul.f32 %v4958, %v4798
      %v4993 = vmul.f32 %v4959, %v4799
      %v4994 = vmul.f32 %v4960, %v4800
      %v4995 = vmul.f32 %v4961, %v4801
      %v4996 = vmul.f32 %v4962, %v4802
      %v4997 = vmul.f32 %v4963, %v4803
      %v4998 = vmul.f32 %v4964, %v4804
      %v4999 = vmul.f32 %v4965, %v4805
      %v5000 = vmul.f32 %v4966, %v4806
      %v5001 = vmul.f32 %v4967, %v4807
      %v5002 = vmul.f32 %v4968, %v4808
      %v5003 = vmul.f32 %v4969, %v4809
      %v5004 = vmul.f32 %v4970, %v4810
      %v5005 = vmul.f32 %v4971, %v4811
      %v5006 = vadd.f32 %v4990, %v4991
      %v5007 = vadd.f32 %v5006, %v4992
      %v5008 = vadd.f32 %v5007, %v4993
      %v5009 = vadd.f32 %v5008, %v4994
      %v5010 = vadd.f32 %v5009, %v4995
      %v5011 = vadd.f32 %v5010, %v4996
      %v5012 = vadd.f32 %v5011, %v4997
      %v5013 = vadd.f32 %v5012, %v4998
      %v5014 = vadd.f32 %v5013, %v4999
      %v5015 = vadd.f32 %v5014, %v5000
      %v5016 = vadd.f32 %v5015, %v5001
      %v5017 = vadd.f32 %v5016, %v5002
      %v5018 = vadd.f32 %v5017, %v5003
      %v5019 = vadd.f32 %v5018, %v5004
      %v5020 = vadd.f32 %v5019, %v5005
      %5021 = vadd.xlane.f32.xlu0 %v5020
      %v5022 = vpop.xlane.xlu0 %5021
      %v5023 = vadd.f32 %v4795, %v5022
      %v5024 = vld [vmem:[%s960] sm:$0xff]
      %v5025 = vld [vmem:[%s960 + $0x8] sm:$0xff]
      %v5026 = vld [vmem:[%s960 + $0x10] sm:$0xff]
      %v5027 = vld [vmem:[%s960 + $0x18] sm:$0xff]
      %v5028 = vld [vmem:[%s960 + $0x20] sm:$0xff]
      %v5029 = vld [vmem:[%s960 + $0x28] sm:$0xff]
      %v5030 = vld [vmem:[%s960 + $0x30] sm:$0xff]
      %v5031 = vld [vmem:[%s960 + $0x38] sm:$0xff]
      %v5032 = vld [vmem:[%s960 + $0x40] sm:$0xff]
      %v5033 = vld [vmem:[%s960 + $0x48] sm:$0xff]
      %v5034 = vld [vmem:[%s960 + $0x50] sm:$0xff]
      %v5035 = vld [vmem:[%s960 + $0x58] sm:$0xff]
      %v5036 = vld [vmem:[%s960 + $0x60] sm:$0xff]
      %v5037 = vld [vmem:[%s960 + $0x68] sm:$0xff]
      %v5038 = vld [vmem:[%s960 + $0x70] sm:$0xff]
      %v5039 = vld [vmem:[%s960 + $0x78] sm:$0xff]
      %v5040 = vlaneseq
      %v5041 = vshrl.u32 %v5040, 7
      %v5042 = vsub.s32 3, %v5041
      %v5043 = vrot.slane %v4324, %v5042
      %v5044 = vlaneseq
      %v5045 = vshrl.u32 %v5044, 7
      %v5046 = vsub.s32 7, %v5045
      %v5047 = vrot.slane %v4324, %v5046
      %v5048 = vlaneseq
      %v5049 = vshrl.u32 %v5048, 7
      %v5050 = vsub.s32 3, %v5049
      %v5051 = vrot.slane %v4325, %v5050
      %v5052 = vlaneseq
      %v5053 = vshrl.u32 %v5052, 7
      %v5054 = vsub.s32 7, %v5053
      %v5055 = vrot.slane %v4325, %v5054
      %v5056 = vlaneseq
      %v5057 = vshrl.u32 %v5056, 7
      %v5058 = vsub.s32 3, %v5057
      %v5059 = vrot.slane %v4326, %v5058
      %v5060 = vlaneseq
      %v5061 = vshrl.u32 %v5060, 7
      %v5062 = vsub.s32 7, %v5061
      %v5063 = vrot.slane %v4326, %v5062
      %v5064 = vlaneseq
      %v5065 = vshrl.u32 %v5064, 7
      %v5066 = vsub.s32 3, %v5065
      %v5067 = vrot.slane %v4327, %v5066
      %v5068 = vlaneseq
      %v5069 = vshrl.u32 %v5068, 7
      %v5070 = vsub.s32 7, %v5069
      %v5071 = vrot.slane %v4327, %v5070
      %v5072 = vlaneseq
      %v5073 = vshrl.u32 %v5072, 7
      %v5074 = vsub.s32 3, %v5073
      %v5075 = vrot.slane %v4328, %v5074
      %v5076 = vlaneseq
      %v5077 = vshrl.u32 %v5076, 7
      %v5078 = vsub.s32 7, %v5077
      %v5079 = vrot.slane %v4328, %v5078
      %v5080 = vlaneseq
      %v5081 = vshrl.u32 %v5080, 7
      %v5082 = vsub.s32 3, %v5081
      %v5083 = vrot.slane %v4329, %v5082
      %v5084 = vlaneseq
      %v5085 = vshrl.u32 %v5084, 7
      %v5086 = vsub.s32 7, %v5085
      %v5087 = vrot.slane %v4329, %v5086
      %v5088 = vlaneseq
      %v5089 = vshrl.u32 %v5088, 7
      %v5090 = vsub.s32 3, %v5089
      %v5091 = vrot.slane %v4330, %v5090
      %v5092 = vlaneseq
      %v5093 = vshrl.u32 %v5092, 7
      %v5094 = vsub.s32 7, %v5093
      %v5095 = vrot.slane %v4330, %v5094
      %v5096 = vlaneseq
      %v5097 = vshrl.u32 %v5096, 7
      %v5098 = vsub.s32 3, %v5097
      %v5099 = vrot.slane %v4331, %v5098
      %v5100 = vlaneseq
      %v5101 = vshrl.u32 %v5100, 7
      %v5102 = vsub.s32 7, %v5101
      %v5103 = vrot.slane %v4331, %v5102
      %v5120 = vlaneseq
      %v5121 = vshrl.u32 %v5120, 7
      %v5122 = vsub.s32 3, %v5121
      %v5123 = vrot.slane %v5043, %v5122
      %v5124 = vlaneseq
      %v5125 = vshrl.u32 %v5124, 7
      %v5126 = vsub.s32 3, %v5125
      %v5127 = vrot.slane %v5047, %v5126
      %v5128 = vlaneseq
      %v5129 = vshrl.u32 %v5128, 7
      %v5130 = vsub.s32 3, %v5129
      %v5131 = vrot.slane %v5051, %v5130
      %v5132 = vlaneseq
      %v5133 = vshrl.u32 %v5132, 7
      %v5134 = vsub.s32 3, %v5133
      %v5135 = vrot.slane %v5055, %v5134
      %v5136 = vlaneseq
      %v5137 = vshrl.u32 %v5136, 7
      %v5138 = vsub.s32 3, %v5137
      %v5139 = vrot.slane %v5059, %v5138
      %v5140 = vlaneseq
      %v5141 = vshrl.u32 %v5140, 7
      %v5142 = vsub.s32 3, %v5141
      %v5143 = vrot.slane %v5063, %v5142
      %v5144 = vlaneseq
      %v5145 = vshrl.u32 %v5144, 7
      %v5146 = vsub.s32 3, %v5145
      %v5147 = vrot.slane %v5067, %v5146
      %v5148 = vlaneseq
      %v5149 = vshrl.u32 %v5148, 7
      %v5150 = vsub.s32 3, %v5149
      %v5151 = vrot.slane %v5071, %v5150
      %v5152 = vlaneseq
      %v5153 = vshrl.u32 %v5152, 7
      %v5154 = vsub.s32 3, %v5153
      %v5155 = vrot.slane %v5075, %v5154
      %v5156 = vlaneseq
      %v5157 = vshrl.u32 %v5156, 7
      %v5158 = vsub.s32 3, %v5157
      %v5159 = vrot.slane %v5079, %v5158
      %v5160 = vlaneseq
      %v5161 = vshrl.u32 %v5160, 7
      %v5162 = vsub.s32 3, %v5161
      %v5163 = vrot.slane %v5083, %v5162
      %v5164 = vlaneseq
      %v5165 = vshrl.u32 %v5164, 7
      %v5166 = vsub.s32 3, %v5165
      %v5167 = vrot.slane %v5087, %v5166
      %v5168 = vlaneseq
      %v5169 = vshrl.u32 %v5168, 7
      %v5170 = vsub.s32 3, %v5169
      %v5171 = vrot.slane %v5091, %v5170
      %v5172 = vlaneseq
      %v5173 = vshrl.u32 %v5172, 7
      %v5174 = vsub.s32 3, %v5173
      %v5175 = vrot.slane %v5095, %v5174
      %v5176 = vlaneseq
      %v5177 = vshrl.u32 %v5176, 7
      %v5178 = vsub.s32 3, %v5177
      %v5179 = vrot.slane %v5099, %v5178
      %v5180 = vlaneseq
      %v5181 = vshrl.u32 %v5180, 7
      %v5182 = vsub.s32 3, %v5181
      %v5183 = vrot.slane %v5103, %v5182
      %v5184 = vmul.f32 %v5024, %v5123
      %v5185 = vmul.f32 %v5025, %v5127
      %v5186 = vmul.f32 %v5026, %v5131
      %v5187 = vmul.f32 %v5027, %v5135
      %v5188 = vmul.f32 %v5028, %v5139
      %v5189 = vmul.f32 %v5029, %v5143
      %v5190 = vmul.f32 %v5030, %v5147
      %v5191 = vmul.f32 %v5031, %v5151
      %v5192 = vmul.f32 %v5032, %v5155
      %v5193 = vmul.f32 %v5033, %v5159
      %v5194 = vmul.f32 %v5034, %v5163
      %v5195 = vmul.f32 %v5035, %v5167
      %v5196 = vmul.f32 %v5036, %v5171
      %v5197 = vmul.f32 %v5037, %v5175
      %v5198 = vmul.f32 %v5038, %v5179
      %v5199 = vmul.f32 %v5039, %v5183
      %v5200 = vadd.f32 %v5184, %v5185
      %v5201 = vadd.f32 %v5200, %v5186
      %v5202 = vadd.f32 %v5201, %v5187
      %v5203 = vadd.f32 %v5202, %v5188
      %v5204 = vadd.f32 %v5203, %v5189
      %v5205 = vadd.f32 %v5204, %v5190
      %v5206 = vadd.f32 %v5205, %v5191
      %v5207 = vadd.f32 %v5206, %v5192
      %v5208 = vadd.f32 %v5207, %v5193
      %v5209 = vadd.f32 %v5208, %v5194
      %v5210 = vadd.f32 %v5209, %v5195
      %v5211 = vadd.f32 %v5210, %v5196
      %v5212 = vadd.f32 %v5211, %v5197
      %v5213 = vadd.f32 %v5212, %v5198
      %v5214 = vadd.f32 %v5213, %v5199
      %5215 = vadd.xlane.f32.xlu0 %v5214
      %v5216 = vpop.xlane.xlu0 %5215
      %v5217 = vadd.f32 %v4989, %v5216
      %v5218 = vmul.f32 %v5184, %v5024
      %v5219 = vmul.f32 %v5185, %v5025
      %v5220 = vmul.f32 %v5186, %v5026
      %v5221 = vmul.f32 %v5187, %v5027
      %v5222 = vmul.f32 %v5188, %v5028
      %v5223 = vmul.f32 %v5189, %v5029
      %v5224 = vmul.f32 %v5190, %v5030
      %v5225 = vmul.f32 %v5191, %v5031
      %v5226 = vmul.f32 %v5192, %v5032
      %v5227 = vmul.f32 %v5193, %v5033
      %v5228 = vmul.f32 %v5194, %v5034
      %v5229 = vmul.f32 %v5195, %v5035
      %v5230 = vmul.f32 %v5196, %v5036
      %v5231 = vmul.f32 %v5197, %v5037
      %v5232 = vmul.f32 %v5198, %v5038
      %v5233 = vmul.f32 %v5199, %v5039
      %v5234 = vadd.f32 %v5218, %v5219
      %v5235 = vadd.f32 %v5234, %v5220
      %v5236 = vadd.f32 %v5235, %v5221
      %v5237 = vadd.f32 %v5236, %v5222
      %v5238 = vadd.f32 %v5237, %v5223
      %v5239 = vadd.f32 %v5238, %v5224
      %v5240 = vadd.f32 %v5239, %v5225
      %v5241 = vadd.f32 %v5240, %v5226
      %v5242 = vadd.f32 %v5241, %v5227
      %v5243 = vadd.f32 %v5242, %v5228
      %v5244 = vadd.f32 %v5243, %v5229
      %v5245 = vadd.f32 %v5244, %v5230
      %v5246 = vadd.f32 %v5245, %v5231
      %v5247 = vadd.f32 %v5246, %v5232
      %v5248 = vadd.f32 %v5247, %v5233
      %5249 = vadd.xlane.f32.xlu0 %v5248
      %v5250 = vpop.xlane.xlu0 %5249
      %v5251 = vadd.f32 %v5023, %v5250
      %v5252 = vmul.f32 %v5217, 0.0009765625
      %v5253 = vmul.f32 %v5251, 0.0009765625
      %v5254 = vmul.f32 %v5252, %v5252
      %v5255 = vsub.f32 %v5253, %v5254
      %v5256 = vmax.f32 %v5255, 0.0
      %v5257 = vadd.f32 %v5256, 1e-05
      %v5258 = vrsqrt.pop %v5257
      %v5259 = vld [vmem:[%s4] sm:$0xff]
      %v5260 = vmul.f32 %v5259, %v5258
      %v5261 = vld [vmem:[%s5] sm:$0xff]
      %v5262 = vmul.f32 %v5252, %v5260
      %v5263 = vsub.f32 %v5261, %v5262
      %5265 = vset.pattern.permute.xlu0 0
      %5266 = vperm.xlu0 %5265, %v5260
      %v5267 = vpop.permute.xlu0 %5266
      %v5269 = vmul.f32 %v4332, %v5267
      %v5270 = vmul.f32 %v4333, %v5267
      %v5271 = vmul.f32 %v4334, %v5267
      %v5272 = vmul.f32 %v4335, %v5267
      %v5273 = vmul.f32 %v4336, %v5267
      %v5274 = vmul.f32 %v4337, %v5267
      %v5275 = vmul.f32 %v4338, %v5267
      %v5276 = vmul.f32 %v4339, %v5267
      %v5277 = vmul.f32 %v4340, %v5267
      %v5278 = vmul.f32 %v4341, %v5267
      %v5279 = vmul.f32 %v4342, %v5267
      %v5280 = vmul.f32 %v4343, %v5267
      %v5281 = vmul.f32 %v4344, %v5267
      %v5282 = vmul.f32 %v4345, %v5267
      %v5283 = vmul.f32 %v4346, %v5267
      %v5284 = vmul.f32 %v4347, %v5267
      %5286 = vset.pattern.permute.xlu0 0
      %5287 = vperm.xlu0 %5286, %v5263
      %v5288 = vpop.permute.xlu0 %5287
      %v5290 = vadd.f32 %v5269, %v5288
      %v5291 = vadd.f32 %v5270, %v5288
      %v5292 = vadd.f32 %v5271, %v5288
      %v5293 = vadd.f32 %v5272, %v5288
      %v5294 = vadd.f32 %v5273, %v5288
      %v5295 = vadd.f32 %v5274, %v5288
      %v5296 = vadd.f32 %v5275, %v5288
      %v5297 = vadd.f32 %v5276, %v5288
      %v5298 = vadd.f32 %v5277, %v5288
      %v5299 = vadd.f32 %v5278, %v5288
      %v5300 = vadd.f32 %v5279, %v5288
      %v5301 = vadd.f32 %v5280, %v5288
      %v5302 = vadd.f32 %v5281, %v5288
      %v5303 = vadd.f32 %v5282, %v5288
      %v5304 = vadd.f32 %v5283, %v5288
      %v5305 = vadd.f32 %v5284, %v5288
      %5306 = vst [vmem:[%s251] sm:$0xff] %v5290
      %5307 = vst [vmem:[%s251 + $0x8] sm:$0xff] %v5291
      %5308 = vst [vmem:[%s251 + $0x10] sm:$0xff] %v5292
      %5309 = vst [vmem:[%s251 + $0x18] sm:$0xff] %v5293
      %5310 = vst [vmem:[%s251 + $0x20] sm:$0xff] %v5294
      %5311 = vst [vmem:[%s251 + $0x28] sm:$0xff] %v5295
      %5312 = vst [vmem:[%s251 + $0x30] sm:$0xff] %v5296
      %5313 = vst [vmem:[%s251 + $0x38] sm:$0xff] %v5297
      %5314 = vst [vmem:[%s251 + $0x40] sm:$0xff] %v5298
      %5315 = vst [vmem:[%s251 + $0x48] sm:$0xff] %v5299
      %5316 = vst [vmem:[%s251 + $0x50] sm:$0xff] %v5300
      %5317 = vst [vmem:[%s251 + $0x58] sm:$0xff] %v5301
      %5318 = vst [vmem:[%s251 + $0x60] sm:$0xff] %v5302
      %5319 = vst [vmem:[%s251 + $0x68] sm:$0xff] %v5303
      %5320 = vst [vmem:[%s251 + $0x70] sm:$0xff] %v5304
      %5321 = vst [vmem:[%s251 + $0x78] sm:$0xff] %v5305
      %v5322 = vld [vmem:[%s1617] sm:$0xff]
      %v5323 = vld [vmem:[%s1617 + $0x8] sm:$0xff]
      %v5324 = vld [vmem:[%s1617 + $0x10] sm:$0xff]
      %v5325 = vld [vmem:[%s1617 + $0x18] sm:$0xff]
      %v5326 = vld [vmem:[%s1617 + $0x20] sm:$0xff]
      %v5327 = vld [vmem:[%s1617 + $0x28] sm:$0xff]
      %v5328 = vld [vmem:[%s1617 + $0x30] sm:$0xff]
      %v5329 = vld [vmem:[%s1617 + $0x38] sm:$0xff]
      %v5330 = vld [vmem:[%s1617 + $0x40] sm:$0xff]
      %v5331 = vld [vmem:[%s1617 + $0x48] sm:$0xff]
      %v5332 = vld [vmem:[%s1617 + $0x50] sm:$0xff]
      %v5333 = vld [vmem:[%s1617 + $0x58] sm:$0xff]
      %v5334 = vld [vmem:[%s1617 + $0x60] sm:$0xff]
      %v5335 = vld [vmem:[%s1617 + $0x68] sm:$0xff]
      %v5336 = vld [vmem:[%s1617 + $0x70] sm:$0xff]
      %v5337 = vld [vmem:[%s1617 + $0x78] sm:$0xff]
      %v5338 = vmul.f32 %v5322, %v5267
      %v5339 = vmul.f32 %v5323, %v5267
      %v5340 = vmul.f32 %v5324, %v5267
      %v5341 = vmul.f32 %v5325, %v5267
      %v5342 = vmul.f32 %v5326, %v5267
      %v5343 = vmul.f32 %v5327, %v5267
      %v5344 = vmul.f32 %v5328, %v5267
      %v5345 = vmul.f32 %v5329, %v5267
      %v5346 = vmul.f32 %v5330, %v5267
      %v5347 = vmul.f32 %v5331, %v5267
      %v5348 = vmul.f32 %v5332, %v5267
      %v5349 = vmul.f32 %v5333, %v5267
      %v5350 = vmul.f32 %v5334, %v5267
      %v5351 = vmul.f32 %v5335, %v5267
      %v5352 = vmul.f32 %v5336, %v5267
      %v5353 = vmul.f32 %v5337, %v5267
      %v5354 = vadd.f32 %v5338, %v5288
      %v5355 = vadd.f32 %v5339, %v5288
      %v5356 = vadd.f32 %v5340, %v5288
      %v5357 = vadd.f32 %v5341, %v5288
      %v5358 = vadd.f32 %v5342, %v5288
      %v5359 = vadd.f32 %v5343, %v5288
      %v5360 = vadd.f32 %v5344, %v5288
      %v5361 = vadd.f32 %v5345, %v5288
      %v5362 = vadd.f32 %v5346, %v5288
      %v5363 = vadd.f32 %v5347, %v5288
      %v5364 = vadd.f32 %v5348, %v5288
      %v5365 = vadd.f32 %v5349, %v5288
      %v5366 = vadd.f32 %v5350, %v5288
      %v5367 = vadd.f32 %v5351, %v5288
      %v5368 = vadd.f32 %v5352, %v5288
      %v5369 = vadd.f32 %v5353, %v5288
      %s5370 = scalar_lea.vmem %s251, 128
      %5371 = vst [vmem:[%s5370] sm:$0xff] %v5354
      %5372 = vst [vmem:[%s5370 + $0x8] sm:$0xff] %v5355
      %5373 = vst [vmem:[%s5370 + $0x10] sm:$0xff] %v5356
      %5374 = vst [vmem:[%s5370 + $0x18] sm:$0xff] %v5357
      %5375 = vst [vmem:[%s5370 + $0x20] sm:$0xff] %v5358
      %5376 = vst [vmem:[%s5370 + $0x28] sm:$0xff] %v5359
      %5377 = vst [vmem:[%s5370 + $0x30] sm:$0xff] %v5360
      %5378 = vst [vmem:[%s5370 + $0x38] sm:$0xff] %v5361
      %5379 = vst [vmem:[%s5370 + $0x40] sm:$0xff] %v5362
      %5380 = vst [vmem:[%s5370 + $0x48] sm:$0xff] %v5363
      %5381 = vst [vmem:[%s5370 + $0x50] sm:$0xff] %v5364
      %5382 = vst [vmem:[%s5370 + $0x58] sm:$0xff] %v5365
      %5383 = vst [vmem:[%s5370 + $0x60] sm:$0xff] %v5366
      %5384 = vst [vmem:[%s5370 + $0x68] sm:$0xff] %v5367
      %5385 = vst [vmem:[%s5370 + $0x70] sm:$0xff] %v5368
      %5386 = vst [vmem:[%s5370 + $0x78] sm:$0xff] %v5369
      %v5387 = vld [vmem:[%s943] sm:$0xff]
      %v5388 = vld [vmem:[%s943 + $0x8] sm:$0xff]
      %v5389 = vld [vmem:[%s943 + $0x10] sm:$0xff]
      %v5390 = vld [vmem:[%s943 + $0x18] sm:$0xff]
      %v5391 = vld [vmem:[%s943 + $0x20] sm:$0xff]
      %v5392 = vld [vmem:[%s943 + $0x28] sm:$0xff]
      %v5393 = vld [vmem:[%s943 + $0x30] sm:$0xff]
      %v5394 = vld [vmem:[%s943 + $0x38] sm:$0xff]
      %v5395 = vld [vmem:[%s943 + $0x40] sm:$0xff]
      %v5396 = vld [vmem:[%s943 + $0x48] sm:$0xff]
      %v5397 = vld [vmem:[%s943 + $0x50] sm:$0xff]
      %v5398 = vld [vmem:[%s943 + $0x58] sm:$0xff]
      %v5399 = vld [vmem:[%s943 + $0x60] sm:$0xff]
      %v5400 = vld [vmem:[%s943 + $0x68] sm:$0xff]
      %v5401 = vld [vmem:[%s943 + $0x70] sm:$0xff]
      %v5402 = vld [vmem:[%s943 + $0x78] sm:$0xff]
      %v5403 = vmul.f32 %v5387, %v5267
      %v5404 = vmul.f32 %v5388, %v5267
      %v5405 = vmul.f32 %v5389, %v5267
      %v5406 = vmul.f32 %v5390, %v5267
      %v5407 = vmul.f32 %v5391, %v5267
      %v5408 = vmul.f32 %v5392, %v5267
      %v5409 = vmul.f32 %v5393, %v5267
      %v5410 = vmul.f32 %v5394, %v5267
      %v5411 = vmul.f32 %v5395, %v5267
      %v5412 = vmul.f32 %v5396, %v5267
      %v5413 = vmul.f32 %v5397, %v5267
      %v5414 = vmul.f32 %v5398, %v5267
      %v5415 = vmul.f32 %v5399, %v5267
      %v5416 = vmul.f32 %v5400, %v5267
      %v5417 = vmul.f32 %v5401, %v5267
      %v5418 = vmul.f32 %v5402, %v5267
      %v5419 = vadd.f32 %v5403, %v5288
      %v5420 = vadd.f32 %v5404, %v5288
      %v5421 = vadd.f32 %v5405, %v5288
      %v5422 = vadd.f32 %v5406, %v5288
      %v5423 = vadd.f32 %v5407, %v5288
      %v5424 = vadd.f32 %v5408, %v5288
      %v5425 = vadd.f32 %v5409, %v5288
      %v5426 = vadd.f32 %v5410, %v5288
      %v5427 = vadd.f32 %v5411, %v5288
      %v5428 = vadd.f32 %v5412, %v5288
      %v5429 = vadd.f32 %v5413, %v5288
      %v5430 = vadd.f32 %v5414, %v5288
      %v5431 = vadd.f32 %v5415, %v5288
      %v5432 = vadd.f32 %v5416, %v5288
      %v5433 = vadd.f32 %v5417, %v5288
      %v5434 = vadd.f32 %v5418, %v5288
      %s5435 = scalar_lea.vmem %s251, 256
      %5436 = vst [vmem:[%s5435] sm:$0xff] %v5419
      %5437 = vst [vmem:[%s5435 + $0x8] sm:$0xff] %v5420
      %5438 = vst [vmem:[%s5435 + $0x10] sm:$0xff] %v5421
      %5439 = vst [vmem:[%s5435 + $0x18] sm:$0xff] %v5422
      %5440 = vst [vmem:[%s5435 + $0x20] sm:$0xff] %v5423
      %5441 = vst [vmem:[%s5435 + $0x28] sm:$0xff] %v5424
      %5442 = vst [vmem:[%s5435 + $0x30] sm:$0xff] %v5425
      %5443 = vst [vmem:[%s5435 + $0x38] sm:$0xff] %v5426
      %5444 = vst [vmem:[%s5435 + $0x40] sm:$0xff] %v5427
      %5445 = vst [vmem:[%s5435 + $0x48] sm:$0xff] %v5428
      %5446 = vst [vmem:[%s5435 + $0x50] sm:$0xff] %v5429
      %5447 = vst [vmem:[%s5435 + $0x58] sm:$0xff] %v5430
      %5448 = vst [vmem:[%s5435 + $0x60] sm:$0xff] %v5431
      %5449 = vst [vmem:[%s5435 + $0x68] sm:$0xff] %v5432
      %5450 = vst [vmem:[%s5435 + $0x70] sm:$0xff] %v5433
      %5451 = vst [vmem:[%s5435 + $0x78] sm:$0xff] %v5434
      %v5452 = vld [vmem:[%s960] sm:$0xff]
      %v5453 = vld [vmem:[%s960 + $0x8] sm:$0xff]
      %v5454 = vld [vmem:[%s960 + $0x10] sm:$0xff]
      %v5455 = vld [vmem:[%s960 + $0x18] sm:$0xff]
      %v5456 = vld [vmem:[%s960 + $0x20] sm:$0xff]
      %v5457 = vld [vmem:[%s960 + $0x28] sm:$0xff]
      %v5458 = vld [vmem:[%s960 + $0x30] sm:$0xff]
      %v5459 = vld [vmem:[%s960 + $0x38] sm:$0xff]
      %v5460 = vld [vmem:[%s960 + $0x40] sm:$0xff]
      %v5461 = vld [vmem:[%s960 + $0x48] sm:$0xff]
      %v5462 = vld [vmem:[%s960 + $0x50] sm:$0xff]
      %v5463 = vld [vmem:[%s960 + $0x58] sm:$0xff]
      %v5464 = vld [vmem:[%s960 + $0x60] sm:$0xff]
      %v5465 = vld [vmem:[%s960 + $0x68] sm:$0xff]
      %v5466 = vld [vmem:[%s960 + $0x70] sm:$0xff]
      %v5467 = vld [vmem:[%s960 + $0x78] sm:$0xff]
      %v5468 = vmul.f32 %v5452, %v5267
      %v5469 = vmul.f32 %v5453, %v5267
      %v5470 = vmul.f32 %v5454, %v5267
      %v5471 = vmul.f32 %v5455, %v5267
      %v5472 = vmul.f32 %v5456, %v5267
      %v5473 = vmul.f32 %v5457, %v5267
      %v5474 = vmul.f32 %v5458, %v5267
      %v5475 = vmul.f32 %v5459, %v5267
      %v5476 = vmul.f32 %v5460, %v5267
      %v5477 = vmul.f32 %v5461, %v5267
      %v5478 = vmul.f32 %v5462, %v5267
      %v5479 = vmul.f32 %v5463, %v5267
      %v5480 = vmul.f32 %v5464, %v5267
      %v5481 = vmul.f32 %v5465, %v5267
      %v5482 = vmul.f32 %v5466, %v5267
      %v5483 = vmul.f32 %v5467, %v5267
      %v5484 = vadd.f32 %v5468, %v5288
      %v5485 = vadd.f32 %v5469, %v5288
      %v5486 = vadd.f32 %v5470, %v5288
      %v5487 = vadd.f32 %v5471, %v5288
      %v5488 = vadd.f32 %v5472, %v5288
      %v5489 = vadd.f32 %v5473, %v5288
      %v5490 = vadd.f32 %v5474, %v5288
      %v5491 = vadd.f32 %v5475, %v5288
      %v5492 = vadd.f32 %v5476, %v5288
      %v5493 = vadd.f32 %v5477, %v5288
      %v5494 = vadd.f32 %v5478, %v5288
      %v5495 = vadd.f32 %v5479, %v5288
      %v5496 = vadd.f32 %v5480, %v5288
      %v5497 = vadd.f32 %v5481, %v5288
      %v5498 = vadd.f32 %v5482, %v5288
      %v5499 = vadd.f32 %v5483, %v5288
      %s5500 = scalar_lea.vmem %s251, 384
      %5501 = vst [vmem:[%s5500] sm:$0xff] %v5484
      %5502 = vst [vmem:[%s5500 + $0x8] sm:$0xff] %v5485
      %5503 = vst [vmem:[%s5500 + $0x10] sm:$0xff] %v5486
      %5504 = vst [vmem:[%s5500 + $0x18] sm:$0xff] %v5487
      %5505 = vst [vmem:[%s5500 + $0x20] sm:$0xff] %v5488
      %5506 = vst [vmem:[%s5500 + $0x28] sm:$0xff] %v5489
      %5507 = vst [vmem:[%s5500 + $0x30] sm:$0xff] %v5490
      %5508 = vst [vmem:[%s5500 + $0x38] sm:$0xff] %v5491
      %5509 = vst [vmem:[%s5500 + $0x40] sm:$0xff] %v5492
      %5510 = vst [vmem:[%s5500 + $0x48] sm:$0xff] %v5493
      %5511 = vst [vmem:[%s5500 + $0x50] sm:$0xff] %v5494
      %5512 = vst [vmem:[%s5500 + $0x58] sm:$0xff] %v5495
      %5513 = vst [vmem:[%s5500 + $0x60] sm:$0xff] %v5496
      %5514 = vst [vmem:[%s5500 + $0x68] sm:$0xff] %v5497
      %5515 = vst [vmem:[%s5500 + $0x70] sm:$0xff] %v5498
      %5516 = vst [vmem:[%s5500 + $0x78] sm:$0xff] %v5499
      %p5517 = scmp.lt.s32.totalorder %s17, 1
      %s5518 = scalar_select %p5517, %s17, 1
      %s5519 = smul.addr %s5518, 64
      %s5520 = smul.addr %s5519, 8
      %s5521 = scalar_lea.vmem %s6, %s5520
      // Predicated region
      $region45: #{deconv_layer.1} parent=43 // pred_check
        %p5522 = pneg %p166
      $region46: #{deconv_layer.1} parent=43 // pred_check_branch
        %5524 = sbr.rel (%p5522) target = $region48
      $region47: #{deconv_layer.1} parent=43 // pred_region
        _
      $region48: #{deconv_layer.1} parent=43 // pred_fallthru
        _
    $region44: #{deconv_layer.1} parent=5 // pred_fallthru
      _
    %p5525 = scmp.le.s32.totalorder 2, %s12
    // Predicated region
    $region49: #{deconv_layer.1} parent=5 // pred_check
      %p5526 = pneg %p5525
    $region50: #{deconv_layer.1} parent=5 // pred_check_branch
      %5528 = sbr.rel (%p5526) target = $region52
    $region51: #{deconv_layer.1} parent=5 // pred_region
      %s5529 = ssub.s32 %s12, 2
      // Predicated region
      $region53: #{deconv_layer.1} parent=51 // pred_check
        %p5530 = pneg %p172
      $region54: #{deconv_layer.1} parent=51 // pred_check_branch
        %5532 = sbr.rel (%p5530) target = $region56
      $region55: #{deconv_layer.1} parent=51 // pred_region
        %p5533 = scmp.lt.s32.totalorder %s18, 1
        %s5534 = scalar_select %p5533, %s18, 1
        %s5535 = smul.addr %s5534, 64
        %s5536 = smul.addr %s5535, 8
        %s5537 = scalar_lea.vmem %s6, %s5536
      $region56: #{deconv_layer.1} parent=51 // pred_fallthru
        _
    $region52: #{deconv_layer.1} parent=5 // pred_fallthru
      _
  $region6: #{deconv_layer.1} parent=0 // loop_footer
    %s16 = sadd.s32 1, %s12
  $region7: #{deconv_layer.1} parent=0 // loop_footer_branch
    %11 = sbr.rel target = $region3
  $region8: #{deconv_layer.1} parent=0 // loop_exit
    _

</llo_original>
